<compile_context>
chip_gen: v7x
topology: tpu7x:2x2x1
jax: 0.10.0
libtpu: 0.0.40
codegen_flags: <defaults>
</compile_context>

<pallas_src>
import functools

import numpy as np
import jax
import jax.numpy as jnp
from jax.experimental import pallas as pl
from jax.experimental.pallas import tpu as pltpu

MEAN = 0.1307
SIGMA = 0.3081


def _default_vmem_limit():
    # Generation-aware scoped-VMEM limit: half of physical VMEM, clamped to [32 MiB, 96 MiB].
    # (v5e/v6e: 128 MiB physical -> 64 MiB; v7x: 64 MiB physical -> 32 MiB.)
    try:
        cap = int(pltpu.get_tpu_info().vmem_capacity_bytes)
    except Exception:
        cap = 64 * 1024 * 1024
    return max(32 * 1024 * 1024, min(cap // 2, 96 * 1024 * 1024))


_VMEM_LIMIT = _default_vmem_limit()


def _round_up(v, m):
    return (v + m - 1) // m * m


def _tile_for(dim, candidates):
    for c in candidates:
        if dim % c == 0:
            return c
    return dim          # full-dim block (allowed by the BlockSpec rules)


def _pick_row_tiles(m):
    """Choose (tm, padded_m) for the sublane/row axis, preferring tilings that need no pad copy."""
    if m <= 512:
        mp = _round_up(m, 8)
        return mp, mp
    for c in (512, 384, 256, 128):
        if m % c == 0:
            return c, m
    mp = _round_up(m, 8)
    for c in (512, 384, 256, 128):
        if mp % c == 0:
            return c, mp
    return 512, _round_up(m, 512)


# ---------------------------------------------------------------------------
# Matmul + row-gated bias (+ optional fused lazy ReLUZ generator rows)
# ---------------------------------------------------------------------------

def _store_with_bias(o_ref, y, b_ref, bias_rows):
    """Store y, adding the bias only to global rows < bias_rows (the K==0 slice)."""
    tm = o_ref.shape[0]
    row0 = pl.program_id(0) * tm

    @pl.when(row0 >= bias_rows)            # tiles fully past the bias rows: plain store
    def _plain():
        o_ref[...] = y

    @pl.when(row0 < bias_rows)             # only intersecting tiles pay for the select
    def _biased():
        row = row0 + jax.lax.broadcasted_iota(jnp.int32, (tm, 1), 0)
        o_ref[...] = y + jnp.where(row < bias_rows, b_ref[...], 0.0)


def _mm_bias_k1_kernel(x_ref, wt_ref, b_ref, o_ref, *, bias_rows):
    # Single contraction step: no VMEM accumulator needed.
    y = jnp.dot(x_ref[...], wt_ref[...], preferred_element_type=jnp.float32)
    _store_with_bias(o_ref, y, b_ref, bias_rows)


def _mm_bias_lazy_k1_kernel(x_ref, wt_ref, b_ref, h_ref, o_ref, o2_ref, *, bias_rows):
    w = wt_ref[...]
    y = jnp.dot(x_ref[...], w, preferred_element_type=jnp.float32)
    _store_with_bias(o_ref, y, b_ref, bias_rows)
    # Lazy ReLUZ generator rows of the previous layer: diag(half) @ W^T == half[:, None] * W^T,
    # computed from the W^T tile that is already resident in VMEM (no second W^T read).
    o2_ref[...] = h_ref[...] * w


def _mm_bias_acc_kernel(x_ref, wt_ref, b_ref, o_ref, acc_ref, *, bias_rows):
    k = pl.program_id(2)

    @pl.when(k == 0)
    def _init():
        acc_ref[...] = jnp.zeros_like(acc_ref)

    acc_ref[...] += jnp.dot(x_ref[...], wt_ref[...], preferred_element_type=jnp.float32)

    @pl.when(k == pl.num_programs(2) - 1)
    def _flush():
        _store_with_bias(o_ref, acc_ref[...], b_ref, bias_rows)


def _scale_rows_kernel(h_ref, wt_ref, o_ref):
    o_ref[...] = h_ref[...] * wt_ref[...]


def scale_rows(half_col, wt):
    """Fallback (non-fused) lazy-generator materialization: diag(half) @ wt."""
    n_in, _ = half_col.shape
    n_in2, n = wt.shape
    assert n_in == n_in2
    tm = _tile_for(n_in, (256, 128))
    tn = _tile_for(n, (512, 256, 128))
    return pl.pallas_call(
        _scale_rows_kernel,
        out_shape=jax.ShapeDtypeStruct((n_in, n), jnp.float32),
        grid=(n_in // tm, n // tn),
        in_specs=[pl.BlockSpec((tm, 1), lambda i, j: (i, 0)),
                  pl.BlockSpec((tm, tn), lambda i, j: (i, j))],
        out_specs=pl.BlockSpec((tm, tn), lambda i, j: (i, j)),
        compiler_params=pltpu.CompilerParams(
            dimension_semantics=("parallel", "parallel"),
            vmem_limit_bytes=_VMEM_LIMIT),
    )(half_col, wt)


def matmul_bias(x, wt, b, bias_rows, half=None):
    """y = x @ wt with bias added to rows [0, bias_rows).

    If `half` (shape (1, kc)) is given, also returns the lazy ReLUZ generator rows
    diag(half) @ wt; they are produced by the same pallas_call (reusing the wt tiles)
    whenever the row axis fits a single tile and the contraction is single-step.
    """
    m, kc = x.shape
    kc2, n = wt.shape
    assert kc == kc2
    tn = _tile_for(n, (512, 256, 128))
    tk = _tile_for(kc, (512, 256, 128))
    tm, mp = _pick_row_tiles(m)
    if mp != m:                                        # rare fallback (rows not 8-aligned)
        x = jnp.pad(x, ((0, mp - m), (0, 0)))
    nk = kc // tk

    if half is not None and mp == tm and nk == 1:
        out, lazy = pl.pallas_call(
            functools.partial(_mm_bias_lazy_k1_kernel, bias_rows=bias_rows),
            out_shape=(jax.ShapeDtypeStruct((mp, n), jnp.float32),
                       jax.ShapeDtypeStruct((kc, n), jnp.float32)),
            grid=(1, n // tn),
            in_specs=[pl.BlockSpec((tm, kc), lambda i, j: (i, 0)),
                      pl.BlockSpec((kc, tn), lambda i, j: (0, j)),
                      pl.BlockSpec((1, tn), lambda i, j: (0, j)),
                      pl.BlockSpec((kc, 1), lambda i, j: (0, 0))],
            out_specs=(pl.BlockSpec((tm, tn), lambda i, j: (i, j)),
                       pl.BlockSpec((kc, tn), lambda i, j: (0, j))),
            compiler_params=pltpu.CompilerParams(
                dimension_semantics=("arbitrary", "parallel"),
                vmem_limit_bytes=_VMEM_LIMIT),
        )(x, wt, b, half.reshape(kc, 1))
        return (out if mp == m else out[:m]), lazy

    if nk == 1:
        out = pl.pallas_call(
            functools.partial(_mm_bias_k1_kernel, bias_rows=bias_rows),
            out_shape=jax.ShapeDtypeStruct((mp, n), jnp.float32),
            grid=(mp // tm, n // tn),
            in_specs=[pl.BlockSpec((tm, kc), lambda i, j: (i, 0)),
                      pl.BlockSpec((kc, tn), lambda i, j: (0, j)),
                      pl.BlockSpec((1, tn), lambda i, j: (0, j))],
            out_specs=pl.BlockSpec((tm, tn), lambda i, j: (i, j)),
            compiler_params=pltpu.CompilerParams(
                dimension_semantics=("parallel", "parallel"),
                vmem_limit_bytes=_VMEM_LIMIT),
        )(x, wt, b)
    else:
        out = pl.pallas_call(
            functools.partial(_mm_bias_acc_kernel, bias_rows=bias_rows),
            out_shape=jax.ShapeDtypeStruct((mp, n), jnp.float32),
            grid=(mp // tm, n // tn, nk),
            in_specs=[pl.BlockSpec((tm, tk), lambda i, j, k: (i, k)),
                      pl.BlockSpec((tk, tn), lambda i, j, k: (k, j)),
                      pl.BlockSpec((1, tn), lambda i, j, k: (0, j))],
            out_specs=pl.BlockSpec((tm, tn), lambda i, j, k: (i, j)),
            scratch_shapes=[pltpu.VMEM((tm, tn), jnp.float32)],
            compiler_params=pltpu.CompilerParams(
                dimension_semantics=("parallel", "parallel", "arbitrary"),
                vmem_limit_bytes=_VMEM_LIMIT),
        )(x, wt, b)

    out = out if mp == m else out[:m]
    if half is not None:
        # Generic fallback when fusion doesn't apply (multi-tile rows / multi-step contraction).
        return out, scale_rows(half.reshape(kc, 1), wt)
    return out


# ---------------------------------------------------------------------------
# ReLUZ: feature(lane)-tiled, full K resident per tile (reduction over K only).
# Returns the dense rows plus the diagonal "half" vector of new generators,
# applied lazily at the next affine layer.
# ---------------------------------------------------------------------------

def _reluz_kernel(x_ref, lam_ref, out_ref, half_ref):
    x = x_ref[...]                                   # (K, tn)
    lam = lam_ref[...]                               # (1, tn)
    x0 = x[0:1, :]
    s = jnp.sum(jnp.abs(x), axis=0, keepdims=True) - jnp.abs(x0)
    l = x0 - s                                       # lower bound
    u = x0 + s                                       # upper bound
    _l = (l > 0).astype(jnp.float32)                 # heaviside(l)
    l0u = jnp.logical_and(u > 0, l < 0).astype(jnp.float32)
    d = jnp.maximum(-l * lam, u * (1.0 - lam))
    half = l0u * (0.5 * d)                           # value of the new (diagonal) generators
    out = (_l + l0u * lam) * x
    out_ref[...] = out
    out_ref[0:1, :] = out[0:1, :] + half             # center row picks up d/2 on crossing units
    half_ref[...] = half


def _pick_lane_tile(k, n):
    # VMEM per lane tile ~ (in + out) double-buffered: 4 * K * tn * 4 bytes.
    # TODO(synk): for very large K (deep conv stacks, esp. on v7x's 64 MiB VMEM) split into a
    #             K-tiled |.|-sum pass plus an elementwise pass instead of keeping full K resident.
    kp = _round_up(k, 8)
    budget = max(_VMEM_LIMIT // 2, 8 * 1024 * 1024)
    for c in (1024, 512, 256, 128):
        if n % c == 0 and 4 * kp * c * 4 <= budget:
            return c
    return 128 if n % 128 == 0 else n


def reluz(z, lam):
    k, n = z.shape
    tn = _pick_lane_tile(k, n)
    out, half = pl.pallas_call(
        _reluz_kernel,
        out_shape=(jax.ShapeDtypeStruct((k, n), jnp.float32),
                   jax.ShapeDtypeStruct((1, n), jnp.float32)),
        grid=(n // tn,),
        in_specs=[pl.BlockSpec((k, tn), lambda j: (0, j)),
                  pl.BlockSpec((1, tn), lambda j: (0, j))],
        out_specs=(pl.BlockSpec((k, tn), lambda j: (0, j)),
                   pl.BlockSpec((1, tn), lambda j: (0, j))),
        compiler_params=pltpu.CompilerParams(
            dimension_semantics=("parallel",),
            vmem_limit_bytes=_VMEM_LIMIT),
    )(z, lam)
    return out, half


# ---------------------------------------------------------------------------
# EndLayerZ: matmul with the target-difference matrix + lower-bound reduction,
# tiled (and accumulated) over the zonotope-row axis.
# ---------------------------------------------------------------------------

def _endlayer_kernel(x_ref, wt_ref, o_ref, acc_ref):
    i = pl.program_id(0)

    @pl.when(i == 0)
    def _init():
        acc_ref[...] = jnp.zeros_like(acc_ref)

    y = jnp.dot(x_ref[...], wt_ref[...], preferred_element_type=jnp.float32)  # (tm, S)
    row = i * x_ref.shape[0] + jax.lax.broadcasted_iota(jnp.int32, (y.shape[0], 1), 0)
    is_center = row == 0
    center = jnp.sum(jnp.where(is_center, y, 0.0), axis=0, keepdims=True)
    gens = jnp.sum(jnp.where(is_center, 0.0, jnp.abs(y)), axis=0, keepdims=True)
    acc_ref[...] += center - gens

    @pl.when(i == pl.num_programs(0) - 1)
    def _flush():
        o_ref[...] = acc_ref[...]


def endlayer(z, wt):
    kz, s = z.shape
    tm, kp = _pick_row_tiles(kz)
    if kp != kz:
        z = jnp.pad(z, ((0, kp - kz), (0, 0)))          # zero rows contribute nothing
    out = pl.pallas_call(
        _endlayer_kernel,
        out_shape=jax.ShapeDtypeStruct((1, s), jnp.float32),
        grid=(kp // tm,),
        in_specs=[pl.BlockSpec((tm, s), lambda i: (i, 0)),
                  pl.BlockSpec((s, s), lambda i: (0, 0))],
        out_specs=pl.BlockSpec((1, s), lambda i: (0, 0)),
        scratch_shapes=[pltpu.VMEM((1, s), jnp.float32)],
        compiler_params=pltpu.CompilerParams(
            dimension_semantics=("arbitrary",),
            vmem_limit_bytes=_VMEM_LIMIT),
    )(z, wt)
    return out[0]


# ---------------------------------------------------------------------------
# ConvZ = NHWC im2col (glue, contraction pre-padded to 128) + tiled Pallas matmul.
# Output stays NHWC; no activation transpose.
# ---------------------------------------------------------------------------

def im2col_nhwc(z, kh, kw, stride, padding, ckk_pad):
    # TODO(synk): the im2col patch extraction (kh*kw duplicated taps) is XLA glue; a fused conv
    #             kernel accumulating the taps from a VMEM-resident input block would avoid it.
    k, h, w, c = z.shape
    zp = jnp.pad(z, ((0, 0), (padding, padding), (padding, padding), (0, 0)))
    oh = (h + 2 * padding - kh) // stride + 1
    ow = (w + 2 * padding - kw) // stride + 1
    taps = []
    for i in range(kh):
        for j in range(kw):
            taps.append(zp[:, i:i + stride * oh:stride, j:j + stride * ow:stride, :])
    patches = jnp.stack(taps, axis=-1).reshape(k * oh * ow, c * kh * kw)
    if ckk_pad > c * kh * kw:        # zero-pad the contraction dim to an MXU-friendly 128 multiple
        patches = jnp.pad(patches, ((0, 0), (0, ckk_pad - c * kh * kw)))
    return patches, oh, ow


def convz(z_nhwc, wt_pad, b, oc, kh, kw, stride, padding):
    # TODO(synk): for OC << 128 the fully lane-dense formulation is the transposed product
    #             (OC on sublanes, K*oh*ow on lanes); kept row-major here to preserve the shared
    #             (K, features) zonotope layout of the FC path.
    k = z_nhwc.shape[0]
    ckk_pad = wt_pad.shape[0]
    patches, oh, ow = im2col_nhwc(z_nhwc, kh, kw, stride, padding, ckk_pad)
    # bias is added only to the K==0 slice => the first oh*ow rows of the patch matrix
    y = matmul_bias(patches, wt_pad, b.reshape(1, oc), bias_rows=oh * ow)
    return y.reshape(k, oh, ow, oc)                      # NHWC, no NCHW transpose


# ---------------------------------------------------------------------------
# Parameter construction (shapes per NNConvZ.__init__) + Pallas-layout preparation
# ---------------------------------------------------------------------------

def init_params(key, input_size, conv_layers, fc_layers, n_class=10, target=0):
    del n_class
    params = {"conv": [], "fc": [], "relu_conv_lams": [], "relu_fc_lams": []}
    keys = list(jax.random.split(key, 3 * (len(conv_layers) + len(fc_layers)) + 1))
    prev_c = 1
    h = w = input_size
    for (n_ch, ksz, stride, pad) in conv_layers:
        h = (h - ksz + 2 * pad + stride) // stride
        w = (w - ksz + 2 * pad + stride) // stride
        bound = 1.0 / np.sqrt(prev_c * ksz * ksz)
        wgt = jax.random.uniform(keys.pop(), (n_ch, prev_c, ksz, ksz), jnp.float32, -bound, bound)
        bias = jax.random.uniform(keys.pop(), (n_ch,), jnp.float32, -bound, bound)
        # lambdas are parameters of ReLUZConv (torch inits them to 1; random here for a stronger test)
        lam = jax.random.uniform(keys.pop(), (1, n_ch, h, w), jnp.float32, 0.25, 0.75)
        params["conv"].append((wgt, bias, stride, pad))
        params["relu_conv_lams"].append(lam)
        prev_c = n_ch
    prev_fc = prev_c * h * w
    for i, fc in enumerate(fc_layers):
        bound = 1.0 / np.sqrt(prev_fc)
        wgt = jax.random.uniform(keys.pop(), (fc, prev_fc), jnp.float32, -bound, bound)
        bias = jax.random.uniform(keys.pop(), (fc,), jnp.float32, -bound, bound)
        params["fc"].append((wgt, bias))
        if i + 1 < len(fc_layers):
            lam = jax.random.uniform(keys.pop(), (1, fc), jnp.float32, 0.25, 0.75)
            params["relu_fc_lams"].append(lam)
        prev_fc = fc
    # EndLayerZ weight: w[:, target] = 1 ; w -= I
    ew = (jnp.zeros((prev_fc, prev_fc), jnp.float32).at[:, target].set(1.0)
          - jnp.eye(prev_fc, dtype=jnp.float32))
    params["end_w"] = ew
    return params


def prepare_pallas_params(params, input_size):
    """One-time NHWC permutation + lane/contraction padding of weights and lambdas."""
    pp = {"conv": [], "fc": [], "fc_lams": []}
    h = w = input_size
    c = 1
    for (wgt, bias, stride, pad), lam in zip(params["conv"], params["relu_conv_lams"]):
        oc, ic, kh, kw = wgt.shape
        h = (h - kh + 2 * pad + stride) // stride
        w = (w - kw + 2 * pad + stride) // stride
        f = oc * h * w
        fp = _round_up(f, 128)
        ckk = ic * kh * kw
        ckk_pad = _round_up(ckk, 128)
        # (OC, C, kh, kw) -> (C*kh*kw, OC) with the contraction rows zero-padded to a 128 multiple,
        # so the conv matmul uses a full-depth MXU tile instead of tk == C*kh*kw (e.g. 9).
        wt_pad = jnp.pad(jnp.transpose(wgt.reshape(oc, ckk)), ((0, ckk_pad - ckk), (0, 0)))
        lam_nhwc = jnp.transpose(lam, (0, 2, 3, 1)).reshape(1, f)
        lam_flat = jnp.pad(lam_nhwc, ((0, 0), (0, fp - f)), constant_values=1.0)
        pp["conv"].append((wt_pad, bias, stride, pad, kh, kw, oc, lam_flat))
        c = oc
    fin = h * w * c
    fin_p = _round_up(fin, 128)
    n_fc = len(params["fc"])
    for i, (wgt, bias) in enumerate(params["fc"]):
        fout = wgt.shape[0]
        fout_p = _round_up(fout, 128)
        if i == 0:
            # permute columns from PyTorch Flatten order (c, h, w) to our NHWC-flat order (h, w, c)
            w_rows = jnp.transpose(wgt.reshape(fout, c, h, w), (0, 2, 3, 1)).reshape(fout, fin)
        else:
            w_rows = wgt
        wt = jnp.pad(jnp.transpose(w_rows), ((0, fin_p - w_rows.shape[1]), (0, fout_p - fout)))
        bp = jnp.pad(bias.reshape(1, -1), ((0, 0), (0, fout_p - fout)))
        pp["fc"].append((wt, bp))
        if i + 1 < n_fc:
            lam = params["relu_fc_lams"][i]
            pp["fc_lams"].append(jnp.pad(lam, ((0, 0), (0, fout_p - fout)), constant_values=1.0))
        fin, fin_p = fout, fout_p
    s = params["end_w"].shape[0]
    sp = _round_up(s, 128)
    pp["end_wt"] = jnp.pad(jnp.transpose(params["end_w"]), ((0, sp - s), (0, sp - s)))
    pp["n_out"] = s
    return pp


# ---------------------------------------------------------------------------
# Full NNConvZ forward (Pallas path)
# ---------------------------------------------------------------------------

def nnconvz_forward(pp, x, eps):
    # x: (1, 1, H, W) image in [0, 1]
    xn = (x - MEAN) / SIGMA                                     # Normalization
    _, c, h, w = x.shape
    f0 = c * h * w
    center = jnp.transpose(xn, (0, 2, 3, 1))                    # NHWC center row
    gens = jnp.eye(f0, dtype=jnp.float32).reshape(f0, h, w, c) * (eps / SIGMA)  # ToZConv + EpsNorm
    z = jnp.concatenate([center, gens], axis=0)                 # (1 + f0, h, w, c)
    kz = z.shape[0]
    kp = _round_up(kz, 8)
    if kp != kz:                                                # 8-align K once, up front, so the
        z = jnp.pad(z, ((0, kp - kz), (0, 0), (0, 0), (0, 0)))  # conv matmul rows tile w/o copies

    half = None
    n_conv = len(pp["conv"])
    for li, (wt_pad, bias, stride, pad, kh, kw, oc, lam_flat) in enumerate(pp["conv"]):
        if half is not None:
            # TODO(synk): lazy diag propagation through back-to-back conv layers is not
            # implemented; materialize the (diagonal) generator rows explicitly here.
            kzc, hc, wc, cc = z.shape
            fprev = hc * wc * cc
            ext = jnp.diag(half[0, :fprev]).reshape(fprev, hc, wc, cc)
            z = jnp.concatenate([z, ext], axis=0)
            half = None
        z = convz(z, wt_pad, bias, oc, kh, kw, stride, pad)     # ConvZ      (Pallas matmul)
        kz, oh, ow, occ = z.shape
        f = oh * ow * occ
        fp = _round_up(f, 128)
        kp = _round_up(kz, 8)
        zf = z.reshape(kz, f)
        if kp != kz or fp != f:
            zf = jnp.pad(zf, ((0, kp - kz), (0, fp - f)))
        zf, half = reluz(zf, lam_flat)                          # ReLUZConv  (Pallas)
        if li + 1 < n_conv:
            z = zf[:kz, :f].reshape(kz, oh, ow, occ)
        else:
            z = zf                                              # Flatten: already NHWC-flat + padded

    if n_conv == 0:
        kz = z.shape[0]
        fp = _round_up(f0, 128)
        z = jnp.pad(z.reshape(kz, f0), ((0, 0), (0, fp - f0)))

    n_fc = len(pp["fc"])
    for i, (wt, bp) in enumerate(pp["fc"]):
        if half is not None:
            # LinearZ + lazily-applied ReLUZ generator rows (diag(half) @ W^T), fused in one
            # pallas_call that reuses the resident W^T tiles.
            y, lazy = matmul_bias(z, wt, bp, bias_rows=1, half=half)
            # TODO(synk): writing both pieces into one preallocated output would kill this copy.
            z = jnp.concatenate([y, lazy], axis=0)
            half = None
        else:
            z = matmul_bias(z, wt, bp, bias_rows=1)             # LinearZ    (Pallas)
        if i + 1 < n_fc:
            z, half = reluz(z, pp["fc_lams"][i])                # ReLUZLinear (Pallas)

    out = endlayer(z, pp["end_wt"])                             # EndLayerZ  (Pallas)
    if half is not None:
        # Lazy generators reaching the end layer only shrink the lower bound by |half| @ |end_wt|
        # (matvec; no (n_in x S) row materialization).  Dead branch for nets with >= 1 FC layer.
        out = out - (jnp.abs(half) @ jnp.abs(pp["end_wt"]))[0]
        half = None
    return out[:pp["n_out"]]


# ---------------------------------------------------------------------------
# Pure-JAX reference (PyTorch-faithful NCHW layout; appends generator rows for
# every unit -- non-crossing rows are exactly zero, so bounds are identical)
# ---------------------------------------------------------------------------

def _ref_reluz(z, lam):
    s = jnp.sum(jnp.abs(z[1:]), axis=0, keepdims=True)
    l, u = z[0:1] - s, z[0:1] + s
    _l = (l > 0).astype(jnp.float32)
    l0u = ((u > 0) & (l < 0)).astype(jnp.float32)
    d = jnp.maximum(-l * lam, u * (1.0 - lam))
    out = (_l + l0u * lam) * z
    half = l0u * d * 0.5
    out = out.at[0].add(half[0])
    ext = jnp.diag(half.reshape(-1)).reshape((half.size,) + z.shape[1:])
    return jnp.concatenate([out, ext], axis=0)


def ref_forward(params, x, eps):
    xn = (x - MEAN) / SIGMA
    _, c, h, w = xn.shape
    n = c * h * w
    gens = jnp.eye(n, dtype=jnp.float32).reshape(n, c, h, w) * (eps / SIGMA)
    z = jnp.concatenate([xn, gens], axis=0)
    for (wgt, bias, stride, pad), lam in zip(params["conv"], params["relu_conv_lams"]):
        z = jax.lax.conv_general_dilated(z, wgt, (stride, stride),
                                         [(pad, pad), (pad, pad)],
                                         dimension_numbers=("NCHW", "OIHW", "NCHW"))
        z = z.at[0].add(bias[:, None, None])
        z = _ref_reluz(z, lam)
    z = z.reshape(z.shape[0], -1)
    n_fc = len(params["fc"])
    for i, (wgt, bias) in enumerate(params["fc"]):
        z = z @ wgt.T
        z = z.at[0].add(bias)
        if i + 1 < n_fc:
            z = _ref_reluz(z, params["relu_fc_lams"][i])
    y = z @ params["end_w"].T
    return y[0] - jnp.sum(jnp.abs(y[1:]), axis=0)


# ---------------------------------------------------------------------------

if __name__ == "__main__":
    input_size = 8
    conv_layers = [(4, 3, 2, 1)]      # (n_channels, kernel_size, stride, padding)
    fc_layers = [32, 10]
    eps = 0.1
    target = 0

    key = jax.random.PRNGKey(0)
    k_param, k_x = jax.random.split(key)
    params = init_params(k_param, input_size, conv_layers, fc_layers, n_class=10, target=target)
    pp = prepare_pallas_params(params, input_size)
    x = jax.random.uniform(k_x, (1, 1, input_size, input_size), jnp.float32)

    fwd = jax.jit(functools.partial(nnconvz_forward, pp, eps=eps))
    out = jax.block_until_ready(fwd(x))

    ref = jax.block_until_ready(ref_forward(params, x, eps))
    if not np.allclose(np.asarray(out), np.asarray(ref), rtol=1e-2, atol=1e-2):
        raise AssertionError(f"mismatch: pallas={np.asarray(out)} ref={np.asarray(ref)}")

    print("KERNEL_OK")
</pallas_src>

<mosaic_0001>
module attributes {stable_mosaic.version = 11 : i64} {
  func.func @_mm_bias_k1_kernel(%arg0: i32, %arg1: i32, %arg2: memref<384x128xf32, #tpu.memory_space<vmem>>, %arg3: memref<128x4xf32, #tpu.memory_space<vmem>>, %arg4: memref<1x4xf32, #tpu.memory_space<vmem>>, %arg5: memref<384x4xf32, #tpu.memory_space<vmem>>) attributes {dimension_semantics = [#tpu.dimension_semantics<parallel>, #tpu.dimension_semantics<parallel>], iteration_bounds = array<i64: 3, 1>, scalar_prefetch = 0 : i64, scratch_operands = 0 : i64, tpu.core_type = #tpu.core_type<tc>, window_params = [{transform_indices = @transform_0, window_bounds = array<i64: 384, 128>}, {transform_indices = @transform_1, window_bounds = array<i64: 128, 4>}, {transform_indices = @transform_2, window_bounds = array<i64: 1, 4>}, {transform_indices = @transform_3, window_bounds = array<i64: 384, 4>}]} {
    %c0 = arith.constant 0 : index
    %c0_0 = arith.constant 0 : index
    %0 = vector.load %arg2[%c0, %c0_0] : memref<384x128xf32, #tpu.memory_space<vmem>>, vector<384x128xf32>
    %c0_1 = arith.constant 0 : index
    %c0_2 = arith.constant 0 : index
    %1 = vector.load %arg3[%c0_1, %c0_2] : memref<128x4xf32, #tpu.memory_space<vmem>>, vector<128x4xf32>
    %cst = arith.constant dense<0.000000e+00> : vector<384x4xf32>
    %2 = tpu.matmul %0, %1, %cst {dimension_numbers = #tpu.dot_dimension_numbers<[1], [0], [0], [1], [0, 0, 1, 1], [], []>} : vector<384x128xf32>, vector<128x4xf32>, vector<384x4xf32> -> vector<384x4xf32>
    %c384_i32 = arith.constant 384 : i32
    %3 = arith.muli %arg0, %c384_i32 : i32
    %c16_i32 = arith.constant 16 : i32
    %4 = arith.cmpi sge, %3, %c16_i32 : i32
    %5 = arith.extui %4 : i1 to i32
    %c0_i32 = arith.constant 0 : i32
    %6 = arith.cmpi ne, %5, %c0_i32 : i32
    scf.if %6 {
      %c0_5 = arith.constant 0 : index
      %c0_6 = arith.constant 0 : index
      %10 = vector.load %arg5[%c0_5, %c0_6] : memref<384x4xf32, #tpu.memory_space<vmem>>, vector<384x4xf32>
      tpu.vector_store %arg5[%c0_5, %c0_6], %2 {strides = array<i32>} : memref<384x4xf32, #tpu.memory_space<vmem>>, vector<384x4xf32>,
    } else {
    }
    %c16_i32_3 = arith.constant 16 : i32
    %7 = arith.cmpi slt, %3, %c16_i32_3 : i32
    %8 = arith.extui %7 : i1 to i32
    %c0_i32_4 = arith.constant 0 : i32
    %9 = arith.cmpi ne, %8, %c0_i32_4 : i32
    scf.if %9 {
      %10 = tpu.iota {dimensions = array<i32: 0>} : vector<384x1xi32>
      %11 = vector.broadcast %3 : i32 to vector<384x1xi32>
      %12 = arith.addi %11, %10 : vector<384x1xi32>
      %c16_i32_5 = arith.constant 16 : i32
      %13 = vector.broadcast %c16_i32_5 : i32 to vector<384x1xi32>
      %14 = arith.cmpi slt, %12, %13 : vector<384x1xi32>
      %c0_6 = arith.constant 0 : index
      %c0_7 = arith.constant 0 : index
      %15 = vector.load %arg4[%c0_6, %c0_7] : memref<1x4xf32, #tpu.memory_space<vmem>>, vector<1x4xf32>
      %cst_8 = arith.constant 0.000000e+00 : f32
      %16 = vector.shape_cast %14 : vector<384x1xi1> to vector<384x1xi1>
      %17 = vector.broadcast %16 : vector<384x1xi1> to vector<384x4xi1>
      %18 = vector.shape_cast %15 : vector<1x4xf32> to vector<1x4xf32>
      %19 = vector.broadcast %18 : vector<1x4xf32> to vector<384x4xf32>
      %20 = vector.broadcast %cst_8 : f32 to vector<384x4xf32>
      %21 = arith.select %17, %19, %20 : vector<384x4xi1>, vector<384x4xf32>
      %22 = arith.addf %2, %21 : vector<384x4xf32>
      %c0_9 = arith.constant 0 : index
      %c0_10 = arith.constant 0 : index
      %23 = vector.load %arg5[%c0_9, %c0_10] : memref<384x4xf32, #tpu.memory_space<vmem>>, vector<384x4xf32>
      tpu.vector_store %arg5[%c0_9, %c0_10], %22 {strides = array<i32>} : memref<384x4xf32, #tpu.memory_space<vmem>>, vector<384x4xf32>,
    } else {
    }
    return
  }
  func.func @transform_0(%arg0: i32, %arg1: i32) -> (i32, i32) {
    %c0_i32 = arith.constant 0 : i32
    %c0_i32_0 = arith.constant 0 : i32
    return %arg0, %c0_i32 : i32, i32
  }
  func.func @transform_1(%arg0: i32, %arg1: i32) -> (i32, i32) {
    %c0_i32 = arith.constant 0 : i32
    %c0_i32_0 = arith.constant 0 : i32
    return %c0_i32, %arg1 : i32, i32
  }
  func.func @transform_2(%arg0: i32, %arg1: i32) -> (i32, i32) {
    %c0_i32 = arith.constant 0 : i32
    %c0_i32_0 = arith.constant 0 : i32
    return %c0_i32, %arg1 : i32, i32
  }
  func.func @transform_3(%arg0: i32, %arg1: i32) -> (i32, i32) {
    %c0_i32 = arith.constant 0 : i32
    return %arg0, %arg1 : i32, i32
  }
}

module attributes {stable_mosaic.version = 11 : i64} {
  func.func @_reluz_kernel(%arg0: i32, %arg1: memref<72x128xf32, #tpu.memory_space<vmem>>, %arg2: memref<1x128xf32, #tpu.memory_space<vmem>>, %arg3: memref<72x128xf32, #tpu.memory_space<vmem>>, %arg4: memref<1x128xf32, #tpu.memory_space<vmem>>) attributes {dimension_semantics = [#tpu.dimension_semantics<parallel>], iteration_bounds = array<i64: 1>, scalar_prefetch = 0 : i64, scratch_operands = 0 : i64, tpu.core_type = #tpu.core_type<tc>, window_params = [{transform_indices = @transform_0, window_bounds = array<i64: 72, 128>}, {transform_indices = @transform_1, window_bounds = array<i64: 1, 128>}, {transform_indices = @transform_2, window_bounds = array<i64: 72, 128>}, {transform_indices = @transform_3, window_bounds = array<i64: 1, 128>}]} {
    %c0 = arith.constant 0 : index
    %c0_0 = arith.constant 0 : index
    %0 = vector.load %arg1[%c0, %c0_0] : memref<72x128xf32, #tpu.memory_space<vmem>>, vector<72x128xf32>
    %c0_1 = arith.constant 0 : index
    %c0_2 = arith.constant 0 : index
    %1 = vector.load %arg2[%c0_1, %c0_2] : memref<1x128xf32, #tpu.memory_space<vmem>>, vector<1x128xf32>
    %2 = vector.extract_strided_slice %0 {offsets = [0, 0], sizes = [1, 128], strides = [1, 1]} : vector<72x128xf32> to vector<1x128xf32>
    %3 = math.absf %0 : vector<72x128xf32>
    %cst = arith.constant dense<0.000000e+00> : vector<128xf32>
    %4 = vector.multi_reduction <add>, %3, %cst [0] : vector<72x128xf32> to vector<128xf32>
    %5 = vector.shape_cast %4 : vector<128xf32> to vector<1x128xf32>
    %6 = math.absf %2 : vector<1x128xf32>
    %7 = arith.subf %5, %6 : vector<1x128xf32>
    %8 = arith.subf %2, %7 : vector<1x128xf32>
    %9 = arith.addf %2, %7 : vector<1x128xf32>
    %cst_3 = arith.constant 0.000000e+00 : f32
    %10 = vector.broadcast %cst_3 : f32 to vector<1x128xf32>
    %11 = arith.cmpf ogt, %8, %10 : vector<1x128xf32>
    %12 = arith.extui %11 : vector<1x128xi1> to vector<1x128xi32>
    %13 = arith.sitofp %12 : vector<1x128xi32> to vector<1x128xf32>
    %cst_4 = arith.constant 0.000000e+00 : f32
    %14 = vector.broadcast %cst_4 : f32 to vector<1x128xf32>
    %15 = arith.cmpf ogt, %9, %14 : vector<1x128xf32>
    %cst_5 = arith.constant 0.000000e+00 : f32
    %16 = vector.broadcast %cst_5 : f32 to vector<1x128xf32>
    %17 = arith.cmpf olt, %8, %16 : vector<1x128xf32>
    %18 = arith.andi %15, %17 : vector<1x128xi1>
    %19 = arith.extui %18 : vector<1x128xi1> to vector<1x128xi32>
    %20 = arith.sitofp %19 : vector<1x128xi32> to vector<1x128xf32>
    %cst_6 = arith.constant 0.000000e+00 : f32
    %21 = vector.broadcast %cst_6 : f32 to vector<1x128xf32>
    %22 = arith.subf %21, %8 : vector<1x128xf32>
    %23 = arith.mulf %22, %1 : vector<1x128xf32>
    %cst_7 = arith.constant 1.000000e+00 : f32
    %24 = vector.broadcast %cst_7 : f32 to vector<1x128xf32>
    %25 = arith.subf %24, %1 : vector<1x128xf32>
    %26 = arith.mulf %9, %25 : vector<1x128xf32>
    %27 = arith.maximumf %23, %26 : vector<1x128xf32>
    %cst_8 = arith.constant 5.000000e-01 : f32
    %28 = vector.broadcast %cst_8 : f32 to vector<1x128xf32>
    %29 = arith.mulf %28, %27 : vector<1x128xf32>
    %30 = arith.mulf %20, %29 : vector<1x128xf32>
    %31 = arith.mulf %20, %1 : vector<1x128xf32>
    %32 = arith.addf %13, %31 : vector<1x128xf32>
    %33 = vector.broadcast %32 : vector<1x128xf32> to vector<72x128xf32>
    %34 = arith.mulf %33, %0 : vector<72x128xf32>
    %c0_9 = arith.constant 0 : index
    %c0_10 = arith.constant 0 : index
    %35 = vector.load %arg3[%c0_9, %c0_10] : memref<72x128xf32, #tpu.memory_space<vmem>>, vector<72x128xf32>
    tpu.vector_store %arg3[%c0_9, %c0_10], %34 {strides = array<i32>} : memref<72x128xf32, #tpu.memory_space<vmem>>, vector<72x128xf32>,
    %36 = vector.extract_strided_slice %34 {offsets = [0, 0], sizes = [1, 128], strides = [1, 1]} : vector<72x128xf32> to vector<1x128xf32>
    %37 = arith.addf %36, %30 : vector<1x128xf32>
    %c0_11 = arith.constant 0 : index
    %c0_12 = arith.constant 0 : index
    %38 = vector.load %arg3[%c0_11, %c0_12] : memref<72x128xf32, #tpu.memory_space<vmem>>, vector<1x128xf32>
    tpu.vector_store %arg3[%c0_11, %c0_12], %37 {strides = array<i32>} : memref<72x128xf32, #tpu.memory_space<vmem>>, vector<1x128xf32>,
    %c0_13 = arith.constant 0 : index
    %c0_14 = arith.constant 0 : index
    %39 = vector.load %arg4[%c0_13, %c0_14] : memref<1x128xf32, #tpu.memory_space<vmem>>, vector<1x128xf32>
    tpu.vector_store %arg4[%c0_13, %c0_14], %30 {strides = array<i32>} : memref<1x128xf32, #tpu.memory_space<vmem>>, vector<1x128xf32>,
    return
  }
  func.func @transform_0(%arg0: i32) -> (i32, i32) {
    %c0_i32 = arith.constant 0 : i32
    %c0_i32_0 = arith.constant 0 : i32
    return %c0_i32, %arg0 : i32, i32
  }
  func.func @transform_1(%arg0: i32) -> (i32, i32) {
    %c0_i32 = arith.constant 0 : i32
    %c0_i32_0 = arith.constant 0 : i32
    return %c0_i32, %arg0 : i32, i32
  }
  func.func @transform_2(%arg0: i32) -> (i32, i32) {
    %c0_i32 = arith.constant 0 : i32
    %c0_i32_0 = arith.constant 0 : i32
    return %c0_i32, %arg0 : i32, i32
  }
  func.func @transform_3(%arg0: i32) -> (i32, i32) {
    %c0_i32 = arith.constant 0 : i32
    %c0_i32_0 = arith.constant 0 : i32
    return %c0_i32, %arg0 : i32, i32
  }
}

module attributes {stable_mosaic.version = 11 : i64} {
  func.func @_mm_bias_lazy_k1_kernel(%arg0: i32, %arg1: i32, %arg2: memref<72x128xf32, #tpu.memory_space<vmem>>, %arg3: memref<128x128xf32, #tpu.memory_space<vmem>>, %arg4: memref<1x128xf32, #tpu.memory_space<vmem>>, %arg5: memref<128x1xf32, #tpu.memory_space<vmem>>, %arg6: memref<72x128xf32, #tpu.memory_space<vmem>>, %arg7: memref<128x128xf32, #tpu.memory_space<vmem>>) attributes {dimension_semantics = [#tpu.dimension_semantics<arbitrary>, #tpu.dimension_semantics<parallel>], iteration_bounds = array<i64: 1, 1>, scalar_prefetch = 0 : i64, scratch_operands = 0 : i64, tpu.core_type = #tpu.core_type<tc>, window_params = [{transform_indices = @transform_0, window_bounds = array<i64: 72, 128>}, {transform_indices = @transform_1, window_bounds = array<i64: 128, 128>}, {transform_indices = @transform_2, window_bounds = array<i64: 1, 128>}, {pipeline_mode = #tpu.pipeline_mode<synchronous>, transform_indices = @transform_3, window_bounds = array<i64: 128, 1>}, {transform_indices = @transform_4, window_bounds = array<i64: 72, 128>}, {transform_indices = @transform_5, window_bounds = array<i64: 128, 128>}]} {
    %c0 = arith.constant 0 : index
    %c0_0 = arith.constant 0 : index
    %0 = vector.load %arg3[%c0, %c0_0] : memref<128x128xf32, #tpu.memory_space<vmem>>, vector<128x128xf32>
    %c0_1 = arith.constant 0 : index
    %c0_2 = arith.constant 0 : index
    %1 = vector.load %arg2[%c0_1, %c0_2] : memref<72x128xf32, #tpu.memory_space<vmem>>, vector<72x128xf32>
    %cst = arith.constant dense<0.000000e+00> : vector<72x128xf32>
    %2 = tpu.matmul %1, %0, %cst {dimension_numbers = #tpu.dot_dimension_numbers<[1], [0], [0], [1], [0, 0, 1, 1], [], []>} : vector<72x128xf32>, vector<128x128xf32>, vector<72x128xf32> -> vector<72x128xf32>
    %c72_i32 = arith.constant 72 : i32
    %3 = arith.muli %arg0, %c72_i32 : i32
    %c1_i32 = arith.constant 1 : i32
    %4 = arith.cmpi sge, %3, %c1_i32 : i32
    %5 = arith.extui %4 : i1 to i32
    %c0_i32 = arith.constant 0 : i32
    %6 = arith.cmpi ne, %5, %c0_i32 : i32
    scf.if %6 {
      %c0_9 = arith.constant 0 : index
      %c0_10 = arith.constant 0 : index
      %14 = vector.load %arg6[%c0_9, %c0_10] : memref<72x128xf32, #tpu.memory_space<vmem>>, vector<72x128xf32>
      tpu.vector_store %arg6[%c0_9, %c0_10], %2 {strides = array<i32>} : memref<72x128xf32, #tpu.memory_space<vmem>>, vector<72x128xf32>,
    } else {
    }
    %c1_i32_3 = arith.constant 1 : i32
    %7 = arith.cmpi slt, %3, %c1_i32_3 : i32
    %8 = arith.extui %7 : i1 to i32
    %c0_i32_4 = arith.constant 0 : i32
    %9 = arith.cmpi ne, %8, %c0_i32_4 : i32
    scf.if %9 {
      %14 = tpu.iota {dimensions = array<i32: 0>} : vector<72x1xi32>
      %15 = vector.broadcast %3 : i32 to vector<72x1xi32>
      %16 = arith.addi %15, %14 : vector<72x1xi32>
      %c1_i32_9 = arith.constant 1 : i32
      %17 = vector.broadcast %c1_i32_9 : i32 to vector<72x1xi32>
      %18 = arith.cmpi slt, %16, %17 : vector<72x1xi32>
      %c0_10 = arith.constant 0 : index
      %c0_11 = arith.constant 0 : index
      %19 = vector.load %arg4[%c0_10, %c0_11] : memref<1x128xf32, #tpu.memory_space<vmem>>, vector<1x128xf32>
      %cst_12 = arith.constant 0.000000e+00 : f32
      %20 = vector.shape_cast %18 : vector<72x1xi1> to vector<72x1xi1>
      %21 = vector.broadcast %20 : vector<72x1xi1> to vector<72x128xi1>
      %22 = vector.shape_cast %19 : vector<1x128xf32> to vector<1x128xf32>
      %23 = vector.broadcast %22 : vector<1x128xf32> to vector<72x128xf32>
      %24 = vector.broadcast %cst_12 : f32 to vector<72x128xf32>
      %25 = arith.select %21, %23, %24 : vector<72x128xi1>, vector<72x128xf32>
      %26 = arith.addf %2, %25 : vector<72x128xf32>
      %c0_13 = arith.constant 0 : index
      %c0_14 = arith.constant 0 : index
      %27 = vector.load %arg6[%c0_13, %c0_14] : memref<72x128xf32, #tpu.memory_space<vmem>>, vector<72x128xf32>
      tpu.vector_store %arg6[%c0_13, %c0_14], %26 {strides = array<i32>} : memref<72x128xf32, #tpu.memory_space<vmem>>, vector<72x128xf32>,
    } else {
    }
    %c0_5 = arith.constant 0 : index
    %c0_6 = arith.constant 0 : index
    %10 = vector.load %arg5[%c0_5, %c0_6] : memref<128x1xf32, #tpu.memory_space<vmem>>, vector<128x1xf32>
    %11 = vector.broadcast %10 : vector<128x1xf32> to vector<128x128xf32>
    %12 = arith.mulf %11, %0 : vector<128x128xf32>
    %c0_7 = arith.constant 0 : index
    %c0_8 = arith.constant 0 : index
    %13 = vector.load %arg7[%c0_7, %c0_8] : memref<128x128xf32, #tpu.memory_space<vmem>>, vector<128x128xf32>
    tpu.vector_store %arg7[%c0_7, %c0_8], %12 {strides = array<i32>} : memref<128x128xf32, #tpu.memory_space<vmem>>, vector<128x128xf32>,
    return
  }
  func.func @transform_0(%arg0: i32, %arg1: i32) -> (i32, i32) {
    %c0_i32 = arith.constant 0 : i32
    %c0_i32_0 = arith.constant 0 : i32
    return %arg0, %c0_i32 : i32, i32
  }
  func.func @transform_1(%arg0: i32, %arg1: i32) -> (i32, i32) {
    %c0_i32 = arith.constant 0 : i32
    %c0_i32_0 = arith.constant 0 : i32
    return %c0_i32, %arg1 : i32, i32
  }
  func.func @transform_2(%arg0: i32, %arg1: i32) -> (i32, i32) {
    %c0_i32 = arith.constant 0 : i32
    %c0_i32_0 = arith.constant 0 : i32
    return %c0_i32, %arg1 : i32, i32
  }
  func.func @transform_3(%arg0: i32, %arg1: i32) -> (i32, i32) {
    %c0_i32 = arith.constant 0 : i32
    %c0_i32_0 = arith.constant 0 : i32
    %c0_i32_1 = arith.constant 0 : i32
    return %c0_i32, %c0_i32_0 : i32, i32
  }
  func.func @transform_4(%arg0: i32, %arg1: i32) -> (i32, i32) {
    %c0_i32 = arith.constant 0 : i32
    return %arg0, %arg1 : i32, i32
  }
  func.func @transform_5(%arg0: i32, %arg1: i32) -> (i32, i32) {
    %c0_i32 = arith.constant 0 : i32
    %c0_i32_0 = arith.constant 0 : i32
    return %c0_i32, %arg1 : i32, i32
  }
}

module attributes {stable_mosaic.version = 11 : i64} {
  func.func @_reluz_kernel(%arg0: i32, %arg1: memref<200x128xf32, #tpu.memory_space<vmem>>, %arg2: memref<1x128xf32, #tpu.memory_space<vmem>>, %arg3: memref<200x128xf32, #tpu.memory_space<vmem>>, %arg4: memref<1x128xf32, #tpu.memory_space<vmem>>) attributes {dimension_semantics = [#tpu.dimension_semantics<parallel>], iteration_bounds = array<i64: 1>, scalar_prefetch = 0 : i64, scratch_operands = 0 : i64, tpu.core_type = #tpu.core_type<tc>, window_params = [{transform_indices = @transform_0, window_bounds = array<i64: 200, 128>}, {transform_indices = @transform_1, window_bounds = array<i64: 1, 128>}, {transform_indices = @transform_2, window_bounds = array<i64: 200, 128>}, {transform_indices = @transform_3, window_bounds = array<i64: 1, 128>}]} {
    %c0 = arith.constant 0 : index
    %c0_0 = arith.constant 0 : index
    %0 = vector.load %arg1[%c0, %c0_0] : memref<200x128xf32, #tpu.memory_space<vmem>>, vector<200x128xf32>
    %c0_1 = arith.constant 0 : index
    %c0_2 = arith.constant 0 : index
    %1 = vector.load %arg2[%c0_1, %c0_2] : memref<1x128xf32, #tpu.memory_space<vmem>>, vector<1x128xf32>
    %2 = vector.extract_strided_slice %0 {offsets = [0, 0], sizes = [1, 128], strides = [1, 1]} : vector<200x128xf32> to vector<1x128xf32>
    %3 = math.absf %0 : vector<200x128xf32>
    %cst = arith.constant dense<0.000000e+00> : vector<128xf32>
    %4 = vector.multi_reduction <add>, %3, %cst [0] : vector<200x128xf32> to vector<128xf32>
    %5 = vector.shape_cast %4 : vector<128xf32> to vector<1x128xf32>
    %6 = math.absf %2 : vector<1x128xf32>
    %7 = arith.subf %5, %6 : vector<1x128xf32>
    %8 = arith.subf %2, %7 : vector<1x128xf32>
    %9 = arith.addf %2, %7 : vector<1x128xf32>
    %cst_3 = arith.constant 0.000000e+00 : f32
    %10 = vector.broadcast %cst_3 : f32 to vector<1x128xf32>
    %11 = arith.cmpf ogt, %8, %10 : vector<1x128xf32>
    %12 = arith.extui %11 : vector<1x128xi1> to vector<1x128xi32>
    %13 = arith.sitofp %12 : vector<1x128xi32> to vector<1x128xf32>
    %cst_4 = arith.constant 0.000000e+00 : f32
    %14 = vector.broadcast %cst_4 : f32 to vector<1x128xf32>
    %15 = arith.cmpf ogt, %9, %14 : vector<1x128xf32>
    %cst_5 = arith.constant 0.000000e+00 : f32
    %16 = vector.broadcast %cst_5 : f32 to vector<1x128xf32>
    %17 = arith.cmpf olt, %8, %16 : vector<1x128xf32>
    %18 = arith.andi %15, %17 : vector<1x128xi1>
    %19 = arith.extui %18 : vector<1x128xi1> to vector<1x128xi32>
    %20 = arith.sitofp %19 : vector<1x128xi32> to vector<1x128xf32>
    %cst_6 = arith.constant 0.000000e+00 : f32
    %21 = vector.broadcast %cst_6 : f32 to vector<1x128xf32>
    %22 = arith.subf %21, %8 : vector<1x128xf32>
    %23 = arith.mulf %22, %1 : vector<1x128xf32>
    %cst_7 = arith.constant 1.000000e+00 : f32
    %24 = vector.broadcast %cst_7 : f32 to vector<1x128xf32>
    %25 = arith.subf %24, %1 : vector<1x128xf32>
    %26 = arith.mulf %9, %25 : vector<1x128xf32>
    %27 = arith.maximumf %23, %26 : vector<1x128xf32>
    %cst_8 = arith.constant 5.000000e-01 : f32
    %28 = vector.broadcast %cst_8 : f32 to vector<1x128xf32>
    %29 = arith.mulf %28, %27 : vector<1x128xf32>
    %30 = arith.mulf %20, %29 : vector<1x128xf32>
    %31 = arith.mulf %20, %1 : vector<1x128xf32>
    %32 = arith.addf %13, %31 : vector<1x128xf32>
    %33 = vector.broadcast %32 : vector<1x128xf32> to vector<200x128xf32>
    %34 = arith.mulf %33, %0 : vector<200x128xf32>
    %c0_9 = arith.constant 0 : index
    %c0_10 = arith.constant 0 : index
    %35 = vector.load %arg3[%c0_9, %c0_10] : memref<200x128xf32, #tpu.memory_space<vmem>>, vector<200x128xf32>
    tpu.vector_store %arg3[%c0_9, %c0_10], %34 {strides = array<i32>} : memref<200x128xf32, #tpu.memory_space<vmem>>, vector<200x128xf32>,
    %36 = vector.extract_strided_slice %34 {offsets = [0, 0], sizes = [1, 128], strides = [1, 1]} : vector<200x128xf32> to vector<1x128xf32>
    %37 = arith.addf %36, %30 : vector<1x128xf32>
    %c0_11 = arith.constant 0 : index
    %c0_12 = arith.constant 0 : index
    %38 = vector.load %arg3[%c0_11, %c0_12] : memref<200x128xf32, #tpu.memory_space<vmem>>, vector<1x128xf32>
    tpu.vector_store %arg3[%c0_11, %c0_12], %37 {strides = array<i32>} : memref<200x128xf32, #tpu.memory_space<vmem>>, vector<1x128xf32>,
    %c0_13 = arith.constant 0 : index
    %c0_14 = arith.constant 0 : index
    %39 = vector.load %arg4[%c0_13, %c0_14] : memref<1x128xf32, #tpu.memory_space<vmem>>, vector<1x128xf32>
    tpu.vector_store %arg4[%c0_13, %c0_14], %30 {strides = array<i32>} : memref<1x128xf32, #tpu.memory_space<vmem>>, vector<1x128xf32>,
    return
  }
  func.func @transform_0(%arg0: i32) -> (i32, i32) {
    %c0_i32 = arith.constant 0 : i32
    %c0_i32_0 = arith.constant 0 : i32
    return %c0_i32, %arg0 : i32, i32
  }
  func.func @transform_1(%arg0: i32) -> (i32, i32) {
    %c0_i32 = arith.constant 0 : i32
    %c0_i32_0 = arith.constant 0 : i32
    return %c0_i32, %arg0 : i32, i32
  }
  func.func @transform_2(%arg0: i32) -> (i32, i32) {
    %c0_i32 = arith.constant 0 : i32
    %c0_i32_0 = arith.constant 0 : i32
    return %c0_i32, %arg0 : i32, i32
  }
  func.func @transform_3(%arg0: i32) -> (i32, i32) {
    %c0_i32 = arith.constant 0 : i32
    %c0_i32_0 = arith.constant 0 : i32
    return %c0_i32, %arg0 : i32, i32
  }
}

module attributes {stable_mosaic.version = 11 : i64} {
  func.func @_mm_bias_lazy_k1_kernel(%arg0: i32, %arg1: i32, %arg2: memref<200x128xf32, #tpu.memory_space<vmem>>, %arg3: memref<128x128xf32, #tpu.memory_space<vmem>>, %arg4: memref<1x128xf32, #tpu.memory_space<vmem>>, %arg5: memref<128x1xf32, #tpu.memory_space<vmem>>, %arg6: memref<200x128xf32, #tpu.memory_space<vmem>>, %arg7: memref<128x128xf32, #tpu.memory_space<vmem>>) attributes {dimension_semantics = [#tpu.dimension_semantics<arbitrary>, #tpu.dimension_semantics<parallel>], iteration_bounds = array<i64: 1, 1>, scalar_prefetch = 0 : i64, scratch_operands = 0 : i64, tpu.core_type = #tpu.core_type<tc>, window_params = [{transform_indices = @transform_0, window_bounds = array<i64: 200, 128>}, {transform_indices = @transform_1, window_bounds = array<i64: 128, 128>}, {transform_indices = @transform_2, window_bounds = array<i64: 1, 128>}, {pipeline_mode = #tpu.pipeline_mode<synchronous>, transform_indices = @transform_3, window_bounds = array<i64: 128, 1>}, {transform_indices = @transform_4, window_bounds = array<i64: 200, 128>}, {transform_indices = @transform_5, window_bounds = array<i64: 128, 128>}]} {
    %c0 = arith.constant 0 : index
    %c0_0 = arith.constant 0 : index
    %0 = vector.load %arg3[%c0, %c0_0] : memref<128x128xf32, #tpu.memory_space<vmem>>, vector<128x128xf32>
    %c0_1 = arith.constant 0 : index
    %c0_2 = arith.constant 0 : index
    %1 = vector.load %arg2[%c0_1, %c0_2] : memref<200x128xf32, #tpu.memory_space<vmem>>, vector<200x128xf32>
    %cst = arith.constant dense<0.000000e+00> : vector<200x128xf32>
    %2 = tpu.matmul %1, %0, %cst {dimension_numbers = #tpu.dot_dimension_numbers<[1], [0], [0], [1], [0, 0, 1, 1], [], []>} : vector<200x128xf32>, vector<128x128xf32>, vector<200x128xf32> -> vector<200x128xf32>
    %c200_i32 = arith.constant 200 : i32
    %3 = arith.muli %arg0, %c200_i32 : i32
    %c1_i32 = arith.constant 1 : i32
    %4 = arith.cmpi sge, %3, %c1_i32 : i32
    %5 = arith.extui %4 : i1 to i32
    %c0_i32 = arith.constant 0 : i32
    %6 = arith.cmpi ne, %5, %c0_i32 : i32
    scf.if %6 {
      %c0_9 = arith.constant 0 : index
      %c0_10 = arith.constant 0 : index
      %14 = vector.load %arg6[%c0_9, %c0_10] : memref<200x128xf32, #tpu.memory_space<vmem>>, vector<200x128xf32>
      tpu.vector_store %arg6[%c0_9, %c0_10], %2 {strides = array<i32>} : memref<200x128xf32, #tpu.memory_space<vmem>>, vector<200x128xf32>,
    } else {
    }
    %c1_i32_3 = arith.constant 1 : i32
    %7 = arith.cmpi slt, %3, %c1_i32_3 : i32
    %8 = arith.extui %7 : i1 to i32
    %c0_i32_4 = arith.constant 0 : i32
    %9 = arith.cmpi ne, %8, %c0_i32_4 : i32
    scf.if %9 {
      %14 = tpu.iota {dimensions = array<i32: 0>} : vector<200x1xi32>
      %15 = vector.broadcast %3 : i32 to vector<200x1xi32>
      %16 = arith.addi %15, %14 : vector<200x1xi32>
      %c1_i32_9 = arith.constant 1 : i32
      %17 = vector.broadcast %c1_i32_9 : i32 to vector<200x1xi32>
      %18 = arith.cmpi slt, %16, %17 : vector<200x1xi32>
      %c0_10 = arith.constant 0 : index
      %c0_11 = arith.constant 0 : index
      %19 = vector.load %arg4[%c0_10, %c0_11] : memref<1x128xf32, #tpu.memory_space<vmem>>, vector<1x128xf32>
      %cst_12 = arith.constant 0.000000e+00 : f32
      %20 = vector.shape_cast %18 : vector<200x1xi1> to vector<200x1xi1>
      %21 = vector.broadcast %20 : vector<200x1xi1> to vector<200x128xi1>
      %22 = vector.shape_cast %19 : vector<1x128xf32> to vector<1x128xf32>
      %23 = vector.broadcast %22 : vector<1x128xf32> to vector<200x128xf32>
      %24 = vector.broadcast %cst_12 : f32 to vector<200x128xf32>
      %25 = arith.select %21, %23, %24 : vector<200x128xi1>, vector<200x128xf32>
      %26 = arith.addf %2, %25 : vector<200x128xf32>
      %c0_13 = arith.constant 0 : index
      %c0_14 = arith.constant 0 : index
      %27 = vector.load %arg6[%c0_13, %c0_14] : memref<200x128xf32, #tpu.memory_space<vmem>>, vector<200x128xf32>
      tpu.vector_store %arg6[%c0_13, %c0_14], %26 {strides = array<i32>} : memref<200x128xf32, #tpu.memory_space<vmem>>, vector<200x128xf32>,
    } else {
    }
    %c0_5 = arith.constant 0 : index
    %c0_6 = arith.constant 0 : index
    %10 = vector.load %arg5[%c0_5, %c0_6] : memref<128x1xf32, #tpu.memory_space<vmem>>, vector<128x1xf32>
    %11 = vector.broadcast %10 : vector<128x1xf32> to vector<128x128xf32>
    %12 = arith.mulf %11, %0 : vector<128x128xf32>
    %c0_7 = arith.constant 0 : index
    %c0_8 = arith.constant 0 : index
    %13 = vector.load %arg7[%c0_7, %c0_8] : memref<128x128xf32, #tpu.memory_space<vmem>>, vector<128x128xf32>
    tpu.vector_store %arg7[%c0_7, %c0_8], %12 {strides = array<i32>} : memref<128x128xf32, #tpu.memory_space<vmem>>, vector<128x128xf32>,
    return
  }
  func.func @transform_0(%arg0: i32, %arg1: i32) -> (i32, i32) {
    %c0_i32 = arith.constant 0 : i32
    %c0_i32_0 = arith.constant 0 : i32
    return %arg0, %c0_i32 : i32, i32
  }
  func.func @transform_1(%arg0: i32, %arg1: i32) -> (i32, i32) {
    %c0_i32 = arith.constant 0 : i32
    %c0_i32_0 = arith.constant 0 : i32
    return %c0_i32, %arg1 : i32, i32
  }
  func.func @transform_2(%arg0: i32, %arg1: i32) -> (i32, i32) {
    %c0_i32 = arith.constant 0 : i32
    %c0_i32_0 = arith.constant 0 : i32
    return %c0_i32, %arg1 : i32, i32
  }
  func.func @transform_3(%arg0: i32, %arg1: i32) -> (i32, i32) {
    %c0_i32 = arith.constant 0 : i32
    %c0_i32_0 = arith.constant 0 : i32
    %c0_i32_1 = arith.constant 0 : i32
    return %c0_i32, %c0_i32_0 : i32, i32
  }
  func.func @transform_4(%arg0: i32, %arg1: i32) -> (i32, i32) {
    %c0_i32 = arith.constant 0 : i32
    return %arg0, %arg1 : i32, i32
  }
  func.func @transform_5(%arg0: i32, %arg1: i32) -> (i32, i32) {
    %c0_i32 = arith.constant 0 : i32
    %c0_i32_0 = arith.constant 0 : i32
    return %c0_i32, %arg1 : i32, i32
  }
}

module attributes {stable_mosaic.version = 11 : i64} {
  func.func @_endlayer_kernel(%arg0: i32, %arg1: memref<328x128xf32, #tpu.memory_space<vmem>>, %arg2: memref<128x128xf32, #tpu.memory_space<vmem>>, %arg3: memref<1x128xf32, #tpu.memory_space<vmem>>, %arg4: memref<1x128xf32, #tpu.memory_space<vmem>>) attributes {dimension_semantics = [#tpu.dimension_semantics<arbitrary>], iteration_bounds = array<i64: 1>, scalar_prefetch = 0 : i64, scratch_operands = 1 : i64, tpu.core_type = #tpu.core_type<tc>, window_params = [{transform_indices = @transform_0, window_bounds = array<i64: 328, 128>}, {pipeline_mode = #tpu.pipeline_mode<synchronous>, transform_indices = @transform_1, window_bounds = array<i64: 128, 128>}, {pipeline_mode = #tpu.pipeline_mode<synchronous>, transform_indices = @transform_2, window_bounds = array<i64: 1, 128>}]} {
    %c0_i32 = arith.constant 0 : i32
    %0 = arith.cmpi eq, %arg0, %c0_i32 : i32
    %1 = arith.extui %0 : i1 to i32
    %c0_i32_0 = arith.constant 0 : i32
    %2 = arith.cmpi ne, %1, %c0_i32_0 : i32
    scf.if %2 {
      %cst_15 = arith.constant 0.000000e+00 : f32
      %32 = vector.broadcast %cst_15 : f32 to vector<1x128xf32>
      %c0_16 = arith.constant 0 : index
      %c0_17 = arith.constant 0 : index
      %33 = vector.load %arg4[%c0_16, %c0_17] : memref<1x128xf32, #tpu.memory_space<vmem>>, vector<1x128xf32>
      tpu.vector_store %arg4[%c0_16, %c0_17], %32 {strides = array<i32>} : memref<1x128xf32, #tpu.memory_space<vmem>>, vector<1x128xf32>,
    } else {
    }
    %c0 = arith.constant 0 : index
    %c0_1 = arith.constant 0 : index
    %3 = vector.load %arg1[%c0, %c0_1] : memref<328x128xf32, #tpu.memory_space<vmem>>, vector<328x128xf32>
    %c0_2 = arith.constant 0 : index
    %c0_3 = arith.constant 0 : index
    %4 = vector.load %arg2[%c0_2, %c0_3] : memref<128x128xf32, #tpu.memory_space<vmem>>, vector<128x128xf32>
    %cst = arith.constant dense<0.000000e+00> : vector<328x128xf32>
    %5 = tpu.matmul %3, %4, %cst {dimension_numbers = #tpu.dot_dimension_numbers<[1], [0], [0], [1], [0, 0, 1, 1], [], []>} : vector<328x128xf32>, vector<128x128xf32>, vector<328x128xf32> -> vector<328x128xf32>
    %c328_i32 = arith.constant 328 : i32
    %6 = arith.muli %arg0, %c328_i32 : i32
    %7 = tpu.iota {dimensions = array<i32: 0>} : vector<328x1xi32>
    %8 = vector.broadcast %6 : i32 to vector<328x1xi32>
    %9 = arith.addi %8, %7 : vector<328x1xi32>
    %c0_i32_4 = arith.constant 0 : i32
    %10 = vector.broadcast %c0_i32_4 : i32 to vector<328x1xi32>
    %11 = arith.cmpi eq, %9, %10 : vector<328x1xi32>
    %cst_5 = arith.constant 0.000000e+00 : f32
    %12 = vector.shape_cast %11 : vector<328x1xi1> to vector<328x1xi1>
    %13 = vector.broadcast %12 : vector<328x1xi1> to vector<328x128xi1>
    %14 = vector.broadcast %cst_5 : f32 to vector<328x128xf32>
    %15 = arith.select %13, %5, %14 : vector<328x128xi1>, vector<328x128xf32>
    %cst_6 = arith.constant dense<0.000000e+00> : vector<128xf32>
    %16 = vector.multi_reduction <add>, %15, %cst_6 [0] : vector<328x128xf32> to vector<128xf32>
    %17 = vector.shape_cast %16 : vector<128xf32> to vector<1x128xf32>
    %18 = math.absf %5 : vector<328x128xf32>
    %cst_7 = arith.constant 0.000000e+00 : f32
    %19 = vector.shape_cast %11 : vector<328x1xi1> to vector<328x1xi1>
    %20 = vector.broadcast %19 : vector<328x1xi1> to vector<328x128xi1>
    %21 = vector.broadcast %cst_7 : f32 to vector<328x128xf32>
    %22 = arith.select %20, %21, %18 : vector<328x128xi1>, vector<328x128xf32>
    %cst_8 = arith.constant dense<0.000000e+00> : vector<128xf32>
    %23 = vector.multi_reduction <add>, %22, %cst_8 [0] : vector<328x128xf32> to vector<128xf32>
    %24 = vector.shape_cast %23 : vector<128xf32> to vector<1x128xf32>
    %c0_9 = arith.constant 0 : index
    %c0_10 = arith.constant 0 : index
    %25 = vector.load %arg4[%c0_9, %c0_10] : memref<1x128xf32, #tpu.memory_space<vmem>>, vector<1x128xf32>
    %26 = arith.subf %17, %24 : vector<1x128xf32>
    %27 = arith.addf %25, %26 : vector<1x128xf32>
    %c0_11 = arith.constant 0 : index
    %c0_12 = arith.constant 0 : index
    %28 = vector.load %arg4[%c0_11, %c0_12] : memref<1x128xf32, #tpu.memory_space<vmem>>, vector<1x128xf32>
    tpu.vector_store %arg4[%c0_11, %c0_12], %27 {strides = array<i32>} : memref<1x128xf32, #tpu.memory_space<vmem>>, vector<1x128xf32>,
    %c0_i32_13 = arith.constant 0 : i32
    %29 = arith.cmpi eq, %arg0, %c0_i32_13 : i32
    %30 = arith.extui %29 : i1 to i32
    %c0_i32_14 = arith.constant 0 : i32
    %31 = arith.cmpi ne, %30, %c0_i32_14 : i32
    scf.if %31 {
      %c0_15 = arith.constant 0 : index
      %c0_16 = arith.constant 0 : index
      %32 = vector.load %arg4[%c0_15, %c0_16] : memref<1x128xf32, #tpu.memory_space<vmem>>, vector<1x128xf32>
      %c0_17 = arith.constant 0 : index
      %c0_18 = arith.constant 0 : index
      %33 = vector.load %arg3[%c0_17, %c0_18] : memref<1x128xf32, #tpu.memory_space<vmem>>, vector<1x128xf32>
      tpu.vector_store %arg3[%c0_17, %c0_18], %32 {strides = array<i32>} : memref<1x128xf32, #tpu.memory_space<vmem>>, vector<1x128xf32>,
    } else {
    }
    return
  }
  func.func @transform_0(%arg0: i32) -> (i32, i32) {
    %c0_i32 = arith.constant 0 : i32
    %c0_i32_0 = arith.constant 0 : i32
    return %arg0, %c0_i32 : i32, i32
  }
  func.func @transform_1(%arg0: i32) -> (i32, i32) {
    %c0_i32 = arith.constant 0 : i32
    %c0_i32_0 = arith.constant 0 : i32
    %c0_i32_1 = arith.constant 0 : i32
    return %c0_i32, %c0_i32_0 : i32, i32
  }
  func.func @transform_2(%arg0: i32) -> (i32, i32) {
    %c0_i32 = arith.constant 0 : i32
    %c0_i32_0 = arith.constant 0 : i32
    %c0_i32_1 = arith.constant 0 : i32
    return %c0_i32, %c0_i32_0 : i32, i32
  }
}

</mosaic_0001>

<llo_original>
// kernel: nnconvz_forward.7
$region0: #{nnconvz_forward.7}
  #allocation0 [shape = 'u32[]', space=smem, size = 0x4, offset = 0x4, fixed_abs, tag = 'smem constant byte address 0x4 - core index']
  #allocation1 [shape = 'u32[144,128]{1,0:T(1,128)}', space=vmem, size = 0x12000, scoped, tag = 'internal scratch']
  %s0 = inlined_call_operand.vmem [shape: f32[72,128], index: 0, kind: input, shape index: {}]
  %s1 = inlined_call_operand.vmem [shape: f32[1,128], index: 1, kind: input, shape index: {}]
  %s2 = inlined_call_operand.vmem [shape: f32[72,128], index: 2, kind: output, shape index: {0}]
  %s3 = inlined_call_operand.vmem [shape: f32[1,128], index: 3, kind: output, shape index: {1}]
  %4 = xla_tuple %s2, %s3
  %s5 = sld [smem:[#allocation0]]
  $region26: #{nnconvz_forward.7} parent=0
    _
  %s7 = ssub.s32 1, %s5
  %s8 = scalar_select 0, %s7, %s5
  // Predicated region
  $region2: #{nnconvz_forward.7} parent=0 // pred_check
    _
  $region3: #{nnconvz_forward.7} parent=0 // pred_check_branch
    %10 = sbr.rel (0) target = $region5
  $region4: #{nnconvz_forward.7} parent=0 // pred_region
    _
  $region5: #{nnconvz_forward.7} parent=0 // pred_fallthru
    _
  // Predicated region
  $region6: #{nnconvz_forward.7} parent=0 // pred_check
    _
  $region7: #{nnconvz_forward.7} parent=0 // pred_check_branch
    %12 = sbr.rel (0) target = $region9
  $region8: #{nnconvz_forward.7} parent=0 // pred_region
    _
  $region9: #{nnconvz_forward.7} parent=0 // pred_fallthru
    _
  %v13 = vld [vmem:[%s0] sm:$0xff]
  %v14 = vld [vmem:[%s0 + $0x8] sm:$0xff]
  %v15 = vld [vmem:[%s0 + $0x10] sm:$0xff]
  %v16 = vld [vmem:[%s0 + $0x18] sm:$0xff]
  %v17 = vld [vmem:[%s0 + $0x20] sm:$0xff]
  %v18 = vld [vmem:[%s0 + $0x28] sm:$0xff]
  %v19 = vld [vmem:[%s0 + $0x30] sm:$0xff]
  %v20 = vld [vmem:[%s0 + $0x38] sm:$0xff]
  %v21 = vld [vmem:[%s0 + $0x40] sm:$0xff]
  %v22 = vld [vmem:[%s1] sm:$0x1]
  %v23 = vand.u32 2147483647, %v13
  %v24 = vand.u32 2147483647, %v14
  %v25 = vand.u32 2147483647, %v15
  %v26 = vand.u32 2147483647, %v16
  %v27 = vand.u32 2147483647, %v17
  %v28 = vand.u32 2147483647, %v18
  %v29 = vand.u32 2147483647, %v19
  %v30 = vand.u32 2147483647, %v20
  %v31 = vand.u32 2147483647, %v21
  %v32 = vadd.f32 %v23, %v24
  %v33 = vadd.f32 %v32, %v25
  %v34 = vadd.f32 %v33, %v26
  %v35 = vadd.f32 %v34, %v27
  %v36 = vadd.f32 %v35, %v28
  %v37 = vadd.f32 %v36, %v29
  %v38 = vadd.f32 %v37, %v30
  %v39 = vadd.f32 %v38, %v31
  %v40 = vrot.slane %v39, 4
  %v41 = vadd.f32 %v39, %v40
  %v42 = vrot.slane %v41, 2
  %v43 = vadd.f32 %v41, %v42
  %v44 = vrot.slane %v43, 1
  %v45 = vadd.f32 %v43, %v44
  %v46 = vsub.f32 %v45, %v23
  %v47 = vsub.f32 %v13, %v46
  %v48 = vadd.f32 %v13, %v46
  %vm49 = vcmp.gt.f32.partialorder %v47, 0.0
  %v50 = vsel %vm49, 1, 0
  %v51 = vcvt.s32.f32 %v50
  %vm52 = vcmp.gt.f32.partialorder %v48, 0.0
  %vm53 = vcmp.lt.f32.partialorder %v47, 0.0
  %vm54 = vmand %vm52, %vm53
  %v55 = vsel %vm54, 1, 0
  %v56 = vcvt.s32.f32 %v55
  %v57 = vsub.f32 0.0, %v47
  %v58 = vmul.f32 %v57, %v22
  %v59 = vsub.f32 1.0, %v22
  %v60 = vmul.f32 %v48, %v59
  %v61 = vmax.f32 %v58, %v60
  %v62 = vmul.f32 %v61, 0.5
  %v63 = vmul.f32 %v56, %v62
  %v64 = vmul.f32 %v56, %v22
  %v65 = vadd.f32 %v51, %v64
  %v66 = vlaneseq
  %v67 = vshrl.u32 %v66, 7
  %v68 = vsub.s32 0, %v67
  %v69 = vrot.slane %v65, %v68
  %v70 = vmul.f32 %v69, %v13
  %v71 = vmul.f32 %v69, %v14
  %v72 = vmul.f32 %v69, %v15
  %v73 = vmul.f32 %v69, %v16
  %v74 = vmul.f32 %v69, %v17
  %v75 = vmul.f32 %v69, %v18
  %v76 = vmul.f32 %v69, %v19
  %v77 = vmul.f32 %v69, %v20
  %v78 = vmul.f32 %v69, %v21
  %79 = vst [vmem:[%s2] sm:$0xff] %v70
  %80 = vst [vmem:[%s2 + $0x8] sm:$0xff] %v71
  %81 = vst [vmem:[%s2 + $0x10] sm:$0xff] %v72
  %82 = vst [vmem:[%s2 + $0x18] sm:$0xff] %v73
  %83 = vst [vmem:[%s2 + $0x20] sm:$0xff] %v74
  %84 = vst [vmem:[%s2 + $0x28] sm:$0xff] %v75
  %85 = vst [vmem:[%s2 + $0x30] sm:$0xff] %v76
  %86 = vst [vmem:[%s2 + $0x38] sm:$0xff] %v77
  %87 = vst [vmem:[%s2 + $0x40] sm:$0xff] %v78
  %v88 = vadd.f32 %v70, %v63
  %89 = vst [vmem:[%s2] sm:$0x1] %v88
  %90 = vst [vmem:[%s3] sm:$0x1] %v63
  // Predicated region
  $region10: #{nnconvz_forward.7} parent=0 // pred_check
    _
  $region11: #{nnconvz_forward.7} parent=0 // pred_check_branch
    %92 = sbr.rel (0) target = $region13
  $region12: #{nnconvz_forward.7} parent=0 // pred_region
    _
  $region13: #{nnconvz_forward.7} parent=0 // pred_fallthru
    _
  // Predicated region
  $region14: #{nnconvz_forward.7} parent=0 // pred_check
    _
  $region15: #{nnconvz_forward.7} parent=0 // pred_check_branch
    %94 = sbr.rel (0) target = $region17
  $region16: #{nnconvz_forward.7} parent=0 // pred_region
    _
  $region17: #{nnconvz_forward.7} parent=0 // pred_fallthru
    _
  // Predicated region
  $region18: #{nnconvz_forward.7} parent=0 // pred_check
    _
  $region19: #{nnconvz_forward.7} parent=0 // pred_check_branch
    %96 = sbr.rel (0) target = $region21
  $region20: #{nnconvz_forward.7} parent=0 // pred_region
    _
  $region21: #{nnconvz_forward.7} parent=0 // pred_fallthru
    _
  // Predicated region
  $region22: #{nnconvz_forward.7} parent=0 // pred_check
    _
  $region23: #{nnconvz_forward.7} parent=0 // pred_check_branch
    %98 = sbr.rel (0) target = $region25
  $region24: #{nnconvz_forward.7} parent=0 // pred_region
    _
  $region25: #{nnconvz_forward.7} parent=0 // pred_fallthru
    _

// kernel: nnconvz_forward.6
$region0: #{nnconvz_forward.6}
  #allocation0 [shape = 'u32[]', space=smem, size = 0x4, offset = 0x4, fixed_abs, tag = 'smem constant byte address 0x4 - core index']
  #allocation1 [shape = 'u32[144,128]{1,0:T(1,128)}', space=vmem, size = 0x12000, scoped, tag = 'internal scratch']
  %s0 = inlined_call_operand.vmem [shape: f32[1152,128], index: 0, kind: input, shape index: {}]
  %s1 = inlined_call_operand.vmem [shape: f32[128,4], index: 1, kind: input, shape index: {}]
  %s2 = inlined_call_operand.vmem [shape: f32[1,4], index: 2, kind: input, shape index: {}]
  %s3 = inlined_call_operand.vmem [shape: f32[1152,4], index: 3, kind: output, shape index: {}]
  %s4 = sld [smem:[#allocation0]]
  $region53: #{nnconvz_forward.6} parent=0
    _
  %s6 = ssub.s32 1, %s4
  %s7 = scalar_select 0, %s6, %s4
  loop: start=0, step=1, limit=5
  $region2: #{nnconvz_forward.6} parent=0 // loop_pre_header
    _
  $region3: #{nnconvz_forward.6} parent=0 // loop_header
    %s9 = sphi 0, %s13
    %p10 = scmp.ge.s32.totalorder %s9, 5
    %s16 = sphi 0, %s28
    %s17 = sphi 0, %s24
    %s18 = sphi 0, %s16
    %s19 = sphi 0, %s17
    %s20 = sphi 0, %s18
    %s21 = sphi 0, %s19
    %s31 = sphi 0, %s33
    %s34 = sphi 0, %s31
    %s35 = sphi 0, %s34
    %s51 = sphi 0, %s35
    %s57 = sphi 0, %s59
    %s60 = sphi 0, %s57
    %s61 = sphi 0, %s60
    %s77 = sphi 0, %s61
    %s83 = sphi 0, %s85
    %s86 = sphi 0, %s83
    %s87 = sphi 0, %s86
    %s103 = sphi 0, %s87
    %s111 = sphi 0, %s113
    %s114 = sphi 0, %s111
    %s115 = sphi 0, %s114
    %s131 = sphi 0, %s115
  $region4: #{nnconvz_forward.6} parent=0 // loop_header_branch
    %12 = sbr.rel (%p10) target = $region8
  $region5: #{nnconvz_forward.6} parent=0 // loop_body
    %s14 = ssub.s32 %s9, 1
    %s15 = ssub.s32 %s9, 2
    %s22 = sadd.s32 1, %s17
    %p23 = scmp.ge.s32.totalorder %s22, 1
    %s24 = scalar_select %p23, 0, %s22
    %s25 = sadd.s32 1, %s16
    %s26 = scalar_select %p23, %s25, %s16
    %p27 = scmp.ge.s32.totalorder %s26, 3
    %s28 = scalar_select %p27, 0, %s26
    %s29 = ssub.s32 %s16, %s28
    %p30 = scmp.eq.s32.totalorder %s29, 0
    %s32 = sadd.s32 %s31, 1
    %s33 = scalar_select %p30, %s31, %s32
    %p36 = pneg %p30
    %p37 = scmp.eq.s32.totalorder %s9, 2
    %p38 = por %p36, %p37
    %p39 = scmp.ne.s32.totalorder %s31, %s34
    %p40 = scmp.eq.s32.totalorder %s9, 0
    %p41 = por %p39, %p40
    %p42 = scmp.ne.s32.totalorder %s31, %s34
    %p43 = scmp.eq.s32.totalorder %s14, 2
    %p44 = por %p42, %p43
    %p45 = scmp.ne.s32.totalorder %s34, %s35
    %p46 = scmp.eq.s32.totalorder %s14, 0
    %p47 = por %p45, %p46
    %p48 = scmp.ne.s32.totalorder %s34, %s35
    %p49 = scmp.eq.s32.totalorder %s15, 2
    %p50 = por %p48, %p49
    %p52 = scmp.ne.s32.totalorder %s35, %s51
    %p53 = scmp.eq.s32.totalorder %s15, 0
    %p54 = por %p52, %p53
    %s55 = ssub.s32 %s17, %s24
    %p56 = scmp.eq.s32.totalorder %s55, 0
    %s58 = sadd.s32 %s57, 1
    %s59 = scalar_select %p56, %s57, %s58
    %p62 = pneg %p56
    %p63 = scmp.eq.s32.totalorder %s9, 2
    %p64 = por %p62, %p63
    %p65 = scmp.ne.s32.totalorder %s57, %s60
    %p66 = scmp.eq.s32.totalorder %s9, 0
    %p67 = por %p65, %p66
    %p68 = scmp.ne.s32.totalorder %s57, %s60
    %p69 = scmp.eq.s32.totalorder %s14, 2
    %p70 = por %p68, %p69
    %p71 = scmp.ne.s32.totalorder %s60, %s61
    %p72 = scmp.eq.s32.totalorder %s14, 0
    %p73 = por %p71, %p72
    %p74 = scmp.ne.s32.totalorder %s60, %s61
    %p75 = scmp.eq.s32.totalorder %s15, 2
    %p76 = por %p74, %p75
    %p78 = scmp.ne.s32.totalorder %s61, %s77
    %p79 = scmp.eq.s32.totalorder %s15, 0
    %p80 = por %p78, %p79
    %s81 = ssub.s32 %s17, %s24
    %p82 = scmp.eq.s32.totalorder %s81, 0
    %s84 = sadd.s32 %s83, 1
    %s85 = scalar_select %p82, %s83, %s84
    %p88 = pneg %p82
    %p89 = scmp.eq.s32.totalorder %s9, 2
    %p90 = por %p88, %p89
    %p91 = scmp.ne.s32.totalorder %s83, %s86
    %p92 = scmp.eq.s32.totalorder %s9, 0
    %p93 = por %p91, %p92
    %p94 = scmp.ne.s32.totalorder %s83, %s86
    %p95 = scmp.eq.s32.totalorder %s14, 2
    %p96 = por %p94, %p95
    %p97 = scmp.ne.s32.totalorder %s86, %s87
    %p98 = scmp.eq.s32.totalorder %s14, 0
    %p99 = por %p97, %p98
    %p100 = scmp.ne.s32.totalorder %s86, %s87
    %p101 = scmp.eq.s32.totalorder %s15, 2
    %p102 = por %p100, %p101
    %p104 = scmp.ne.s32.totalorder %s87, %s103
    %p105 = scmp.eq.s32.totalorder %s15, 0
    %p106 = por %p104, %p105
    %s107 = ssub.s32 %s16, %s28
    %s108 = ssub.s32 %s17, %s24
    %s109 = sor.u32 %s107, %s108
    %p110 = scmp.eq.s32.totalorder %s109, 0
    %s112 = sadd.s32 %s111, 1
    %s113 = scalar_select %p110, %s111, %s112
    %p116 = pneg %p110
    %p117 = scmp.eq.s32.totalorder %s9, 2
    %p118 = por %p116, %p117
    %p119 = scmp.ne.s32.totalorder %s111, %s114
    %p120 = scmp.eq.s32.totalorder %s9, 0
    %p121 = por %p119, %p120
    %p122 = scmp.ne.s32.totalorder %s111, %s114
    %p123 = scmp.eq.s32.totalorder %s14, 2
    %p124 = por %p122, %p123
    %p125 = scmp.ne.s32.totalorder %s114, %s115
    %p126 = scmp.eq.s32.totalorder %s14, 0
    %p127 = por %p125, %p126
    %p128 = scmp.ne.s32.totalorder %s114, %s115
    %p129 = scmp.eq.s32.totalorder %s15, 2
    %p130 = por %p128, %p129
    %p132 = scmp.ne.s32.totalorder %s115, %s131
    %p133 = scmp.eq.s32.totalorder %s15, 0
    %p134 = por %p132, %p133
    %p135 = scmp.le.s32.totalorder 1, %s9
    %p136 = scmp.lt.s32.totalorder %s9, 4
    %p137 = pnand %p135, %p136
    %p138 = pneg %p137
    // Predicated region
    $region9: #{nnconvz_forward.6} parent=5 // pred_check
      _
    $region10: #{nnconvz_forward.6} parent=5 // pred_check_branch
      %140 = sbr.rel (%p137) target = $region12
    $region11: #{nnconvz_forward.6} parent=5 // pred_region
      %s141 = ssub.s32 %s9, 1
      // Predicated region
      $region13: #{nnconvz_forward.6} parent=11 // pred_check
        %p142 = pneg %p73
      $region14: #{nnconvz_forward.6} parent=11 // pred_check_branch
        %144 = sbr.rel (%p142) target = $region16
      $region15: #{nnconvz_forward.6} parent=11 // pred_region
        %p145 = scmp.lt.s32.totalorder %s19, 0
        %s146 = scalar_select %p145, %s19, 0
        %s147 = smul.addr %s146, 8
        %s148 = scalar_lea.vmem %s1, %s147
      $region16: #{nnconvz_forward.6} parent=11 // pred_fallthru
        _
      // Predicated region
      $region17: #{nnconvz_forward.6} parent=11 // pred_check
        %p149 = pneg %p99
      $region18: #{nnconvz_forward.6} parent=11 // pred_check_branch
        %151 = sbr.rel (%p149) target = $region20
      $region19: #{nnconvz_forward.6} parent=11 // pred_region
        %p152 = scmp.lt.s32.totalorder %s19, 0
        %s153 = scalar_select %p152, %s19, 0
        %s154 = scalar_lea.vmem %s2, %s153
      $region20: #{nnconvz_forward.6} parent=11 // pred_fallthru
        _
    $region12: #{nnconvz_forward.6} parent=5 // pred_fallthru
      _
    %p155 = scmp.lt.s32.totalorder %s9, 3
    // Predicated region
    $region21: #{nnconvz_forward.6} parent=5 // pred_check
      %p156 = pneg %p155
    $region22: #{nnconvz_forward.6} parent=5 // pred_check_branch
      %158 = sbr.rel (%p156) target = $region24
    $region23: #{nnconvz_forward.6} parent=5 // pred_region
      // Predicated region
      $region25: #{nnconvz_forward.6} parent=23 // pred_check
        %p159 = pneg %p41
      $region26: #{nnconvz_forward.6} parent=23 // pred_check_branch
        %161 = sbr.rel (%p159) target = $region28
      $region27: #{nnconvz_forward.6} parent=23 // pred_region
        %s162 = smul.u32 48, %s16
        %p163 = scmp.lt.s32.totalorder %s162, 143
        %s164 = scalar_select %p163, %s162, 143
        %s165 = smul.addr %s164, 8
        %s166 = scalar_lea.vmem %s0, %s165
        %s167 = smul.u32 48, %s16
      $region28: #{nnconvz_forward.6} parent=23 // pred_fallthru
        _
    $region24: #{nnconvz_forward.6} parent=5 // pred_fallthru
      _
    %p168 = scmp.le.s32.totalorder 1, %s9
    %p169 = scmp.lt.s32.totalorder %s9, 4
    %p170 = pnand %p168, %p169
    %p171 = pneg %p170
    // Predicated region
    $region29: #{nnconvz_forward.6} parent=5 // pred_check
      _
    $region30: #{nnconvz_forward.6} parent=5 // pred_check_branch
      %173 = sbr.rel (%p170) target = $region32
    $region31: #{nnconvz_forward.6} parent=5 // pred_region
      %s174 = ssub.s32 %s9, 1
      %s175 = smul.u32 48, %s18
      %p176 = scmp.lt.s32.totalorder %s175, 143
      %s177 = scalar_select %p176, %s175, 143
      %s178 = smul.addr %s177, 8
      %s179 = scalar_lea.vmem %s0, %s178
      %p180 = pneg %p47
      %p181 = pneg %p44
      %p182 = scmp.lt.s32.totalorder %s19, 0
      %s183 = scalar_select %p182, %s19, 0
      %s184 = smul.addr %s183, 8
      %s185 = scalar_lea.vmem %s1, %s184
      %p186 = pneg %p73
      %p187 = pneg %p70
      %p188 = scmp.lt.s32.totalorder %s19, 0
      %s189 = scalar_select %p188, %s19, 0
      %s190 = scalar_lea.vmem %s2, %s189
      %p191 = pneg %p99
      %p192 = pneg %p96
      %p193 = pneg %p127
      %p194 = pneg %p124
      %s195 = smul.u32 48, %s18
      %p196 = scmp.lt.s32.totalorder %s195, 143
      %s197 = scalar_select %p196, %s195, 143
      %p198 = scmp.lt.s32.totalorder %s19, 0
      %s199 = scalar_select %p198, %s19, 0
      %s200 = sadd.s32 %s199, %s197
      %s201 = smul.addr %s200, 8
      %s202 = scalar_lea.vmem %s3, %s201
      %s203 = smul.u32 48, %s18
      %p204 = scmp.lt.s32.totalorder %s203, 143
      %s205 = scalar_select %p204, %s203, 143
      %s206 = smul.addr %s205, 8
      %s207 = scalar_lea.vmem %s0, %s206
      %s208 = smul.u32 48, %s18
      %p209 = scmp.lt.s32.totalorder %s19, 0
      %s210 = scalar_select %p209, %s19, 0
      %s211 = smul.addr %s210, 8
      %s212 = scalar_lea.vmem %s1, %s211
      %p213 = scmp.lt.s32.totalorder %s19, 0
      %s214 = scalar_select %p213, %s19, 0
      %s215 = scalar_lea.vmem %s2, %s214
      %s216 = smul.u32 48, %s18
      %p217 = scmp.lt.s32.totalorder %s216, 143
      %s218 = scalar_select %p217, %s216, 143
      %p219 = scmp.lt.s32.totalorder %s19, 0
      %s220 = scalar_select %p219, %s19, 0
      %s221 = sadd.s32 %s220, %s218
      %s222 = smul.addr %s221, 8
      %s223 = scalar_lea.vmem %s3, %s222
      %s224 = smul.u32 48, %s18
      %v225 = vld [vmem:[%s207] sm:$0xff]
      %v226 = vld [vmem:[%s207 + $0x8] sm:$0xff]
      %v227 = vld [vmem:[%s207 + $0x10] sm:$0xff]
      %v228 = vld [vmem:[%s207 + $0x18] sm:$0xff]
      %v229 = vld [vmem:[%s207 + $0x20] sm:$0xff]
      %v230 = vld [vmem:[%s207 + $0x28] sm:$0xff]
      %v231 = vld [vmem:[%s207 + $0x30] sm:$0xff]
      %v232 = vld [vmem:[%s207 + $0x38] sm:$0xff]
      %v233 = vld [vmem:[%s207 + $0x40] sm:$0xff]
      %v234 = vld [vmem:[%s207 + $0x48] sm:$0xff]
      %v235 = vld [vmem:[%s207 + $0x50] sm:$0xff]
      %v236 = vld [vmem:[%s207 + $0x58] sm:$0xff]
      %v237 = vld [vmem:[%s207 + $0x60] sm:$0xff]
      %v238 = vld [vmem:[%s207 + $0x68] sm:$0xff]
      %v239 = vld [vmem:[%s207 + $0x70] sm:$0xff]
      %v240 = vld [vmem:[%s207 + $0x78] sm:$0xff]
      %v241 = vld [vmem:[%s207 + $0x80] sm:$0xff]
      %v242 = vld [vmem:[%s207 + $0x88] sm:$0xff]
      %v243 = vld [vmem:[%s207 + $0x90] sm:$0xff]
      %v244 = vld [vmem:[%s207 + $0x98] sm:$0xff]
      %v245 = vld [vmem:[%s207 + $0xa0] sm:$0xff]
      %v246 = vld [vmem:[%s207 + $0xa8] sm:$0xff]
      %v247 = vld [vmem:[%s207 + $0xb0] sm:$0xff]
      %v248 = vld [vmem:[%s207 + $0xb8] sm:$0xff]
      %v249 = vld [vmem:[%s207 + $0xc0] sm:$0xff]
      %v250 = vld [vmem:[%s207 + $0xc8] sm:$0xff]
      %v251 = vld [vmem:[%s207 + $0xd0] sm:$0xff]
      %v252 = vld [vmem:[%s207 + $0xd8] sm:$0xff]
      %v253 = vld [vmem:[%s207 + $0xe0] sm:$0xff]
      %v254 = vld [vmem:[%s207 + $0xe8] sm:$0xff]
      %v255 = vld [vmem:[%s207 + $0xf0] sm:$0xff]
      %v256 = vld [vmem:[%s207 + $0xf8] sm:$0xff]
      %v257 = vld [vmem:[%s207 + $0x100] sm:$0xff]
      %v258 = vld [vmem:[%s207 + $0x108] sm:$0xff]
      %v259 = vld [vmem:[%s207 + $0x110] sm:$0xff]
      %v260 = vld [vmem:[%s207 + $0x118] sm:$0xff]
      %v261 = vld [vmem:[%s207 + $0x120] sm:$0xff]
      %v262 = vld [vmem:[%s207 + $0x128] sm:$0xff]
      %v263 = vld [vmem:[%s207 + $0x130] sm:$0xff]
      %v264 = vld [vmem:[%s207 + $0x138] sm:$0xff]
      %v265 = vld [vmem:[%s207 + $0x140] sm:$0xff]
      %v266 = vld [vmem:[%s207 + $0x148] sm:$0xff]
      %v267 = vld [vmem:[%s207 + $0x150] sm:$0xff]
      %v268 = vld [vmem:[%s207 + $0x158] sm:$0xff]
      %v269 = vld [vmem:[%s207 + $0x160] sm:$0xff]
      %v270 = vld [vmem:[%s207 + $0x168] sm:$0xff]
      %v271 = vld [vmem:[%s207 + $0x170] sm:$0xff]
      %v272 = vld [vmem:[%s207 + $0x178] sm:$0xff]
      %v273 = vld [vmem:[%s212] sm:$0xff]
      %v274 = vld [vmem:[%s212 + $0x8] sm:$0xff]
      %v275 = vld [vmem:[%s212 + $0x10] sm:$0xff]
      %v276 = vld [vmem:[%s212 + $0x18] sm:$0xff]
      %v277 = vld [vmem:[%s212 + $0x20] sm:$0xff]
      %v278 = vld [vmem:[%s212 + $0x28] sm:$0xff]
      %v279 = vld [vmem:[%s212 + $0x30] sm:$0xff]
      %v280 = vld [vmem:[%s212 + $0x38] sm:$0xff]
      %v281 = vld [vmem:[%s212 + $0x40] sm:$0xff]
      %v282 = vld [vmem:[%s212 + $0x48] sm:$0xff]
      %v283 = vld [vmem:[%s212 + $0x50] sm:$0xff]
      %v284 = vld [vmem:[%s212 + $0x58] sm:$0xff]
      %v285 = vld [vmem:[%s212 + $0x60] sm:$0xff]
      %v286 = vld [vmem:[%s212 + $0x68] sm:$0xff]
      %v287 = vld [vmem:[%s212 + $0x70] sm:$0xff]
      %v288 = vld [vmem:[%s212 + $0x78] sm:$0xff]
      %289 = vmatprep.subr.mxu0 0.0
      %290 = vmatpush1.msra.mxu0 %v273
      %291 = vmatprep.subr.mxu0 0.0
      %292 = vmatpush1.msra.mxu0 %v274
      %293 = vmatprep.subr.mxu0 0.0
      %294 = vmatpush1.msra.mxu0 %v275
      %295 = vmatprep.subr.mxu0 0.0
      %296 = vmatpush1.msra.mxu0 %v276
      %297 = vmatprep.subr.mxu0 0.0
      %298 = vmatpush1.msra.mxu0 %v277
      %299 = vmatprep.subr.mxu0 0.0
      %300 = vmatpush1.msra.mxu0 %v278
      %301 = vmatprep.subr.mxu0 0.0
      %302 = vmatpush1.msra.mxu0 %v279
      %303 = vmatprep.subr.mxu0 0.0
      %304 = vmatpush1.msra.mxu0 %v280
      %305 = vmatprep.subr.mxu0 0.0
      %306 = vmatpush1.msra.mxu0 %v281
      %307 = vmatprep.subr.mxu0 0.0
      %308 = vmatpush1.msra.mxu0 %v282
      %309 = vmatprep.subr.mxu0 0.0
      %310 = vmatpush1.msra.mxu0 %v283
      %311 = vmatprep.subr.mxu0 0.0
      %312 = vmatpush1.msra.mxu0 %v284
      %313 = vmatprep.subr.mxu0 0.0
      %314 = vmatpush1.msra.mxu0 %v285
      %315 = vmatprep.subr.mxu0 0.0
      %316 = vmatpush1.msra.mxu0 %v286
      %317 = vmatprep.subr.mxu0 0.0
      %318 = vmatpush1.msra.mxu0 %v287
      %319 = vmatprep.subr.mxu0 0.0
      %320 = vmatpush1.msra.mxu0 %v288
      %321 = vmatprep.subr.mxu0 0.0
      %322 = vmatpush1.msra.mxu0 0.0
      %323 = vmatprep.subr.mxu0 0.0
      %324 = vmatpush1.msra.mxu0 0.0
      %325 = vmatprep.subr.mxu0 0.0
      %326 = vmatpush1.msra.mxu0 0.0
      %327 = vmatprep.subr.mxu0 0.0
      %328 = vmatpush1.msra.mxu0 0.0
      %329 = vmatprep.subr.mxu0 0.0
      %330 = vmatpush1.msra.mxu0 0.0
      %331 = vmatprep.subr.mxu0 0.0
      %332 = vmatpush1.msra.mxu0 0.0
      %333 = vmatprep.subr.mxu0 0.0
      %334 = vmatpush1.msra.mxu0 0.0
      %335 = vmatprep.subr.mxu0 0.0
      %336 = vmatpush1.msra.mxu0 0.0
      %337 = vmatprep.subr.mxu0 0.0
      %338 = vmatpush1.msra.mxu0 0.0
      %339 = vmatprep.subr.mxu0 0.0
      %340 = vmatpush1.msra.mxu0 0.0
      %341 = vmatprep.subr.mxu0 0.0
      %342 = vmatpush1.msra.mxu0 0.0
      %343 = vmatprep.subr.mxu0 0.0
      %344 = vmatpush1.msra.mxu0 0.0
      %345 = vmatprep.subr.mxu0 0.0
      %346 = vmatpush1.msra.mxu0 0.0
      %347 = vmatprep.subr.mxu0 0.0
      %348 = vmatpush1.msra.mxu0 0.0
      %349 = vmatprep.subr.mxu0 0.0
      %350 = vmatpush1.msra.mxu0 0.0
      %351 = vmatprep.subr.mxu0 0.0
      %352 = vmatpush1.msra.mxu0 0.0
      %353 = vmatprep.mubr.f32.mxu0 0.0
      %354 = vmatmul.mubr.f32.gmra.mrb[0].mxu0 %v225
      %v355 = vpop.f32.mrb[0].mxu0
      %v356 = vadd.f32 0.0, %v355
      %v357 = vpop.f32.mrb[0].mxu0
      %358 = vmatprep.mubr.f32.mxu0 0.0
      %359 = vmatmul.mubr.f32.gmra.mrb[0].mxu0 %v226
      %v360 = vpop.f32.mrb[0].mxu0
      %v361 = vadd.f32 0.0, %v360
      %v362 = vpop.f32.mrb[0].mxu0
      %363 = vmatprep.mubr.f32.mxu0 0.0
      %364 = vmatmul.mubr.f32.gmra.mrb[0].mxu0 %v227
      %v365 = vpop.f32.mrb[0].mxu0
      %v366 = vadd.f32 0.0, %v365
      %v367 = vpop.f32.mrb[0].mxu0
      %368 = vmatprep.mubr.f32.mxu0 0.0
      %369 = vmatmul.mubr.f32.gmra.mrb[0].mxu0 %v228
      %v370 = vpop.f32.mrb[0].mxu0
      %v371 = vadd.f32 0.0, %v370
      %v372 = vpop.f32.mrb[0].mxu0
      %373 = vmatprep.mubr.f32.mxu0 0.0
      %374 = vmatmul.mubr.f32.gmra.mrb[0].mxu0 %v229
      %v375 = vpop.f32.mrb[0].mxu0
      %v376 = vadd.f32 0.0, %v375
      %v377 = vpop.f32.mrb[0].mxu0
      %378 = vmatprep.mubr.f32.mxu0 0.0
      %379 = vmatmul.mubr.f32.gmra.mrb[0].mxu0 %v230
      %v380 = vpop.f32.mrb[0].mxu0
      %v381 = vadd.f32 0.0, %v380
      %v382 = vpop.f32.mrb[0].mxu0
      %383 = vmatprep.mubr.f32.mxu0 0.0
      %384 = vmatmul.mubr.f32.gmra.mrb[0].mxu0 %v231
      %v385 = vpop.f32.mrb[0].mxu0
      %v386 = vadd.f32 0.0, %v385
      %v387 = vpop.f32.mrb[0].mxu0
      %388 = vmatprep.mubr.f32.mxu0 0.0
      %389 = vmatmul.mubr.f32.gmra.mrb[0].mxu0 %v232
      %v390 = vpop.f32.mrb[0].mxu0
      %v391 = vadd.f32 0.0, %v390
      %v392 = vpop.f32.mrb[0].mxu0
      %393 = vmatprep.mubr.f32.mxu0 0.0
      %394 = vmatmul.mubr.f32.gmra.mrb[0].mxu0 %v233
      %v395 = vpop.f32.mrb[0].mxu0
      %v396 = vadd.f32 0.0, %v395
      %v397 = vpop.f32.mrb[0].mxu0
      %398 = vmatprep.mubr.f32.mxu0 0.0
      %399 = vmatmul.mubr.f32.gmra.mrb[0].mxu0 %v234
      %v400 = vpop.f32.mrb[0].mxu0
      %v401 = vadd.f32 0.0, %v400
      %v402 = vpop.f32.mrb[0].mxu0
      %403 = vmatprep.mubr.f32.mxu0 0.0
      %404 = vmatmul.mubr.f32.gmra.mrb[0].mxu0 %v235
      %v405 = vpop.f32.mrb[0].mxu0
      %v406 = vadd.f32 0.0, %v405
      %v407 = vpop.f32.mrb[0].mxu0
      %408 = vmatprep.mubr.f32.mxu0 0.0
      %409 = vmatmul.mubr.f32.gmra.mrb[0].mxu0 %v236
      %v410 = vpop.f32.mrb[0].mxu0
      %v411 = vadd.f32 0.0, %v410
      %v412 = vpop.f32.mrb[0].mxu0
      %413 = vmatprep.mubr.f32.mxu0 0.0
      %414 = vmatmul.mubr.f32.gmra.mrb[0].mxu0 %v237
      %v415 = vpop.f32.mrb[0].mxu0
      %v416 = vadd.f32 0.0, %v415
      %v417 = vpop.f32.mrb[0].mxu0
      %418 = vmatprep.mubr.f32.mxu0 0.0
      %419 = vmatmul.mubr.f32.gmra.mrb[0].mxu0 %v238
      %v420 = vpop.f32.mrb[0].mxu0
      %v421 = vadd.f32 0.0, %v420
      %v422 = vpop.f32.mrb[0].mxu0
      %423 = vmatprep.mubr.f32.mxu0 0.0
      %424 = vmatmul.mubr.f32.gmra.mrb[0].mxu0 %v239
      %v425 = vpop.f32.mrb[0].mxu0
      %v426 = vadd.f32 0.0, %v425
      %v427 = vpop.f32.mrb[0].mxu0
      %428 = vmatprep.mubr.f32.mxu0 0.0
      %429 = vmatmul.mubr.f32.gmra.mrb[0].mxu0 %v240
      %v430 = vpop.f32.mrb[0].mxu0
      %v431 = vadd.f32 0.0, %v430
      %v432 = vpop.f32.mrb[0].mxu0
      %433 = vmatprep.mubr.f32.mxu0 0.0
      %434 = vmatmul.mubr.f32.gmra.mrb[0].mxu0 %v241
      %v435 = vpop.f32.mrb[0].mxu0
      %v436 = vadd.f32 0.0, %v435
      %v437 = vpop.f32.mrb[0].mxu0
      %438 = vmatprep.mubr.f32.mxu0 0.0
      %439 = vmatmul.mubr.f32.gmra.mrb[0].mxu0 %v242
      %v440 = vpop.f32.mrb[0].mxu0
      %v441 = vadd.f32 0.0, %v440
      %v442 = vpop.f32.mrb[0].mxu0
      %443 = vmatprep.mubr.f32.mxu0 0.0
      %444 = vmatmul.mubr.f32.gmra.mrb[0].mxu0 %v243
      %v445 = vpop.f32.mrb[0].mxu0
      %v446 = vadd.f32 0.0, %v445
      %v447 = vpop.f32.mrb[0].mxu0
      %448 = vmatprep.mubr.f32.mxu0 0.0
      %449 = vmatmul.mubr.f32.gmra.mrb[0].mxu0 %v244
      %v450 = vpop.f32.mrb[0].mxu0
      %v451 = vadd.f32 0.0, %v450
      %v452 = vpop.f32.mrb[0].mxu0
      %453 = vmatprep.mubr.f32.mxu0 0.0
      %454 = vmatmul.mubr.f32.gmra.mrb[0].mxu0 %v245
      %v455 = vpop.f32.mrb[0].mxu0
      %v456 = vadd.f32 0.0, %v455
      %v457 = vpop.f32.mrb[0].mxu0
      %458 = vmatprep.mubr.f32.mxu0 0.0
      %459 = vmatmul.mubr.f32.gmra.mrb[0].mxu0 %v246
      %v460 = vpop.f32.mrb[0].mxu0
      %v461 = vadd.f32 0.0, %v460
      %v462 = vpop.f32.mrb[0].mxu0
      %463 = vmatprep.mubr.f32.mxu0 0.0
      %464 = vmatmul.mubr.f32.gmra.mrb[0].mxu0 %v247
      %v465 = vpop.f32.mrb[0].mxu0
      %v466 = vadd.f32 0.0, %v465
      %v467 = vpop.f32.mrb[0].mxu0
      %468 = vmatprep.mubr.f32.mxu0 0.0
      %469 = vmatmul.mubr.f32.gmra.mrb[0].mxu0 %v248
      %v470 = vpop.f32.mrb[0].mxu0
      %v471 = vadd.f32 0.0, %v470
      %v472 = vpop.f32.mrb[0].mxu0
      %473 = vmatprep.mubr.f32.mxu0 0.0
      %474 = vmatmul.mubr.f32.gmra.mrb[0].mxu0 %v249
      %v475 = vpop.f32.mrb[0].mxu0
      %v476 = vadd.f32 0.0, %v475
      %v477 = vpop.f32.mrb[0].mxu0
      %478 = vmatprep.mubr.f32.mxu0 0.0
      %479 = vmatmul.mubr.f32.gmra.mrb[0].mxu0 %v250
      %v480 = vpop.f32.mrb[0].mxu0
      %v481 = vadd.f32 0.0, %v480
      %v482 = vpop.f32.mrb[0].mxu0
      %483 = vmatprep.mubr.f32.mxu0 0.0
      %484 = vmatmul.mubr.f32.gmra.mrb[0].mxu0 %v251
      %v485 = vpop.f32.mrb[0].mxu0
      %v486 = vadd.f32 0.0, %v485
      %v487 = vpop.f32.mrb[0].mxu0
      %488 = vmatprep.mubr.f32.mxu0 0.0
      %489 = vmatmul.mubr.f32.gmra.mrb[0].mxu0 %v252
      %v490 = vpop.f32.mrb[0].mxu0
      %v491 = vadd.f32 0.0, %v490
      %v492 = vpop.f32.mrb[0].mxu0
      %493 = vmatprep.mubr.f32.mxu0 0.0
      %494 = vmatmul.mubr.f32.gmra.mrb[0].mxu0 %v253
      %v495 = vpop.f32.mrb[0].mxu0
      %v496 = vadd.f32 0.0, %v495
      %v497 = vpop.f32.mrb[0].mxu0
      %498 = vmatprep.mubr.f32.mxu0 0.0
      %499 = vmatmul.mubr.f32.gmra.mrb[0].mxu0 %v254
      %v500 = vpop.f32.mrb[0].mxu0
      %v501 = vadd.f32 0.0, %v500
      %v502 = vpop.f32.mrb[0].mxu0
      %503 = vmatprep.mubr.f32.mxu0 0.0
      %504 = vmatmul.mubr.f32.gmra.mrb[0].mxu0 %v255
      %v505 = vpop.f32.mrb[0].mxu0
      %v506 = vadd.f32 0.0, %v505
      %v507 = vpop.f32.mrb[0].mxu0
      %508 = vmatprep.mubr.f32.mxu0 0.0
      %509 = vmatmul.mubr.f32.gmra.mrb[0].mxu0 %v256
      %v510 = vpop.f32.mrb[0].mxu0
      %v511 = vadd.f32 0.0, %v510
      %v512 = vpop.f32.mrb[0].mxu0
      %513 = vmatprep.mubr.f32.mxu0 0.0
      %514 = vmatmul.mubr.f32.gmra.mrb[0].mxu0 %v257
      %v515 = vpop.f32.mrb[0].mxu0
      %v516 = vadd.f32 0.0, %v515
      %v517 = vpop.f32.mrb[0].mxu0
      %518 = vmatprep.mubr.f32.mxu0 0.0
      %519 = vmatmul.mubr.f32.gmra.mrb[0].mxu0 %v258
      %v520 = vpop.f32.mrb[0].mxu0
      %v521 = vadd.f32 0.0, %v520
      %v522 = vpop.f32.mrb[0].mxu0
      %523 = vmatprep.mubr.f32.mxu0 0.0
      %524 = vmatmul.mubr.f32.gmra.mrb[0].mxu0 %v259
      %v525 = vpop.f32.mrb[0].mxu0
      %v526 = vadd.f32 0.0, %v525
      %v527 = vpop.f32.mrb[0].mxu0
      %528 = vmatprep.mubr.f32.mxu0 0.0
      %529 = vmatmul.mubr.f32.gmra.mrb[0].mxu0 %v260
      %v530 = vpop.f32.mrb[0].mxu0
      %v531 = vadd.f32 0.0, %v530
      %v532 = vpop.f32.mrb[0].mxu0
      %533 = vmatprep.mubr.f32.mxu0 0.0
      %534 = vmatmul.mubr.f32.gmra.mrb[0].mxu0 %v261
      %v535 = vpop.f32.mrb[0].mxu0
      %v536 = vadd.f32 0.0, %v535
      %v537 = vpop.f32.mrb[0].mxu0
      %538 = vmatprep.mubr.f32.mxu0 0.0
      %539 = vmatmul.mubr.f32.gmra.mrb[0].mxu0 %v262
      %v540 = vpop.f32.mrb[0].mxu0
      %v541 = vadd.f32 0.0, %v540
      %v542 = vpop.f32.mrb[0].mxu0
      %543 = vmatprep.mubr.f32.mxu0 0.0
      %544 = vmatmul.mubr.f32.gmra.mrb[0].mxu0 %v263
      %v545 = vpop.f32.mrb[0].mxu0
      %v546 = vadd.f32 0.0, %v545
      %v547 = vpop.f32.mrb[0].mxu0
      %548 = vmatprep.mubr.f32.mxu0 0.0
      %549 = vmatmul.mubr.f32.gmra.mrb[0].mxu0 %v264
      %v550 = vpop.f32.mrb[0].mxu0
      %v551 = vadd.f32 0.0, %v550
      %v552 = vpop.f32.mrb[0].mxu0
      %553 = vmatprep.mubr.f32.mxu0 0.0
      %554 = vmatmul.mubr.f32.gmra.mrb[0].mxu0 %v265
      %v555 = vpop.f32.mrb[0].mxu0
      %v556 = vadd.f32 0.0, %v555
      %v557 = vpop.f32.mrb[0].mxu0
      %558 = vmatprep.mubr.f32.mxu0 0.0
      %559 = vmatmul.mubr.f32.gmra.mrb[0].mxu0 %v266
      %v560 = vpop.f32.mrb[0].mxu0
      %v561 = vadd.f32 0.0, %v560
      %v562 = vpop.f32.mrb[0].mxu0
      %563 = vmatprep.mubr.f32.mxu0 0.0
      %564 = vmatmul.mubr.f32.gmra.mrb[0].mxu0 %v267
      %v565 = vpop.f32.mrb[0].mxu0
      %v566 = vadd.f32 0.0, %v565
      %v567 = vpop.f32.mrb[0].mxu0
      %568 = vmatprep.mubr.f32.mxu0 0.0
      %569 = vmatmul.mubr.f32.gmra.mrb[0].mxu0 %v268
      %v570 = vpop.f32.mrb[0].mxu0
      %v571 = vadd.f32 0.0, %v570
      %v572 = vpop.f32.mrb[0].mxu0
      %573 = vmatprep.mubr.f32.mxu0 0.0
      %574 = vmatmul.mubr.f32.gmra.mrb[0].mxu0 %v269
      %v575 = vpop.f32.mrb[0].mxu0
      %v576 = vadd.f32 0.0, %v575
      %v577 = vpop.f32.mrb[0].mxu0
      %578 = vmatprep.mubr.f32.mxu0 0.0
      %579 = vmatmul.mubr.f32.gmra.mrb[0].mxu0 %v270
      %v580 = vpop.f32.mrb[0].mxu0
      %v581 = vadd.f32 0.0, %v580
      %v582 = vpop.f32.mrb[0].mxu0
      %583 = vmatprep.mubr.f32.mxu0 0.0
      %584 = vmatmul.mubr.f32.gmra.mrb[0].mxu0 %v271
      %v585 = vpop.f32.mrb[0].mxu0
      %v586 = vadd.f32 0.0, %v585
      %v587 = vpop.f32.mrb[0].mxu0
      %588 = vmatprep.mubr.f32.mxu0 0.0
      %589 = vmatmul.mubr.f32.gmra.mrb[0].mxu0 %v272
      %v590 = vpop.f32.mrb[0].mxu0
      %v591 = vadd.f32 0.0, %v590
      %v592 = vpop.f32.mrb[0].mxu0
      %593 = vdwg.mxu0
      %s594 = smul.u32 %s18, 384
      %p595 = scmp.ge.s32.totalorder %s594, 16
      // Predicated region
      $region33: #{nnconvz_forward.6} parent=31 // pred_check
        %p596 = pneg %p595
      $region34: #{nnconvz_forward.6} parent=31 // pred_check_branch
        %598 = sbr.rel (%p596) target = $region36
      $region35: #{nnconvz_forward.6} parent=31 // pred_region
        %vm599 = vcmask 31744
        %600 = vst.msk [vmem:[%s223] sm:$0xff] %vm599, %v356
        %601 = vst.msk [vmem:[%s223 + $0x8] sm:$0xff] %vm599, %v361
        %602 = vst.msk [vmem:[%s223 + $0x10] sm:$0xff] %vm599, %v366
        %603 = vst.msk [vmem:[%s223 + $0x18] sm:$0xff] %vm599, %v371
        %604 = vst.msk [vmem:[%s223 + $0x20] sm:$0xff] %vm599, %v376
        %605 = vst.msk [vmem:[%s223 + $0x28] sm:$0xff] %vm599, %v381
        %606 = vst.msk [vmem:[%s223 + $0x30] sm:$0xff] %vm599, %v386
        %607 = vst.msk [vmem:[%s223 + $0x38] sm:$0xff] %vm599, %v391
        %608 = vst.msk [vmem:[%s223 + $0x40] sm:$0xff] %vm599, %v396
        %609 = vst.msk [vmem:[%s223 + $0x48] sm:$0xff] %vm599, %v401
        %610 = vst.msk [vmem:[%s223 + $0x50] sm:$0xff] %vm599, %v406
        %611 = vst.msk [vmem:[%s223 + $0x58] sm:$0xff] %vm599, %v411
        %612 = vst.msk [vmem:[%s223 + $0x60] sm:$0xff] %vm599, %v416
        %613 = vst.msk [vmem:[%s223 + $0x68] sm:$0xff] %vm599, %v421
        %614 = vst.msk [vmem:[%s223 + $0x70] sm:$0xff] %vm599, %v426
        %615 = vst.msk [vmem:[%s223 + $0x78] sm:$0xff] %vm599, %v431
        %616 = vst.msk [vmem:[%s223 + $0x80] sm:$0xff] %vm599, %v436
        %617 = vst.msk [vmem:[%s223 + $0x88] sm:$0xff] %vm599, %v441
        %618 = vst.msk [vmem:[%s223 + $0x90] sm:$0xff] %vm599, %v446
        %619 = vst.msk [vmem:[%s223 + $0x98] sm:$0xff] %vm599, %v451
        %620 = vst.msk [vmem:[%s223 + $0xa0] sm:$0xff] %vm599, %v456
        %621 = vst.msk [vmem:[%s223 + $0xa8] sm:$0xff] %vm599, %v461
        %622 = vst.msk [vmem:[%s223 + $0xb0] sm:$0xff] %vm599, %v466
        %623 = vst.msk [vmem:[%s223 + $0xb8] sm:$0xff] %vm599, %v471
        %624 = vst.msk [vmem:[%s223 + $0xc0] sm:$0xff] %vm599, %v476
        %625 = vst.msk [vmem:[%s223 + $0xc8] sm:$0xff] %vm599, %v481
        %626 = vst.msk [vmem:[%s223 + $0xd0] sm:$0xff] %vm599, %v486
        %627 = vst.msk [vmem:[%s223 + $0xd8] sm:$0xff] %vm599, %v491
        %628 = vst.msk [vmem:[%s223 + $0xe0] sm:$0xff] %vm599, %v496
        %629 = vst.msk [vmem:[%s223 + $0xe8] sm:$0xff] %vm599, %v501
        %630 = vst.msk [vmem:[%s223 + $0xf0] sm:$0xff] %vm599, %v506
        %631 = vst.msk [vmem:[%s223 + $0xf8] sm:$0xff] %vm599, %v511
        %632 = vst.msk [vmem:[%s223 + $0x100] sm:$0xff] %vm599, %v516
        %633 = vst.msk [vmem:[%s223 + $0x108] sm:$0xff] %vm599, %v521
        %634 = vst.msk [vmem:[%s223 + $0x110] sm:$0xff] %vm599, %v526
        %635 = vst.msk [vmem:[%s223 + $0x118] sm:$0xff] %vm599, %v531
        %636 = vst.msk [vmem:[%s223 + $0x120] sm:$0xff] %vm599, %v536
        %637 = vst.msk [vmem:[%s223 + $0x128] sm:$0xff] %vm599, %v541
        %638 = vst.msk [vmem:[%s223 + $0x130] sm:$0xff] %vm599, %v546
        %639 = vst.msk [vmem:[%s223 + $0x138] sm:$0xff] %vm599, %v551
        %640 = vst.msk [vmem:[%s223 + $0x140] sm:$0xff] %vm599, %v556
        %641 = vst.msk [vmem:[%s223 + $0x148] sm:$0xff] %vm599, %v561
        %642 = vst.msk [vmem:[%s223 + $0x150] sm:$0xff] %vm599, %v566
        %643 = vst.msk [vmem:[%s223 + $0x158] sm:$0xff] %vm599, %v571
        %644 = vst.msk [vmem:[%s223 + $0x160] sm:$0xff] %vm599, %v576
        %645 = vst.msk [vmem:[%s223 + $0x168] sm:$0xff] %vm599, %v581
        %646 = vst.msk [vmem:[%s223 + $0x170] sm:$0xff] %vm599, %v586
        %647 = vst.msk [vmem:[%s223 + $0x178] sm:$0xff] %vm599, %v591
      $region36: #{nnconvz_forward.6} parent=31 // pred_fallthru
        _
      %p648 = scmp.lt.s32.totalorder %s594, 16
      // Predicated region
      $region37: #{nnconvz_forward.6} parent=31 // pred_check
        %p649 = pneg %p648
      $region38: #{nnconvz_forward.6} parent=31 // pred_check_branch
        %651 = sbr.rel (%p649) target = $region40
      $region39: #{nnconvz_forward.6} parent=31 // pred_region
        %v652 = vlaneseq
        %v653 = vshrl.u32 %v652, 7
        %v654 = vadd.s32 %v653, 8
        %v655 = vadd.s32 %v653, 16
        %v656 = vadd.s32 %v653, 24
        %v657 = vadd.s32 %v653, 32
        %v658 = vadd.s32 %v653, 40
        %v659 = vadd.s32 %v653, 48
        %v660 = vadd.s32 %v653, 56
        %v661 = vadd.s32 %v653, 64
        %v662 = vadd.s32 %v653, 72
        %v663 = vadd.s32 %v653, 80
        %v664 = vadd.s32 %v653, 88
        %v665 = vadd.s32 %v653, 96
        %v666 = vadd.s32 %v653, 104
        %v667 = vadd.s32 %v653, 112
        %v668 = vadd.s32 %v653, 120
        %v669 = vadd.s32 %v653, 128
        %v670 = vadd.s32 %v653, 136
        %v671 = vadd.s32 %v653, 144
        %v672 = vadd.s32 %v653, 152
        %v673 = vadd.s32 %v653, 160
        %v674 = vadd.s32 %v653, 168
        %v675 = vadd.s32 %v653, 176
        %v676 = vadd.s32 %v653, 184
        %v677 = vadd.s32 %v653, 192
        %v678 = vadd.s32 %v653, 200
        %v679 = vadd.s32 %v653, 208
        %v680 = vadd.s32 %v653, 216
        %v681 = vadd.s32 %v653, 224
        %v682 = vadd.s32 %v653, 232
        %v683 = vadd.s32 %v653, 240
        %v684 = vadd.s32 %v653, 248
        %v685 = vadd.s32 %v653, 256
        %v686 = vadd.s32 %v653, 264
        %v687 = vadd.s32 %v653, 272
        %v688 = vadd.s32 %v653, 280
        %v689 = vadd.s32 %v653, 288
        %v690 = vadd.s32 %v653, 296
        %v691 = vadd.s32 %v653, 304
        %v692 = vadd.s32 %v653, 312
        %v693 = vadd.s32 %v653, 320
        %v694 = vadd.s32 %v653, 328
        %v695 = vadd.s32 %v653, 336
        %v696 = vadd.s32 %v653, 344
        %v697 = vadd.s32 %v653, 352
        %v698 = vadd.s32 %v653, 360
        %v699 = vadd.s32 %v653, 368
        %v700 = vadd.s32 %v653, 376
        %v701 = vstv %s594
        %v702 = vadd.s32 %v701, %v653
        %v703 = vadd.s32 %v701, %v654
        %v704 = vadd.s32 %v701, %v655
        %v705 = vadd.s32 %v701, %v656
        %v706 = vadd.s32 %v701, %v657
        %v707 = vadd.s32 %v701, %v658
        %v708 = vadd.s32 %v701, %v659
        %v709 = vadd.s32 %v701, %v660
        %v710 = vadd.s32 %v701, %v661
        %v711 = vadd.s32 %v701, %v662
        %v712 = vadd.s32 %v701, %v663
        %v713 = vadd.s32 %v701, %v664
        %v714 = vadd.s32 %v701, %v665
        %v715 = vadd.s32 %v701, %v666
        %v716 = vadd.s32 %v701, %v667
        %v717 = vadd.s32 %v701, %v668
        %v718 = vadd.s32 %v701, %v669
        %v719 = vadd.s32 %v701, %v670
        %v720 = vadd.s32 %v701, %v671
        %v721 = vadd.s32 %v701, %v672
        %v722 = vadd.s32 %v701, %v673
        %v723 = vadd.s32 %v701, %v674
        %v724 = vadd.s32 %v701, %v675
        %v725 = vadd.s32 %v701, %v676
        %v726 = vadd.s32 %v701, %v677
        %v727 = vadd.s32 %v701, %v678
        %v728 = vadd.s32 %v701, %v679
        %v729 = vadd.s32 %v701, %v680
        %v730 = vadd.s32 %v701, %v681
        %v731 = vadd.s32 %v701, %v682
        %v732 = vadd.s32 %v701, %v683
        %v733 = vadd.s32 %v701, %v684
        %v734 = vadd.s32 %v701, %v685
        %v735 = vadd.s32 %v701, %v686
        %v736 = vadd.s32 %v701, %v687
        %v737 = vadd.s32 %v701, %v688
        %v738 = vadd.s32 %v701, %v689
        %v739 = vadd.s32 %v701, %v690
        %v740 = vadd.s32 %v701, %v691
        %v741 = vadd.s32 %v701, %v692
        %v742 = vadd.s32 %v701, %v693
        %v743 = vadd.s32 %v701, %v694
        %v744 = vadd.s32 %v701, %v695
        %v745 = vadd.s32 %v701, %v696
        %v746 = vadd.s32 %v701, %v697
        %v747 = vadd.s32 %v701, %v698
        %v748 = vadd.s32 %v701, %v699
        %v749 = vadd.s32 %v701, %v700
        %vm750 = vcmp.lt.s32.totalorder %v702, 16
        %vm751 = vcmp.lt.s32.totalorder %v703, 16
        %vm752 = vcmp.lt.s32.totalorder %v704, 16
        %vm753 = vcmp.lt.s32.totalorder %v705, 16
        %vm754 = vcmp.lt.s32.totalorder %v706, 16
        %vm755 = vcmp.lt.s32.totalorder %v707, 16
        %vm756 = vcmp.lt.s32.totalorder %v708, 16
        %vm757 = vcmp.lt.s32.totalorder %v709, 16
        %vm758 = vcmp.lt.s32.totalorder %v710, 16
        %vm759 = vcmp.lt.s32.totalorder %v711, 16
        %vm760 = vcmp.lt.s32.totalorder %v712, 16
        %vm761 = vcmp.lt.s32.totalorder %v713, 16
        %vm762 = vcmp.lt.s32.totalorder %v714, 16
        %vm763 = vcmp.lt.s32.totalorder %v715, 16
        %vm764 = vcmp.lt.s32.totalorder %v716, 16
        %vm765 = vcmp.lt.s32.totalorder %v717, 16
        %vm766 = vcmp.lt.s32.totalorder %v718, 16
        %vm767 = vcmp.lt.s32.totalorder %v719, 16
        %vm768 = vcmp.lt.s32.totalorder %v720, 16
        %vm769 = vcmp.lt.s32.totalorder %v721, 16
        %vm770 = vcmp.lt.s32.totalorder %v722, 16
        %vm771 = vcmp.lt.s32.totalorder %v723, 16
        %vm772 = vcmp.lt.s32.totalorder %v724, 16
        %vm773 = vcmp.lt.s32.totalorder %v725, 16
        %vm774 = vcmp.lt.s32.totalorder %v726, 16
        %vm775 = vcmp.lt.s32.totalorder %v727, 16
        %vm776 = vcmp.lt.s32.totalorder %v728, 16
        %vm777 = vcmp.lt.s32.totalorder %v729, 16
        %vm778 = vcmp.lt.s32.totalorder %v730, 16
        %vm779 = vcmp.lt.s32.totalorder %v731, 16
        %vm780 = vcmp.lt.s32.totalorder %v732, 16
        %vm781 = vcmp.lt.s32.totalorder %v733, 16
        %vm782 = vcmp.lt.s32.totalorder %v734, 16
        %vm783 = vcmp.lt.s32.totalorder %v735, 16
        %vm784 = vcmp.lt.s32.totalorder %v736, 16
        %vm785 = vcmp.lt.s32.totalorder %v737, 16
        %vm786 = vcmp.lt.s32.totalorder %v738, 16
        %vm787 = vcmp.lt.s32.totalorder %v739, 16
        %vm788 = vcmp.lt.s32.totalorder %v740, 16
        %vm789 = vcmp.lt.s32.totalorder %v741, 16
        %vm790 = vcmp.lt.s32.totalorder %v742, 16
        %vm791 = vcmp.lt.s32.totalorder %v743, 16
        %vm792 = vcmp.lt.s32.totalorder %v744, 16
        %vm793 = vcmp.lt.s32.totalorder %v745, 16
        %vm794 = vcmp.lt.s32.totalorder %v746, 16
        %vm795 = vcmp.lt.s32.totalorder %v747, 16
        %vm796 = vcmp.lt.s32.totalorder %v748, 16
        %vm797 = vcmp.lt.s32.totalorder %v749, 16
        %v798 = vld [vmem:[%s215] sm:$0x1]
        %v799 = vsel %vm750, 1, 0
        %v800 = vsel %vm751, 1, 0
        %v801 = vsel %vm752, 1, 0
        %v802 = vsel %vm753, 1, 0
        %v803 = vsel %vm754, 1, 0
        %v804 = vsel %vm755, 1, 0
        %v805 = vsel %vm756, 1, 0
        %v806 = vsel %vm757, 1, 0
        %v807 = vsel %vm758, 1, 0
        %v808 = vsel %vm759, 1, 0
        %v809 = vsel %vm760, 1, 0
        %v810 = vsel %vm761, 1, 0
        %v811 = vsel %vm762, 1, 0
        %v812 = vsel %vm763, 1, 0
        %v813 = vsel %vm764, 1, 0
        %v814 = vsel %vm765, 1, 0
        %v815 = vsel %vm766, 1, 0
        %v816 = vsel %vm767, 1, 0
        %v817 = vsel %vm768, 1, 0
        %v818 = vsel %vm769, 1, 0
        %v819 = vsel %vm770, 1, 0
        %v820 = vsel %vm771, 1, 0
        %v821 = vsel %vm772, 1, 0
        %v822 = vsel %vm773, 1, 0
        %v823 = vsel %vm774, 1, 0
        %v824 = vsel %vm775, 1, 0
        %v825 = vsel %vm776, 1, 0
        %v826 = vsel %vm777, 1, 0
        %v827 = vsel %vm778, 1, 0
        %v828 = vsel %vm779, 1, 0
        %v829 = vsel %vm780, 1, 0
        %v830 = vsel %vm781, 1, 0
        %v831 = vsel %vm782, 1, 0
        %v832 = vsel %vm783, 1, 0
        %v833 = vsel %vm784, 1, 0
        %v834 = vsel %vm785, 1, 0
        %v835 = vsel %vm786, 1, 0
        %v836 = vsel %vm787, 1, 0
        %v837 = vsel %vm788, 1, 0
        %v838 = vsel %vm789, 1, 0
        %v839 = vsel %vm790, 1, 0
        %v840 = vsel %vm791, 1, 0
        %v841 = vsel %vm792, 1, 0
        %v842 = vsel %vm793, 1, 0
        %v843 = vsel %vm794, 1, 0
        %v844 = vsel %vm795, 1, 0
        %v845 = vsel %vm796, 1, 0
        %v846 = vsel %vm797, 1, 0
        %vm847 = vcmp.eq.s32.totalorder %v799, 1
        %vm848 = vcmp.eq.s32.totalorder %v800, 1
        %vm849 = vcmp.eq.s32.totalorder %v801, 1
        %vm850 = vcmp.eq.s32.totalorder %v802, 1
        %vm851 = vcmp.eq.s32.totalorder %v803, 1
        %vm852 = vcmp.eq.s32.totalorder %v804, 1
        %vm853 = vcmp.eq.s32.totalorder %v805, 1
        %vm854 = vcmp.eq.s32.totalorder %v806, 1
        %vm855 = vcmp.eq.s32.totalorder %v807, 1
        %vm856 = vcmp.eq.s32.totalorder %v808, 1
        %vm857 = vcmp.eq.s32.totalorder %v809, 1
        %vm858 = vcmp.eq.s32.totalorder %v810, 1
        %vm859 = vcmp.eq.s32.totalorder %v811, 1
        %vm860 = vcmp.eq.s32.totalorder %v812, 1
        %vm861 = vcmp.eq.s32.totalorder %v813, 1
        %vm862 = vcmp.eq.s32.totalorder %v814, 1
        %vm863 = vcmp.eq.s32.totalorder %v815, 1
        %vm864 = vcmp.eq.s32.totalorder %v816, 1
        %vm865 = vcmp.eq.s32.totalorder %v817, 1
        %vm866 = vcmp.eq.s32.totalorder %v818, 1
        %vm867 = vcmp.eq.s32.totalorder %v819, 1
        %vm868 = vcmp.eq.s32.totalorder %v820, 1
        %vm869 = vcmp.eq.s32.totalorder %v821, 1
        %vm870 = vcmp.eq.s32.totalorder %v822, 1
        %vm871 = vcmp.eq.s32.totalorder %v823, 1
        %vm872 = vcmp.eq.s32.totalorder %v824, 1
        %vm873 = vcmp.eq.s32.totalorder %v825, 1
        %vm874 = vcmp.eq.s32.totalorder %v826, 1
        %vm875 = vcmp.eq.s32.totalorder %v827, 1
        %vm876 = vcmp.eq.s32.totalorder %v828, 1
        %vm877 = vcmp.eq.s32.totalorder %v829, 1
        %vm878 = vcmp.eq.s32.totalorder %v830, 1
        %vm879 = vcmp.eq.s32.totalorder %v831, 1
        %vm880 = vcmp.eq.s32.totalorder %v832, 1
        %vm881 = vcmp.eq.s32.totalorder %v833, 1
        %vm882 = vcmp.eq.s32.totalorder %v834, 1
        %vm883 = vcmp.eq.s32.totalorder %v835, 1
        %vm884 = vcmp.eq.s32.totalorder %v836, 1
        %vm885 = vcmp.eq.s32.totalorder %v837, 1
        %vm886 = vcmp.eq.s32.totalorder %v838, 1
        %vm887 = vcmp.eq.s32.totalorder %v839, 1
        %vm888 = vcmp.eq.s32.totalorder %v840, 1
        %vm889 = vcmp.eq.s32.totalorder %v841, 1
        %vm890 = vcmp.eq.s32.totalorder %v842, 1
        %vm891 = vcmp.eq.s32.totalorder %v843, 1
        %vm892 = vcmp.eq.s32.totalorder %v844, 1
        %vm893 = vcmp.eq.s32.totalorder %v845, 1
        %vm894 = vcmp.eq.s32.totalorder %v846, 1
        %v896 = vlaneseq
        %v897 = vshrl.u32 %v896, 7
        %v898 = vsub.s32 0, %v897
        %v899 = vrot.slane %v798, %v898
        %v901 = vsel %vm847, %v899, 0.0
        %v902 = vsel %vm848, %v899, 0.0
        %v903 = vsel %vm849, %v899, 0.0
        %v904 = vsel %vm850, %v899, 0.0
        %v905 = vsel %vm851, %v899, 0.0
        %v906 = vsel %vm852, %v899, 0.0
        %v907 = vsel %vm853, %v899, 0.0
        %v908 = vsel %vm854, %v899, 0.0
        %v909 = vsel %vm855, %v899, 0.0
        %v910 = vsel %vm856, %v899, 0.0
        %v911 = vsel %vm857, %v899, 0.0
        %v912 = vsel %vm858, %v899, 0.0
        %v913 = vsel %vm859, %v899, 0.0
        %v914 = vsel %vm860, %v899, 0.0
        %v915 = vsel %vm861, %v899, 0.0
        %v916 = vsel %vm862, %v899, 0.0
        %v917 = vsel %vm863, %v899, 0.0
        %v918 = vsel %vm864, %v899, 0.0
        %v919 = vsel %vm865, %v899, 0.0
        %v920 = vsel %vm866, %v899, 0.0
        %v921 = vsel %vm867, %v899, 0.0
        %v922 = vsel %vm868, %v899, 0.0
        %v923 = vsel %vm869, %v899, 0.0
        %v924 = vsel %vm870, %v899, 0.0
        %v925 = vsel %vm871, %v899, 0.0
        %v926 = vsel %vm872, %v899, 0.0
        %v927 = vsel %vm873, %v899, 0.0
        %v928 = vsel %vm874, %v899, 0.0
        %v929 = vsel %vm875, %v899, 0.0
        %v930 = vsel %vm876, %v899, 0.0
        %v931 = vsel %vm877, %v899, 0.0
        %v932 = vsel %vm878, %v899, 0.0
        %v933 = vsel %vm879, %v899, 0.0
        %v934 = vsel %vm880, %v899, 0.0
        %v935 = vsel %vm881, %v899, 0.0
        %v936 = vsel %vm882, %v899, 0.0
        %v937 = vsel %vm883, %v899, 0.0
        %v938 = vsel %vm884, %v899, 0.0
        %v939 = vsel %vm885, %v899, 0.0
        %v940 = vsel %vm886, %v899, 0.0
        %v941 = vsel %vm887, %v899, 0.0
        %v942 = vsel %vm888, %v899, 0.0
        %v943 = vsel %vm889, %v899, 0.0
        %v944 = vsel %vm890, %v899, 0.0
        %v945 = vsel %vm891, %v899, 0.0
        %v946 = vsel %vm892, %v899, 0.0
        %v947 = vsel %vm893, %v899, 0.0
        %v948 = vsel %vm894, %v899, 0.0
        %v949 = vadd.f32 %v356, %v901
        %v950 = vadd.f32 %v361, %v902
        %v951 = vadd.f32 %v366, %v903
        %v952 = vadd.f32 %v371, %v904
        %v953 = vadd.f32 %v376, %v905
        %v954 = vadd.f32 %v381, %v906
        %v955 = vadd.f32 %v386, %v907
        %v956 = vadd.f32 %v391, %v908
        %v957 = vadd.f32 %v396, %v909
        %v958 = vadd.f32 %v401, %v910
        %v959 = vadd.f32 %v406, %v911
        %v960 = vadd.f32 %v411, %v912
        %v961 = vadd.f32 %v416, %v913
        %v962 = vadd.f32 %v421, %v914
        %v963 = vadd.f32 %v426, %v915
        %v964 = vadd.f32 %v431, %v916
        %v965 = vadd.f32 %v436, %v917
        %v966 = vadd.f32 %v441, %v918
        %v967 = vadd.f32 %v446, %v919
        %v968 = vadd.f32 %v451, %v920
        %v969 = vadd.f32 %v456, %v921
        %v970 = vadd.f32 %v461, %v922
        %v971 = vadd.f32 %v466, %v923
        %v972 = vadd.f32 %v471, %v924
        %v973 = vadd.f32 %v476, %v925
        %v974 = vadd.f32 %v481, %v926
        %v975 = vadd.f32 %v486, %v927
        %v976 = vadd.f32 %v491, %v928
        %v977 = vadd.f32 %v496, %v929
        %v978 = vadd.f32 %v501, %v930
        %v979 = vadd.f32 %v506, %v931
        %v980 = vadd.f32 %v511, %v932
        %v981 = vadd.f32 %v516, %v933
        %v982 = vadd.f32 %v521, %v934
        %v983 = vadd.f32 %v526, %v935
        %v984 = vadd.f32 %v531, %v936
        %v985 = vadd.f32 %v536, %v937
        %v986 = vadd.f32 %v541, %v938
        %v987 = vadd.f32 %v546, %v939
        %v988 = vadd.f32 %v551, %v940
        %v989 = vadd.f32 %v556, %v941
        %v990 = vadd.f32 %v561, %v942
        %v991 = vadd.f32 %v566, %v943
        %v992 = vadd.f32 %v571, %v944
        %v993 = vadd.f32 %v576, %v945
        %v994 = vadd.f32 %v581, %v946
        %v995 = vadd.f32 %v586, %v947
        %v996 = vadd.f32 %v591, %v948
        %vm997 = vcmask 31744
        %998 = vst.msk [vmem:[%s223] sm:$0xff] %vm997, %v949
        %999 = vst.msk [vmem:[%s223 + $0x8] sm:$0xff] %vm997, %v950
        %1000 = vst.msk [vmem:[%s223 + $0x10] sm:$0xff] %vm997, %v951
        %1001 = vst.msk [vmem:[%s223 + $0x18] sm:$0xff] %vm997, %v952
        %1002 = vst.msk [vmem:[%s223 + $0x20] sm:$0xff] %vm997, %v953
        %1003 = vst.msk [vmem:[%s223 + $0x28] sm:$0xff] %vm997, %v954
        %1004 = vst.msk [vmem:[%s223 + $0x30] sm:$0xff] %vm997, %v955
        %1005 = vst.msk [vmem:[%s223 + $0x38] sm:$0xff] %vm997, %v956
        %1006 = vst.msk [vmem:[%s223 + $0x40] sm:$0xff] %vm997, %v957
        %1007 = vst.msk [vmem:[%s223 + $0x48] sm:$0xff] %vm997, %v958
        %1008 = vst.msk [vmem:[%s223 + $0x50] sm:$0xff] %vm997, %v959
        %1009 = vst.msk [vmem:[%s223 + $0x58] sm:$0xff] %vm997, %v960
        %1010 = vst.msk [vmem:[%s223 + $0x60] sm:$0xff] %vm997, %v961
        %1011 = vst.msk [vmem:[%s223 + $0x68] sm:$0xff] %vm997, %v962
        %1012 = vst.msk [vmem:[%s223 + $0x70] sm:$0xff] %vm997, %v963
        %1013 = vst.msk [vmem:[%s223 + $0x78] sm:$0xff] %vm997, %v964
        %1014 = vst.msk [vmem:[%s223 + $0x80] sm:$0xff] %vm997, %v965
        %1015 = vst.msk [vmem:[%s223 + $0x88] sm:$0xff] %vm997, %v966
        %1016 = vst.msk [vmem:[%s223 + $0x90] sm:$0xff] %vm997, %v967
        %1017 = vst.msk [vmem:[%s223 + $0x98] sm:$0xff] %vm997, %v968
        %1018 = vst.msk [vmem:[%s223 + $0xa0] sm:$0xff] %vm997, %v969
        %1019 = vst.msk [vmem:[%s223 + $0xa8] sm:$0xff] %vm997, %v970
        %1020 = vst.msk [vmem:[%s223 + $0xb0] sm:$0xff] %vm997, %v971
        %1021 = vst.msk [vmem:[%s223 + $0xb8] sm:$0xff] %vm997, %v972
        %1022 = vst.msk [vmem:[%s223 + $0xc0] sm:$0xff] %vm997, %v973
        %1023 = vst.msk [vmem:[%s223 + $0xc8] sm:$0xff] %vm997, %v974
        %1024 = vst.msk [vmem:[%s223 + $0xd0] sm:$0xff] %vm997, %v975
        %1025 = vst.msk [vmem:[%s223 + $0xd8] sm:$0xff] %vm997, %v976
        %1026 = vst.msk [vmem:[%s223 + $0xe0] sm:$0xff] %vm997, %v977
        %1027 = vst.msk [vmem:[%s223 + $0xe8] sm:$0xff] %vm997, %v978
        %1028 = vst.msk [vmem:[%s223 + $0xf0] sm:$0xff] %vm997, %v979
        %1029 = vst.msk [vmem:[%s223 + $0xf8] sm:$0xff] %vm997, %v980
        %1030 = vst.msk [vmem:[%s223 + $0x100] sm:$0xff] %vm997, %v981
        %1031 = vst.msk [vmem:[%s223 + $0x108] sm:$0xff] %vm997, %v982
        %1032 = vst.msk [vmem:[%s223 + $0x110] sm:$0xff] %vm997, %v983
        %1033 = vst.msk [vmem:[%s223 + $0x118] sm:$0xff] %vm997, %v984
        %1034 = vst.msk [vmem:[%s223 + $0x120] sm:$0xff] %vm997, %v985
        %1035 = vst.msk [vmem:[%s223 + $0x128] sm:$0xff] %vm997, %v986
        %1036 = vst.msk [vmem:[%s223 + $0x130] sm:$0xff] %vm997, %v987
        %1037 = vst.msk [vmem:[%s223 + $0x138] sm:$0xff] %vm997, %v988
        %1038 = vst.msk [vmem:[%s223 + $0x140] sm:$0xff] %vm997, %v989
        %1039 = vst.msk [vmem:[%s223 + $0x148] sm:$0xff] %vm997, %v990
        %1040 = vst.msk [vmem:[%s223 + $0x150] sm:$0xff] %vm997, %v991
        %1041 = vst.msk [vmem:[%s223 + $0x158] sm:$0xff] %vm997, %v992
        %1042 = vst.msk [vmem:[%s223 + $0x160] sm:$0xff] %vm997, %v993
        %1043 = vst.msk [vmem:[%s223 + $0x168] sm:$0xff] %vm997, %v994
        %1044 = vst.msk [vmem:[%s223 + $0x170] sm:$0xff] %vm997, %v995
        %1045 = vst.msk [vmem:[%s223 + $0x178] sm:$0xff] %vm997, %v996
      $region40: #{nnconvz_forward.6} parent=31 // pred_fallthru
        _
      %s1046 = smul.u32 48, %s18
      %p1047 = scmp.lt.s32.totalorder %s1046, 143
      %s1048 = scalar_select %p1047, %s1046, 143
      %p1049 = scmp.lt.s32.totalorder %s19, 0
      %s1050 = scalar_select %p1049, %s19, 0
      %s1051 = sadd.s32 %s1050, %s1048
      %s1052 = smul.addr %s1051, 8
      %s1053 = scalar_lea.vmem %s3, %s1052
      // Predicated region
      $region41: #{nnconvz_forward.6} parent=31 // pred_check
        %p1054 = pneg %p124
      $region42: #{nnconvz_forward.6} parent=31 // pred_check_branch
        %1056 = sbr.rel (%p1054) target = $region44
      $region43: #{nnconvz_forward.6} parent=31 // pred_region
        %s1057 = smul.u32 48, %s18
      $region44: #{nnconvz_forward.6} parent=31 // pred_fallthru
        _
    $region32: #{nnconvz_forward.6} parent=5 // pred_fallthru
      _
    %p1058 = scmp.le.s32.totalorder 2, %s9
    // Predicated region
    $region45: #{nnconvz_forward.6} parent=5 // pred_check
      %p1059 = pneg %p1058
    $region46: #{nnconvz_forward.6} parent=5 // pred_check_branch
      %1061 = sbr.rel (%p1059) target = $region48
    $region47: #{nnconvz_forward.6} parent=5 // pred_region
      %s1062 = ssub.s32 %s9, 2
      // Predicated region
      $region49: #{nnconvz_forward.6} parent=47 // pred_check
        %p1063 = pneg %p130
      $region50: #{nnconvz_forward.6} parent=47 // pred_check_branch
        %1065 = sbr.rel (%p1063) target = $region52
      $region51: #{nnconvz_forward.6} parent=47 // pred_region
        %s1066 = smul.u32 48, %s20
        %p1067 = scmp.lt.s32.totalorder %s1066, 143
        %s1068 = scalar_select %p1067, %s1066, 143
        %p1069 = scmp.lt.s32.totalorder %s21, 0
        %s1070 = scalar_select %p1069, %s21, 0
        %s1071 = sadd.s32 %s1070, %s1068
        %s1072 = smul.addr %s1071, 8
        %s1073 = scalar_lea.vmem %s3, %s1072
      $region52: #{nnconvz_forward.6} parent=47 // pred_fallthru
        _
    $region48: #{nnconvz_forward.6} parent=5 // pred_fallthru
      _
  $region6: #{nnconvz_forward.6} parent=0 // loop_footer
    %s13 = sadd.s32 1, %s9
  $region7: #{nnconvz_forward.6} parent=0 // loop_footer_branch
    %8 = sbr.rel target = $region3
  $region8: #{nnconvz_forward.6} parent=0 // loop_exit
    _

// kernel: nnconvz_forward.8
$region0: #{nnconvz_forward.8}
  #allocation0 [shape = 'u32[]', space=smem, size = 0x4, offset = 0x4, fixed_abs, tag = 'smem constant byte address 0x4 - core index']
  #allocation1 [shape = 'u32[144,128]{1,0:T(1,128)}', space=vmem, size = 0x12000, scoped, tag = 'internal scratch']
  %s0 = inlined_call_operand.vmem [shape: f32[72,128], index: 0, kind: input, shape index: {}]
  %s1 = inlined_call_operand.vmem [shape: f32[128,128], index: 1, kind: input, shape index: {}]
  %s2 = inlined_call_operand.vmem [shape: f32[1,128], index: 2, kind: input, shape index: {}]
  %s3 = inlined_call_operand.vmem [shape: f32[128,1], index: 3, kind: input, shape index: {}]
  %s4 = inlined_call_operand.vmem [shape: f32[72,128], index: 4, kind: output, shape index: {0}]
  %s5 = inlined_call_operand.vmem [shape: f32[128,128], index: 5, kind: output, shape index: {1}]
  %6 = xla_tuple %s4, %s5
  %s7 = sld [smem:[#allocation0]]
  $region42: #{nnconvz_forward.8} parent=0
    _
  %s9 = ssub.s32 1, %s7
  %s10 = scalar_select 0, %s9, %s7
  // Predicated region
  $region2: #{nnconvz_forward.8} parent=0 // pred_check
    _
  $region3: #{nnconvz_forward.8} parent=0 // pred_check_branch
    %12 = sbr.rel (0) target = $region5
  $region4: #{nnconvz_forward.8} parent=0 // pred_region
    _
  $region5: #{nnconvz_forward.8} parent=0 // pred_fallthru
    _
  // Predicated region
  $region6: #{nnconvz_forward.8} parent=0 // pred_check
    _
  $region7: #{nnconvz_forward.8} parent=0 // pred_check_branch
    %14 = sbr.rel (0) target = $region9
  $region8: #{nnconvz_forward.8} parent=0 // pred_region
    _
  $region9: #{nnconvz_forward.8} parent=0 // pred_fallthru
    _
  // Predicated region
  $region10: #{nnconvz_forward.8} parent=0 // pred_check
    _
  $region11: #{nnconvz_forward.8} parent=0 // pred_check_branch
    %16 = sbr.rel (0) target = $region13
  $region12: #{nnconvz_forward.8} parent=0 // pred_region
    _
  $region13: #{nnconvz_forward.8} parent=0 // pred_fallthru
    _
  // Predicated region
  $region14: #{nnconvz_forward.8} parent=0 // pred_check
    _
  $region15: #{nnconvz_forward.8} parent=0 // pred_check_branch
    %18 = sbr.rel (0) target = $region17
  $region16: #{nnconvz_forward.8} parent=0 // pred_region
    _
  $region17: #{nnconvz_forward.8} parent=0 // pred_fallthru
    _
  %v19 = vld [vmem:[%s1] sm:$0xff]
  %v20 = vld [vmem:[%s1 + $0x8] sm:$0xff]
  %v21 = vld [vmem:[%s1 + $0x10] sm:$0xff]
  %v22 = vld [vmem:[%s1 + $0x18] sm:$0xff]
  %v23 = vld [vmem:[%s1 + $0x20] sm:$0xff]
  %v24 = vld [vmem:[%s1 + $0x28] sm:$0xff]
  %v25 = vld [vmem:[%s1 + $0x30] sm:$0xff]
  %v26 = vld [vmem:[%s1 + $0x38] sm:$0xff]
  %v27 = vld [vmem:[%s1 + $0x40] sm:$0xff]
  %v28 = vld [vmem:[%s1 + $0x48] sm:$0xff]
  %v29 = vld [vmem:[%s1 + $0x50] sm:$0xff]
  %v30 = vld [vmem:[%s1 + $0x58] sm:$0xff]
  %v31 = vld [vmem:[%s1 + $0x60] sm:$0xff]
  %v32 = vld [vmem:[%s1 + $0x68] sm:$0xff]
  %v33 = vld [vmem:[%s1 + $0x70] sm:$0xff]
  %v34 = vld [vmem:[%s1 + $0x78] sm:$0xff]
  %v35 = vld [vmem:[%s0] sm:$0xff]
  %v36 = vld [vmem:[%s0 + $0x8] sm:$0xff]
  %v37 = vld [vmem:[%s0 + $0x10] sm:$0xff]
  %v38 = vld [vmem:[%s0 + $0x18] sm:$0xff]
  %v39 = vld [vmem:[%s0 + $0x20] sm:$0xff]
  %v40 = vld [vmem:[%s0 + $0x28] sm:$0xff]
  %v41 = vld [vmem:[%s0 + $0x30] sm:$0xff]
  %v42 = vld [vmem:[%s0 + $0x38] sm:$0xff]
  %v43 = vld [vmem:[%s0 + $0x40] sm:$0xff]
  %44 = vmatprep.subr.mxu0 0.0
  %45 = vmatpush1.msra.mxu0 %v19
  %46 = vmatprep.subr.mxu0 0.0
  %47 = vmatpush1.msra.mxu0 %v20
  %48 = vmatprep.subr.mxu0 0.0
  %49 = vmatpush1.msra.mxu0 %v21
  %50 = vmatprep.subr.mxu0 0.0
  %51 = vmatpush1.msra.mxu0 %v22
  %52 = vmatprep.subr.mxu0 0.0
  %53 = vmatpush1.msra.mxu0 %v23
  %54 = vmatprep.subr.mxu0 0.0
  %55 = vmatpush1.msra.mxu0 %v24
  %56 = vmatprep.subr.mxu0 0.0
  %57 = vmatpush1.msra.mxu0 %v25
  %58 = vmatprep.subr.mxu0 0.0
  %59 = vmatpush1.msra.mxu0 %v26
  %60 = vmatprep.subr.mxu0 0.0
  %61 = vmatpush1.msra.mxu0 %v27
  %62 = vmatprep.subr.mxu0 0.0
  %63 = vmatpush1.msra.mxu0 %v28
  %64 = vmatprep.subr.mxu0 0.0
  %65 = vmatpush1.msra.mxu0 %v29
  %66 = vmatprep.subr.mxu0 0.0
  %67 = vmatpush1.msra.mxu0 %v30
  %68 = vmatprep.subr.mxu0 0.0
  %69 = vmatpush1.msra.mxu0 %v31
  %70 = vmatprep.subr.mxu0 0.0
  %71 = vmatpush1.msra.mxu0 %v32
  %72 = vmatprep.subr.mxu0 0.0
  %73 = vmatpush1.msra.mxu0 %v33
  %74 = vmatprep.subr.mxu0 0.0
  %75 = vmatpush1.msra.mxu0 %v34
  %76 = vmatprep.subr.mxu0 0.0
  %77 = vmatpush1.msra.mxu0 0.0
  %78 = vmatprep.subr.mxu0 0.0
  %79 = vmatpush1.msra.mxu0 0.0
  %80 = vmatprep.subr.mxu0 0.0
  %81 = vmatpush1.msra.mxu0 0.0
  %82 = vmatprep.subr.mxu0 0.0
  %83 = vmatpush1.msra.mxu0 0.0
  %84 = vmatprep.subr.mxu0 0.0
  %85 = vmatpush1.msra.mxu0 0.0
  %86 = vmatprep.subr.mxu0 0.0
  %87 = vmatpush1.msra.mxu0 0.0
  %88 = vmatprep.subr.mxu0 0.0
  %89 = vmatpush1.msra.mxu0 0.0
  %90 = vmatprep.subr.mxu0 0.0
  %91 = vmatpush1.msra.mxu0 0.0
  %92 = vmatprep.subr.mxu0 0.0
  %93 = vmatpush1.msra.mxu0 0.0
  %94 = vmatprep.subr.mxu0 0.0
  %95 = vmatpush1.msra.mxu0 0.0
  %96 = vmatprep.subr.mxu0 0.0
  %97 = vmatpush1.msra.mxu0 0.0
  %98 = vmatprep.subr.mxu0 0.0
  %99 = vmatpush1.msra.mxu0 0.0
  %100 = vmatprep.subr.mxu0 0.0
  %101 = vmatpush1.msra.mxu0 0.0
  %102 = vmatprep.subr.mxu0 0.0
  %103 = vmatpush1.msra.mxu0 0.0
  %104 = vmatprep.subr.mxu0 0.0
  %105 = vmatpush1.msra.mxu0 0.0
  %106 = vmatprep.subr.mxu0 0.0
  %107 = vmatpush1.msra.mxu0 0.0
  %108 = vmatprep.mubr.f32.mxu0 0.0
  %109 = vmatmul.mubr.f32.gmra.mrb[0].mxu0 %v35
  %v110 = vpop.f32.mrb[0].mxu0
  %v111 = vadd.f32 0.0, %v110
  %v112 = vpop.f32.mrb[0].mxu0
  %113 = vmatprep.mubr.f32.mxu0 0.0
  %114 = vmatmul.mubr.f32.gmra.mrb[0].mxu0 %v36
  %v115 = vpop.f32.mrb[0].mxu0
  %v116 = vadd.f32 0.0, %v115
  %v117 = vpop.f32.mrb[0].mxu0
  %118 = vmatprep.mubr.f32.mxu0 0.0
  %119 = vmatmul.mubr.f32.gmra.mrb[0].mxu0 %v37
  %v120 = vpop.f32.mrb[0].mxu0
  %v121 = vadd.f32 0.0, %v120
  %v122 = vpop.f32.mrb[0].mxu0
  %123 = vmatprep.mubr.f32.mxu0 0.0
  %124 = vmatmul.mubr.f32.gmra.mrb[0].mxu0 %v38
  %v125 = vpop.f32.mrb[0].mxu0
  %v126 = vadd.f32 0.0, %v125
  %v127 = vpop.f32.mrb[0].mxu0
  %128 = vmatprep.mubr.f32.mxu0 0.0
  %129 = vmatmul.mubr.f32.gmra.mrb[0].mxu0 %v39
  %v130 = vpop.f32.mrb[0].mxu0
  %v131 = vadd.f32 0.0, %v130
  %v132 = vpop.f32.mrb[0].mxu0
  %133 = vmatprep.mubr.f32.mxu0 0.0
  %134 = vmatmul.mubr.f32.gmra.mrb[0].mxu0 %v40
  %v135 = vpop.f32.mrb[0].mxu0
  %v136 = vadd.f32 0.0, %v135
  %v137 = vpop.f32.mrb[0].mxu0
  %138 = vmatprep.mubr.f32.mxu0 0.0
  %139 = vmatmul.mubr.f32.gmra.mrb[0].mxu0 %v41
  %v140 = vpop.f32.mrb[0].mxu0
  %v141 = vadd.f32 0.0, %v140
  %v142 = vpop.f32.mrb[0].mxu0
  %143 = vmatprep.mubr.f32.mxu0 0.0
  %144 = vmatmul.mubr.f32.gmra.mrb[0].mxu0 %v42
  %v145 = vpop.f32.mrb[0].mxu0
  %v146 = vadd.f32 0.0, %v145
  %v147 = vpop.f32.mrb[0].mxu0
  %148 = vmatprep.mubr.f32.mxu0 0.0
  %149 = vmatmul.mubr.f32.gmra.mrb[0].mxu0 %v43
  %v150 = vpop.f32.mrb[0].mxu0
  %v151 = vadd.f32 0.0, %v150
  %v152 = vpop.f32.mrb[0].mxu0
  %153 = vdwg.mxu0
  %s154 = smul.u32 0, 72
  %p155 = scmp.ge.s32.totalorder %s154, 1
  // Predicated region
  $region18: #{nnconvz_forward.8} parent=0 // pred_check
    %p156 = pneg %p155
  $region19: #{nnconvz_forward.8} parent=0 // pred_check_branch
    %158 = sbr.rel (%p156) target = $region21
  $region20: #{nnconvz_forward.8} parent=0 // pred_region
    %159 = vst [vmem:[%s4] sm:$0xff] %v111
    %160 = vst [vmem:[%s4 + $0x8] sm:$0xff] %v116
    %161 = vst [vmem:[%s4 + $0x10] sm:$0xff] %v121
    %162 = vst [vmem:[%s4 + $0x18] sm:$0xff] %v126
    %163 = vst [vmem:[%s4 + $0x20] sm:$0xff] %v131
    %164 = vst [vmem:[%s4 + $0x28] sm:$0xff] %v136
    %165 = vst [vmem:[%s4 + $0x30] sm:$0xff] %v141
    %166 = vst [vmem:[%s4 + $0x38] sm:$0xff] %v146
    %167 = vst [vmem:[%s4 + $0x40] sm:$0xff] %v151
  $region21: #{nnconvz_forward.8} parent=0 // pred_fallthru
    _
  %p168 = scmp.lt.s32.totalorder %s154, 1
  // Predicated region
  $region22: #{nnconvz_forward.8} parent=0 // pred_check
    %p169 = pneg %p168
  $region23: #{nnconvz_forward.8} parent=0 // pred_check_branch
    %171 = sbr.rel (%p169) target = $region25
  $region24: #{nnconvz_forward.8} parent=0 // pred_region
    %v172 = vlaneseq
    %v173 = vshrl.u32 %v172, 7
    %v174 = vadd.s32 %v173, 8
    %v175 = vadd.s32 %v173, 16
    %v176 = vadd.s32 %v173, 24
    %v177 = vadd.s32 %v173, 32
    %v178 = vadd.s32 %v173, 40
    %v179 = vadd.s32 %v173, 48
    %v180 = vadd.s32 %v173, 56
    %v181 = vadd.s32 %v173, 64
    %v182 = vstv %s154
    %v183 = vadd.s32 %v182, %v173
    %v184 = vadd.s32 %v182, %v174
    %v185 = vadd.s32 %v182, %v175
    %v186 = vadd.s32 %v182, %v176
    %v187 = vadd.s32 %v182, %v177
    %v188 = vadd.s32 %v182, %v178
    %v189 = vadd.s32 %v182, %v179
    %v190 = vadd.s32 %v182, %v180
    %v191 = vadd.s32 %v182, %v181
    %vm192 = vcmp.lt.s32.totalorder %v183, 1
    %vm193 = vcmp.lt.s32.totalorder %v184, 1
    %vm194 = vcmp.lt.s32.totalorder %v185, 1
    %vm195 = vcmp.lt.s32.totalorder %v186, 1
    %vm196 = vcmp.lt.s32.totalorder %v187, 1
    %vm197 = vcmp.lt.s32.totalorder %v188, 1
    %vm198 = vcmp.lt.s32.totalorder %v189, 1
    %vm199 = vcmp.lt.s32.totalorder %v190, 1
    %vm200 = vcmp.lt.s32.totalorder %v191, 1
    %v201 = vld [vmem:[%s2] sm:$0x1]
    %v202 = vsel %vm192, 1, 0
    %v203 = vsel %vm193, 1, 0
    %v204 = vsel %vm194, 1, 0
    %v205 = vsel %vm195, 1, 0
    %v206 = vsel %vm196, 1, 0
    %v207 = vsel %vm197, 1, 0
    %v208 = vsel %vm198, 1, 0
    %v209 = vsel %vm199, 1, 0
    %v210 = vsel %vm200, 1, 0
    %vm211 = vcmp.eq.s32.totalorder %v202, 1
    %vm212 = vcmp.eq.s32.totalorder %v203, 1
    %vm213 = vcmp.eq.s32.totalorder %v204, 1
    %vm214 = vcmp.eq.s32.totalorder %v205, 1
    %vm215 = vcmp.eq.s32.totalorder %v206, 1
    %vm216 = vcmp.eq.s32.totalorder %v207, 1
    %vm217 = vcmp.eq.s32.totalorder %v208, 1
    %vm218 = vcmp.eq.s32.totalorder %v209, 1
    %vm219 = vcmp.eq.s32.totalorder %v210, 1
    %v221 = vlaneseq
    %v222 = vshrl.u32 %v221, 7
    %v223 = vsub.s32 0, %v222
    %v224 = vrot.slane %v201, %v223
    %v226 = vsel %vm211, %v224, 0.0
    %v227 = vsel %vm212, %v224, 0.0
    %v228 = vsel %vm213, %v224, 0.0
    %v229 = vsel %vm214, %v224, 0.0
    %v230 = vsel %vm215, %v224, 0.0
    %v231 = vsel %vm216, %v224, 0.0
    %v232 = vsel %vm217, %v224, 0.0
    %v233 = vsel %vm218, %v224, 0.0
    %v234 = vsel %vm219, %v224, 0.0
    %v235 = vadd.f32 %v111, %v226
    %v236 = vadd.f32 %v116, %v227
    %v237 = vadd.f32 %v121, %v228
    %v238 = vadd.f32 %v126, %v229
    %v239 = vadd.f32 %v131, %v230
    %v240 = vadd.f32 %v136, %v231
    %v241 = vadd.f32 %v141, %v232
    %v242 = vadd.f32 %v146, %v233
    %v243 = vadd.f32 %v151, %v234
    %244 = vst [vmem:[%s4] sm:$0xff] %v235
    %245 = vst [vmem:[%s4 + $0x8] sm:$0xff] %v236
    %246 = vst [vmem:[%s4 + $0x10] sm:$0xff] %v237
    %247 = vst [vmem:[%s4 + $0x18] sm:$0xff] %v238
    %248 = vst [vmem:[%s4 + $0x20] sm:$0xff] %v239
    %249 = vst [vmem:[%s4 + $0x28] sm:$0xff] %v240
    %250 = vst [vmem:[%s4 + $0x30] sm:$0xff] %v241
    %251 = vst [vmem:[%s4 + $0x38] sm:$0xff] %v242
    %252 = vst [vmem:[%s4 + $0x40] sm:$0xff] %v243
  $region25: #{nnconvz_forward.8} parent=0 // pred_fallthru
    _
  %v253 = vld [vmem:[%s3] sm:$0xff]
  %v254 = vld [vmem:[%s3 + $0x8] sm:$0xff]
  %v255 = vld [vmem:[%s3 + $0x10] sm:$0xff]
  %v256 = vld [vmem:[%s3 + $0x18] sm:$0xff]
  %v257 = vld [vmem:[%s3 + $0x20] sm:$0xff]
  %v258 = vld [vmem:[%s3 + $0x28] sm:$0xff]
  %v259 = vld [vmem:[%s3 + $0x30] sm:$0xff]
  %v260 = vld [vmem:[%s3 + $0x38] sm:$0xff]
  %v261 = vld [vmem:[%s3 + $0x40] sm:$0xff]
  %v262 = vld [vmem:[%s3 + $0x48] sm:$0xff]
  %v263 = vld [vmem:[%s3 + $0x50] sm:$0xff]
  %v264 = vld [vmem:[%s3 + $0x58] sm:$0xff]
  %v265 = vld [vmem:[%s3 + $0x60] sm:$0xff]
  %v266 = vld [vmem:[%s3 + $0x68] sm:$0xff]
  %v267 = vld [vmem:[%s3 + $0x70] sm:$0xff]
  %v268 = vld [vmem:[%s3 + $0x78] sm:$0xff]
  %270 = vset.pattern.permute.xlu0 0
  %271 = vperm.xlu0 %270, %v253
  %v272 = vpop.permute.xlu0 %271
  %275 = vset.pattern.permute.xlu0 0
  %276 = vperm.xlu0 %275, %v254
  %v277 = vpop.permute.xlu0 %276
  %280 = vset.pattern.permute.xlu0 0
  %281 = vperm.xlu0 %280, %v255
  %v282 = vpop.permute.xlu0 %281
  %285 = vset.pattern.permute.xlu0 0
  %286 = vperm.xlu0 %285, %v256
  %v287 = vpop.permute.xlu0 %286
  %290 = vset.pattern.permute.xlu0 0
  %291 = vperm.xlu0 %290, %v257
  %v292 = vpop.permute.xlu0 %291
  %295 = vset.pattern.permute.xlu0 0
  %296 = vperm.xlu0 %295, %v258
  %v297 = vpop.permute.xlu0 %296
  %300 = vset.pattern.permute.xlu0 0
  %301 = vperm.xlu0 %300, %v259
  %v302 = vpop.permute.xlu0 %301
  %305 = vset.pattern.permute.xlu0 0
  %306 = vperm.xlu0 %305, %v260
  %v307 = vpop.permute.xlu0 %306
  %310 = vset.pattern.permute.xlu0 0
  %311 = vperm.xlu0 %310, %v261
  %v312 = vpop.permute.xlu0 %311
  %315 = vset.pattern.permute.xlu0 0
  %316 = vperm.xlu0 %315, %v262
  %v317 = vpop.permute.xlu0 %316
  %320 = vset.pattern.permute.xlu0 0
  %321 = vperm.xlu0 %320, %v263
  %v322 = vpop.permute.xlu0 %321
  %325 = vset.pattern.permute.xlu0 0
  %326 = vperm.xlu0 %325, %v264
  %v327 = vpop.permute.xlu0 %326
  %330 = vset.pattern.permute.xlu0 0
  %331 = vperm.xlu0 %330, %v265
  %v332 = vpop.permute.xlu0 %331
  %335 = vset.pattern.permute.xlu0 0
  %336 = vperm.xlu0 %335, %v266
  %v337 = vpop.permute.xlu0 %336
  %340 = vset.pattern.permute.xlu0 0
  %341 = vperm.xlu0 %340, %v267
  %v342 = vpop.permute.xlu0 %341
  %345 = vset.pattern.permute.xlu0 0
  %346 = vperm.xlu0 %345, %v268
  %v347 = vpop.permute.xlu0 %346
  %v349 = vmul.f32 %v272, %v19
  %v350 = vmul.f32 %v277, %v20
  %v351 = vmul.f32 %v282, %v21
  %v352 = vmul.f32 %v287, %v22
  %v353 = vmul.f32 %v292, %v23
  %v354 = vmul.f32 %v297, %v24
  %v355 = vmul.f32 %v302, %v25
  %v356 = vmul.f32 %v307, %v26
  %v357 = vmul.f32 %v312, %v27
  %v358 = vmul.f32 %v317, %v28
  %v359 = vmul.f32 %v322, %v29
  %v360 = vmul.f32 %v327, %v30
  %v361 = vmul.f32 %v332, %v31
  %v362 = vmul.f32 %v337, %v32
  %v363 = vmul.f32 %v342, %v33
  %v364 = vmul.f32 %v347, %v34
  %365 = vst [vmem:[%s5] sm:$0xff] %v349
  %366 = vst [vmem:[%s5 + $0x8] sm:$0xff] %v350
  %367 = vst [vmem:[%s5 + $0x10] sm:$0xff] %v351
  %368 = vst [vmem:[%s5 + $0x18] sm:$0xff] %v352
  %369 = vst [vmem:[%s5 + $0x20] sm:$0xff] %v353
  %370 = vst [vmem:[%s5 + $0x28] sm:$0xff] %v354
  %371 = vst [vmem:[%s5 + $0x30] sm:$0xff] %v355
  %372 = vst [vmem:[%s5 + $0x38] sm:$0xff] %v356
  %373 = vst [vmem:[%s5 + $0x40] sm:$0xff] %v357
  %374 = vst [vmem:[%s5 + $0x48] sm:$0xff] %v358
  %375 = vst [vmem:[%s5 + $0x50] sm:$0xff] %v359
  %376 = vst [vmem:[%s5 + $0x58] sm:$0xff] %v360
  %377 = vst [vmem:[%s5 + $0x60] sm:$0xff] %v361
  %378 = vst [vmem:[%s5 + $0x68] sm:$0xff] %v362
  %379 = vst [vmem:[%s5 + $0x70] sm:$0xff] %v363
  %380 = vst [vmem:[%s5 + $0x78] sm:$0xff] %v364
  // Predicated region
  $region26: #{nnconvz_forward.8} parent=0 // pred_check
    _
  $region27: #{nnconvz_forward.8} parent=0 // pred_check_branch
    %382 = sbr.rel (0) target = $region29
  $region28: #{nnconvz_forward.8} parent=0 // pred_region
    _
  $region29: #{nnconvz_forward.8} parent=0 // pred_fallthru
    _
  // Predicated region
  $region30: #{nnconvz_forward.8} parent=0 // pred_check
    _
  $region31: #{nnconvz_forward.8} parent=0 // pred_check_branch
    %384 = sbr.rel (0) target = $region33
  $region32: #{nnconvz_forward.8} parent=0 // pred_region
    _
  $region33: #{nnconvz_forward.8} parent=0 // pred_fallthru
    _
  // Predicated region
  $region34: #{nnconvz_forward.8} parent=0 // pred_check
    _
  $region35: #{nnconvz_forward.8} parent=0 // pred_check_branch
    %386 = sbr.rel (0) target = $region37
  $region36: #{nnconvz_forward.8} parent=0 // pred_region
    _
  $region37: #{nnconvz_forward.8} parent=0 // pred_fallthru
    _
  // Predicated region
  $region38: #{nnconvz_forward.8} parent=0 // pred_check
    _
  $region39: #{nnconvz_forward.8} parent=0 // pred_check_branch
    %388 = sbr.rel (0) target = $region41
  $region40: #{nnconvz_forward.8} parent=0 // pred_region
    _
  $region41: #{nnconvz_forward.8} parent=0 // pred_fallthru
    _

// kernel: nnconvz_forward.9
$region0: #{nnconvz_forward.9}
  #allocation0 [shape = 'u32[]', space=smem, size = 0x4, offset = 0x4, fixed_abs, tag = 'smem constant byte address 0x4 - core index']
  #allocation1 [shape = 'u32[144,128]{1,0:T(1,128)}', space=vmem, size = 0x12000, scoped, tag = 'internal scratch']
  %s0 = inlined_call_operand.vmem [shape: f32[200,128], index: 0, kind: input, shape index: {}]
  %s1 = inlined_call_operand.vmem [shape: f32[1,128], index: 1, kind: input, shape index: {}]
  %s2 = inlined_call_operand.vmem [shape: f32[200,128], index: 2, kind: output, shape index: {0}]
  %s3 = inlined_call_operand.vmem [shape: f32[1,128], index: 3, kind: output, shape index: {1}]
  %4 = xla_tuple %s2, %s3
  %s5 = sld [smem:[#allocation0]]
  $region26: #{nnconvz_forward.9} parent=0
    _
  %s7 = ssub.s32 1, %s5
  %s8 = scalar_select 0, %s7, %s5
  // Predicated region
  $region2: #{nnconvz_forward.9} parent=0 // pred_check
    _
  $region3: #{nnconvz_forward.9} parent=0 // pred_check_branch
    %10 = sbr.rel (0) target = $region5
  $region4: #{nnconvz_forward.9} parent=0 // pred_region
    _
  $region5: #{nnconvz_forward.9} parent=0 // pred_fallthru
    _
  // Predicated region
  $region6: #{nnconvz_forward.9} parent=0 // pred_check
    _
  $region7: #{nnconvz_forward.9} parent=0 // pred_check_branch
    %12 = sbr.rel (0) target = $region9
  $region8: #{nnconvz_forward.9} parent=0 // pred_region
    _
  $region9: #{nnconvz_forward.9} parent=0 // pred_fallthru
    _
  %v13 = vld [vmem:[%s0] sm:$0xff]
  %v14 = vld [vmem:[%s0 + $0x8] sm:$0xff]
  %v15 = vld [vmem:[%s0 + $0x10] sm:$0xff]
  %v16 = vld [vmem:[%s0 + $0x18] sm:$0xff]
  %v17 = vld [vmem:[%s0 + $0x20] sm:$0xff]
  %v18 = vld [vmem:[%s0 + $0x28] sm:$0xff]
  %v19 = vld [vmem:[%s0 + $0x30] sm:$0xff]
  %v20 = vld [vmem:[%s0 + $0x38] sm:$0xff]
  %v21 = vld [vmem:[%s0 + $0x40] sm:$0xff]
  %v22 = vld [vmem:[%s0 + $0x48] sm:$0xff]
  %v23 = vld [vmem:[%s0 + $0x50] sm:$0xff]
  %v24 = vld [vmem:[%s0 + $0x58] sm:$0xff]
  %v25 = vld [vmem:[%s0 + $0x60] sm:$0xff]
  %v26 = vld [vmem:[%s0 + $0x68] sm:$0xff]
  %v27 = vld [vmem:[%s0 + $0x70] sm:$0xff]
  %v28 = vld [vmem:[%s0 + $0x78] sm:$0xff]
  %v29 = vld [vmem:[%s0 + $0x80] sm:$0xff]
  %v30 = vld [vmem:[%s0 + $0x88] sm:$0xff]
  %v31 = vld [vmem:[%s0 + $0x90] sm:$0xff]
  %v32 = vld [vmem:[%s0 + $0x98] sm:$0xff]
  %v33 = vld [vmem:[%s0 + $0xa0] sm:$0xff]
  %v34 = vld [vmem:[%s0 + $0xa8] sm:$0xff]
  %v35 = vld [vmem:[%s0 + $0xb0] sm:$0xff]
  %v36 = vld [vmem:[%s0 + $0xb8] sm:$0xff]
  %v37 = vld [vmem:[%s0 + $0xc0] sm:$0xff]
  %v38 = vld [vmem:[%s1] sm:$0x1]
  %v39 = vand.u32 2147483647, %v13
  %v40 = vand.u32 2147483647, %v14
  %v41 = vand.u32 2147483647, %v15
  %v42 = vand.u32 2147483647, %v16
  %v43 = vand.u32 2147483647, %v17
  %v44 = vand.u32 2147483647, %v18
  %v45 = vand.u32 2147483647, %v19
  %v46 = vand.u32 2147483647, %v20
  %v47 = vand.u32 2147483647, %v21
  %v48 = vand.u32 2147483647, %v22
  %v49 = vand.u32 2147483647, %v23
  %v50 = vand.u32 2147483647, %v24
  %v51 = vand.u32 2147483647, %v25
  %v52 = vand.u32 2147483647, %v26
  %v53 = vand.u32 2147483647, %v27
  %v54 = vand.u32 2147483647, %v28
  %v55 = vand.u32 2147483647, %v29
  %v56 = vand.u32 2147483647, %v30
  %v57 = vand.u32 2147483647, %v31
  %v58 = vand.u32 2147483647, %v32
  %v59 = vand.u32 2147483647, %v33
  %v60 = vand.u32 2147483647, %v34
  %v61 = vand.u32 2147483647, %v35
  %v62 = vand.u32 2147483647, %v36
  %v63 = vand.u32 2147483647, %v37
  %v64 = vadd.f32 %v39, %v40
  %v65 = vadd.f32 %v64, %v41
  %v66 = vadd.f32 %v65, %v42
  %v67 = vadd.f32 %v66, %v43
  %v68 = vadd.f32 %v67, %v44
  %v69 = vadd.f32 %v68, %v45
  %v70 = vadd.f32 %v69, %v46
  %v71 = vadd.f32 %v70, %v47
  %v72 = vadd.f32 %v71, %v48
  %v73 = vadd.f32 %v72, %v49
  %v74 = vadd.f32 %v73, %v50
  %v75 = vadd.f32 %v74, %v51
  %v76 = vadd.f32 %v75, %v52
  %v77 = vadd.f32 %v76, %v53
  %v78 = vadd.f32 %v77, %v54
  %v79 = vadd.f32 %v78, %v55
  %v80 = vadd.f32 %v79, %v56
  %v81 = vadd.f32 %v80, %v57
  %v82 = vadd.f32 %v81, %v58
  %v83 = vadd.f32 %v82, %v59
  %v84 = vadd.f32 %v83, %v60
  %v85 = vadd.f32 %v84, %v61
  %v86 = vadd.f32 %v85, %v62
  %v87 = vadd.f32 %v86, %v63
  %v88 = vrot.slane %v87, 4
  %v89 = vadd.f32 %v87, %v88
  %v90 = vrot.slane %v89, 2
  %v91 = vadd.f32 %v89, %v90
  %v92 = vrot.slane %v91, 1
  %v93 = vadd.f32 %v91, %v92
  %v94 = vsub.f32 %v93, %v39
  %v95 = vsub.f32 %v13, %v94
  %v96 = vadd.f32 %v13, %v94
  %vm97 = vcmp.gt.f32.partialorder %v95, 0.0
  %v98 = vsel %vm97, 1, 0
  %v99 = vcvt.s32.f32 %v98
  %vm100 = vcmp.gt.f32.partialorder %v96, 0.0
  %vm101 = vcmp.lt.f32.partialorder %v95, 0.0
  %vm102 = vmand %vm100, %vm101
  %v103 = vsel %vm102, 1, 0
  %v104 = vcvt.s32.f32 %v103
  %v105 = vsub.f32 0.0, %v95
  %v106 = vmul.f32 %v105, %v38
  %v107 = vsub.f32 1.0, %v38
  %v108 = vmul.f32 %v96, %v107
  %v109 = vmax.f32 %v106, %v108
  %v110 = vmul.f32 %v109, 0.5
  %v111 = vmul.f32 %v104, %v110
  %v112 = vmul.f32 %v104, %v38
  %v113 = vadd.f32 %v99, %v112
  %v114 = vlaneseq
  %v115 = vshrl.u32 %v114, 7
  %v116 = vsub.s32 0, %v115
  %v117 = vrot.slane %v113, %v116
  %v118 = vmul.f32 %v117, %v13
  %v119 = vmul.f32 %v117, %v14
  %v120 = vmul.f32 %v117, %v15
  %v121 = vmul.f32 %v117, %v16
  %v122 = vmul.f32 %v117, %v17
  %v123 = vmul.f32 %v117, %v18
  %v124 = vmul.f32 %v117, %v19
  %v125 = vmul.f32 %v117, %v20
  %v126 = vmul.f32 %v117, %v21
  %v127 = vmul.f32 %v117, %v22
  %v128 = vmul.f32 %v117, %v23
  %v129 = vmul.f32 %v117, %v24
  %v130 = vmul.f32 %v117, %v25
  %v131 = vmul.f32 %v117, %v26
  %v132 = vmul.f32 %v117, %v27
  %v133 = vmul.f32 %v117, %v28
  %v134 = vmul.f32 %v117, %v29
  %v135 = vmul.f32 %v117, %v30
  %v136 = vmul.f32 %v117, %v31
  %v137 = vmul.f32 %v117, %v32
  %v138 = vmul.f32 %v117, %v33
  %v139 = vmul.f32 %v117, %v34
  %v140 = vmul.f32 %v117, %v35
  %v141 = vmul.f32 %v117, %v36
  %v142 = vmul.f32 %v117, %v37
  %143 = vst [vmem:[%s2] sm:$0xff] %v118
  %144 = vst [vmem:[%s2 + $0x8] sm:$0xff] %v119
  %145 = vst [vmem:[%s2 + $0x10] sm:$0xff] %v120
  %146 = vst [vmem:[%s2 + $0x18] sm:$0xff] %v121
  %147 = vst [vmem:[%s2 + $0x20] sm:$0xff] %v122
  %148 = vst [vmem:[%s2 + $0x28] sm:$0xff] %v123
  %149 = vst [vmem:[%s2 + $0x30] sm:$0xff] %v124
  %150 = vst [vmem:[%s2 + $0x38] sm:$0xff] %v125
  %151 = vst [vmem:[%s2 + $0x40] sm:$0xff] %v126
  %152 = vst [vmem:[%s2 + $0x48] sm:$0xff] %v127
  %153 = vst [vmem:[%s2 + $0x50] sm:$0xff] %v128
  %154 = vst [vmem:[%s2 + $0x58] sm:$0xff] %v129
  %155 = vst [vmem:[%s2 + $0x60] sm:$0xff] %v130
  %156 = vst [vmem:[%s2 + $0x68] sm:$0xff] %v131
  %157 = vst [vmem:[%s2 + $0x70] sm:$0xff] %v132
  %158 = vst [vmem:[%s2 + $0x78] sm:$0xff] %v133
  %159 = vst [vmem:[%s2 + $0x80] sm:$0xff] %v134
  %160 = vst [vmem:[%s2 + $0x88] sm:$0xff] %v135
  %161 = vst [vmem:[%s2 + $0x90] sm:$0xff] %v136
  %162 = vst [vmem:[%s2 + $0x98] sm:$0xff] %v137
  %163 = vst [vmem:[%s2 + $0xa0] sm:$0xff] %v138
  %164 = vst [vmem:[%s2 + $0xa8] sm:$0xff] %v139
  %165 = vst [vmem:[%s2 + $0xb0] sm:$0xff] %v140
  %166 = vst [vmem:[%s2 + $0xb8] sm:$0xff] %v141
  %167 = vst [vmem:[%s2 + $0xc0] sm:$0xff] %v142
  %v168 = vadd.f32 %v118, %v111
  %169 = vst [vmem:[%s2] sm:$0x1] %v168
  %170 = vst [vmem:[%s3] sm:$0x1] %v111
  // Predicated region
  $region10: #{nnconvz_forward.9} parent=0 // pred_check
    _
  $region11: #{nnconvz_forward.9} parent=0 // pred_check_branch
    %172 = sbr.rel (0) target = $region13
  $region12: #{nnconvz_forward.9} parent=0 // pred_region
    _
  $region13: #{nnconvz_forward.9} parent=0 // pred_fallthru
    _
  // Predicated region
  $region14: #{nnconvz_forward.9} parent=0 // pred_check
    _
  $region15: #{nnconvz_forward.9} parent=0 // pred_check_branch
    %174 = sbr.rel (0) target = $region17
  $region16: #{nnconvz_forward.9} parent=0 // pred_region
    _
  $region17: #{nnconvz_forward.9} parent=0 // pred_fallthru
    _
  // Predicated region
  $region18: #{nnconvz_forward.9} parent=0 // pred_check
    _
  $region19: #{nnconvz_forward.9} parent=0 // pred_check_branch
    %176 = sbr.rel (0) target = $region21
  $region20: #{nnconvz_forward.9} parent=0 // pred_region
    _
  $region21: #{nnconvz_forward.9} parent=0 // pred_fallthru
    _
  // Predicated region
  $region22: #{nnconvz_forward.9} parent=0 // pred_check
    _
  $region23: #{nnconvz_forward.9} parent=0 // pred_check_branch
    %178 = sbr.rel (0) target = $region25
  $region24: #{nnconvz_forward.9} parent=0 // pred_region
    _
  $region25: #{nnconvz_forward.9} parent=0 // pred_fallthru
    _

// kernel: nnconvz_forward.10
$region0: #{nnconvz_forward.10}
  #allocation0 [shape = 'u32[]', space=smem, size = 0x4, offset = 0x4, fixed_abs, tag = 'smem constant byte address 0x4 - core index']
  #allocation1 [shape = 'u32[144,128]{1,0:T(1,128)}', space=vmem, size = 0x12000, scoped, tag = 'internal scratch']
  %s0 = inlined_call_operand.vmem [shape: f32[200,128], index: 0, kind: input, shape index: {}]
  %s1 = inlined_call_operand.vmem [shape: f32[128,128], index: 1, kind: input, shape index: {}]
  %s2 = inlined_call_operand.vmem [shape: f32[1,128], index: 2, kind: input, shape index: {}]
  %s3 = inlined_call_operand.vmem [shape: f32[128,1], index: 3, kind: input, shape index: {}]
  %s4 = inlined_call_operand.vmem [shape: f32[200,128], index: 4, kind: output, shape index: {0}]
  %s5 = inlined_call_operand.vmem [shape: f32[128,128], index: 5, kind: output, shape index: {1}]
  %6 = xla_tuple %s4, %s5
  %s7 = sld [smem:[#allocation0]]
  $region42: #{nnconvz_forward.10} parent=0
    _
  %s9 = ssub.s32 1, %s7
  %s10 = scalar_select 0, %s9, %s7
  // Predicated region
  $region2: #{nnconvz_forward.10} parent=0 // pred_check
    _
  $region3: #{nnconvz_forward.10} parent=0 // pred_check_branch
    %12 = sbr.rel (0) target = $region5
  $region4: #{nnconvz_forward.10} parent=0 // pred_region
    _
  $region5: #{nnconvz_forward.10} parent=0 // pred_fallthru
    _
  // Predicated region
  $region6: #{nnconvz_forward.10} parent=0 // pred_check
    _
  $region7: #{nnconvz_forward.10} parent=0 // pred_check_branch
    %14 = sbr.rel (0) target = $region9
  $region8: #{nnconvz_forward.10} parent=0 // pred_region
    _
  $region9: #{nnconvz_forward.10} parent=0 // pred_fallthru
    _
  // Predicated region
  $region10: #{nnconvz_forward.10} parent=0 // pred_check
    _
  $region11: #{nnconvz_forward.10} parent=0 // pred_check_branch
    %16 = sbr.rel (0) target = $region13
  $region12: #{nnconvz_forward.10} parent=0 // pred_region
    _
  $region13: #{nnconvz_forward.10} parent=0 // pred_fallthru
    _
  // Predicated region
  $region14: #{nnconvz_forward.10} parent=0 // pred_check
    _
  $region15: #{nnconvz_forward.10} parent=0 // pred_check_branch
    %18 = sbr.rel (0) target = $region17
  $region16: #{nnconvz_forward.10} parent=0 // pred_region
    _
  $region17: #{nnconvz_forward.10} parent=0 // pred_fallthru
    _
  %v19 = vld [vmem:[%s1] sm:$0xff]
  %v20 = vld [vmem:[%s1 + $0x8] sm:$0xff]
  %v21 = vld [vmem:[%s1 + $0x10] sm:$0xff]
  %v22 = vld [vmem:[%s1 + $0x18] sm:$0xff]
  %v23 = vld [vmem:[%s1 + $0x20] sm:$0xff]
  %v24 = vld [vmem:[%s1 + $0x28] sm:$0xff]
  %v25 = vld [vmem:[%s1 + $0x30] sm:$0xff]
  %v26 = vld [vmem:[%s1 + $0x38] sm:$0xff]
  %v27 = vld [vmem:[%s1 + $0x40] sm:$0xff]
  %v28 = vld [vmem:[%s1 + $0x48] sm:$0xff]
  %v29 = vld [vmem:[%s1 + $0x50] sm:$0xff]
  %v30 = vld [vmem:[%s1 + $0x58] sm:$0xff]
  %v31 = vld [vmem:[%s1 + $0x60] sm:$0xff]
  %v32 = vld [vmem:[%s1 + $0x68] sm:$0xff]
  %v33 = vld [vmem:[%s1 + $0x70] sm:$0xff]
  %v34 = vld [vmem:[%s1 + $0x78] sm:$0xff]
  %v35 = vld [vmem:[%s0] sm:$0xff]
  %v36 = vld [vmem:[%s0 + $0x8] sm:$0xff]
  %v37 = vld [vmem:[%s0 + $0x10] sm:$0xff]
  %v38 = vld [vmem:[%s0 + $0x18] sm:$0xff]
  %v39 = vld [vmem:[%s0 + $0x20] sm:$0xff]
  %v40 = vld [vmem:[%s0 + $0x28] sm:$0xff]
  %v41 = vld [vmem:[%s0 + $0x30] sm:$0xff]
  %v42 = vld [vmem:[%s0 + $0x38] sm:$0xff]
  %v43 = vld [vmem:[%s0 + $0x40] sm:$0xff]
  %v44 = vld [vmem:[%s0 + $0x48] sm:$0xff]
  %v45 = vld [vmem:[%s0 + $0x50] sm:$0xff]
  %v46 = vld [vmem:[%s0 + $0x58] sm:$0xff]
  %v47 = vld [vmem:[%s0 + $0x60] sm:$0xff]
  %v48 = vld [vmem:[%s0 + $0x68] sm:$0xff]
  %v49 = vld [vmem:[%s0 + $0x70] sm:$0xff]
  %v50 = vld [vmem:[%s0 + $0x78] sm:$0xff]
  %v51 = vld [vmem:[%s0 + $0x80] sm:$0xff]
  %v52 = vld [vmem:[%s0 + $0x88] sm:$0xff]
  %v53 = vld [vmem:[%s0 + $0x90] sm:$0xff]
  %v54 = vld [vmem:[%s0 + $0x98] sm:$0xff]
  %v55 = vld [vmem:[%s0 + $0xa0] sm:$0xff]
  %v56 = vld [vmem:[%s0 + $0xa8] sm:$0xff]
  %v57 = vld [vmem:[%s0 + $0xb0] sm:$0xff]
  %v58 = vld [vmem:[%s0 + $0xb8] sm:$0xff]
  %v59 = vld [vmem:[%s0 + $0xc0] sm:$0xff]
  %60 = vmatprep.subr.mxu0 0.0
  %61 = vmatpush1.msra.mxu0 %v19
  %62 = vmatprep.subr.mxu0 0.0
  %63 = vmatpush1.msra.mxu0 %v20
  %64 = vmatprep.subr.mxu0 0.0
  %65 = vmatpush1.msra.mxu0 %v21
  %66 = vmatprep.subr.mxu0 0.0
  %67 = vmatpush1.msra.mxu0 %v22
  %68 = vmatprep.subr.mxu0 0.0
  %69 = vmatpush1.msra.mxu0 %v23
  %70 = vmatprep.subr.mxu0 0.0
  %71 = vmatpush1.msra.mxu0 %v24
  %72 = vmatprep.subr.mxu0 0.0
  %73 = vmatpush1.msra.mxu0 %v25
  %74 = vmatprep.subr.mxu0 0.0
  %75 = vmatpush1.msra.mxu0 %v26
  %76 = vmatprep.subr.mxu0 0.0
  %77 = vmatpush1.msra.mxu0 %v27
  %78 = vmatprep.subr.mxu0 0.0
  %79 = vmatpush1.msra.mxu0 %v28
  %80 = vmatprep.subr.mxu0 0.0
  %81 = vmatpush1.msra.mxu0 %v29
  %82 = vmatprep.subr.mxu0 0.0
  %83 = vmatpush1.msra.mxu0 %v30
  %84 = vmatprep.subr.mxu0 0.0
  %85 = vmatpush1.msra.mxu0 %v31
  %86 = vmatprep.subr.mxu0 0.0
  %87 = vmatpush1.msra.mxu0 %v32
  %88 = vmatprep.subr.mxu0 0.0
  %89 = vmatpush1.msra.mxu0 %v33
  %90 = vmatprep.subr.mxu0 0.0
  %91 = vmatpush1.msra.mxu0 %v34
  %92 = vmatprep.subr.mxu0 0.0
  %93 = vmatpush1.msra.mxu0 0.0
  %94 = vmatprep.subr.mxu0 0.0
  %95 = vmatpush1.msra.mxu0 0.0
  %96 = vmatprep.subr.mxu0 0.0
  %97 = vmatpush1.msra.mxu0 0.0
  %98 = vmatprep.subr.mxu0 0.0
  %99 = vmatpush1.msra.mxu0 0.0
  %100 = vmatprep.subr.mxu0 0.0
  %101 = vmatpush1.msra.mxu0 0.0
  %102 = vmatprep.subr.mxu0 0.0
  %103 = vmatpush1.msra.mxu0 0.0
  %104 = vmatprep.subr.mxu0 0.0
  %105 = vmatpush1.msra.mxu0 0.0
  %106 = vmatprep.subr.mxu0 0.0
  %107 = vmatpush1.msra.mxu0 0.0
  %108 = vmatprep.subr.mxu0 0.0
  %109 = vmatpush1.msra.mxu0 0.0
  %110 = vmatprep.subr.mxu0 0.0
  %111 = vmatpush1.msra.mxu0 0.0
  %112 = vmatprep.subr.mxu0 0.0
  %113 = vmatpush1.msra.mxu0 0.0
  %114 = vmatprep.subr.mxu0 0.0
  %115 = vmatpush1.msra.mxu0 0.0
  %116 = vmatprep.subr.mxu0 0.0
  %117 = vmatpush1.msra.mxu0 0.0
  %118 = vmatprep.subr.mxu0 0.0
  %119 = vmatpush1.msra.mxu0 0.0
  %120 = vmatprep.subr.mxu0 0.0
  %121 = vmatpush1.msra.mxu0 0.0
  %122 = vmatprep.subr.mxu0 0.0
  %123 = vmatpush1.msra.mxu0 0.0
  %124 = vmatprep.mubr.f32.mxu0 0.0
  %125 = vmatmul.mubr.f32.gmra.mrb[0].mxu0 %v35
  %v126 = vpop.f32.mrb[0].mxu0
  %v127 = vadd.f32 0.0, %v126
  %v128 = vpop.f32.mrb[0].mxu0
  %129 = vmatprep.mubr.f32.mxu0 0.0
  %130 = vmatmul.mubr.f32.gmra.mrb[0].mxu0 %v36
  %v131 = vpop.f32.mrb[0].mxu0
  %v132 = vadd.f32 0.0, %v131
  %v133 = vpop.f32.mrb[0].mxu0
  %134 = vmatprep.mubr.f32.mxu0 0.0
  %135 = vmatmul.mubr.f32.gmra.mrb[0].mxu0 %v37
  %v136 = vpop.f32.mrb[0].mxu0
  %v137 = vadd.f32 0.0, %v136
  %v138 = vpop.f32.mrb[0].mxu0
  %139 = vmatprep.mubr.f32.mxu0 0.0
  %140 = vmatmul.mubr.f32.gmra.mrb[0].mxu0 %v38
  %v141 = vpop.f32.mrb[0].mxu0
  %v142 = vadd.f32 0.0, %v141
  %v143 = vpop.f32.mrb[0].mxu0
  %144 = vmatprep.mubr.f32.mxu0 0.0
  %145 = vmatmul.mubr.f32.gmra.mrb[0].mxu0 %v39
  %v146 = vpop.f32.mrb[0].mxu0
  %v147 = vadd.f32 0.0, %v146
  %v148 = vpop.f32.mrb[0].mxu0
  %149 = vmatprep.mubr.f32.mxu0 0.0
  %150 = vmatmul.mubr.f32.gmra.mrb[0].mxu0 %v40
  %v151 = vpop.f32.mrb[0].mxu0
  %v152 = vadd.f32 0.0, %v151
  %v153 = vpop.f32.mrb[0].mxu0
  %154 = vmatprep.mubr.f32.mxu0 0.0
  %155 = vmatmul.mubr.f32.gmra.mrb[0].mxu0 %v41
  %v156 = vpop.f32.mrb[0].mxu0
  %v157 = vadd.f32 0.0, %v156
  %v158 = vpop.f32.mrb[0].mxu0
  %159 = vmatprep.mubr.f32.mxu0 0.0
  %160 = vmatmul.mubr.f32.gmra.mrb[0].mxu0 %v42
  %v161 = vpop.f32.mrb[0].mxu0
  %v162 = vadd.f32 0.0, %v161
  %v163 = vpop.f32.mrb[0].mxu0
  %164 = vmatprep.mubr.f32.mxu0 0.0
  %165 = vmatmul.mubr.f32.gmra.mrb[0].mxu0 %v43
  %v166 = vpop.f32.mrb[0].mxu0
  %v167 = vadd.f32 0.0, %v166
  %v168 = vpop.f32.mrb[0].mxu0
  %169 = vmatprep.mubr.f32.mxu0 0.0
  %170 = vmatmul.mubr.f32.gmra.mrb[0].mxu0 %v44
  %v171 = vpop.f32.mrb[0].mxu0
  %v172 = vadd.f32 0.0, %v171
  %v173 = vpop.f32.mrb[0].mxu0
  %174 = vmatprep.mubr.f32.mxu0 0.0
  %175 = vmatmul.mubr.f32.gmra.mrb[0].mxu0 %v45
  %v176 = vpop.f32.mrb[0].mxu0
  %v177 = vadd.f32 0.0, %v176
  %v178 = vpop.f32.mrb[0].mxu0
  %179 = vmatprep.mubr.f32.mxu0 0.0
  %180 = vmatmul.mubr.f32.gmra.mrb[0].mxu0 %v46
  %v181 = vpop.f32.mrb[0].mxu0
  %v182 = vadd.f32 0.0, %v181
  %v183 = vpop.f32.mrb[0].mxu0
  %184 = vmatprep.mubr.f32.mxu0 0.0
  %185 = vmatmul.mubr.f32.gmra.mrb[0].mxu0 %v47
  %v186 = vpop.f32.mrb[0].mxu0
  %v187 = vadd.f32 0.0, %v186
  %v188 = vpop.f32.mrb[0].mxu0
  %189 = vmatprep.mubr.f32.mxu0 0.0
  %190 = vmatmul.mubr.f32.gmra.mrb[0].mxu0 %v48
  %v191 = vpop.f32.mrb[0].mxu0
  %v192 = vadd.f32 0.0, %v191
  %v193 = vpop.f32.mrb[0].mxu0
  %194 = vmatprep.mubr.f32.mxu0 0.0
  %195 = vmatmul.mubr.f32.gmra.mrb[0].mxu0 %v49
  %v196 = vpop.f32.mrb[0].mxu0
  %v197 = vadd.f32 0.0, %v196
  %v198 = vpop.f32.mrb[0].mxu0
  %199 = vmatprep.mubr.f32.mxu0 0.0
  %200 = vmatmul.mubr.f32.gmra.mrb[0].mxu0 %v50
  %v201 = vpop.f32.mrb[0].mxu0
  %v202 = vadd.f32 0.0, %v201
  %v203 = vpop.f32.mrb[0].mxu0
  %204 = vmatprep.mubr.f32.mxu0 0.0
  %205 = vmatmul.mubr.f32.gmra.mrb[0].mxu0 %v51
  %v206 = vpop.f32.mrb[0].mxu0
  %v207 = vadd.f32 0.0, %v206
  %v208 = vpop.f32.mrb[0].mxu0
  %209 = vmatprep.mubr.f32.mxu0 0.0
  %210 = vmatmul.mubr.f32.gmra.mrb[0].mxu0 %v52
  %v211 = vpop.f32.mrb[0].mxu0
  %v212 = vadd.f32 0.0, %v211
  %v213 = vpop.f32.mrb[0].mxu0
  %214 = vmatprep.mubr.f32.mxu0 0.0
  %215 = vmatmul.mubr.f32.gmra.mrb[0].mxu0 %v53
  %v216 = vpop.f32.mrb[0].mxu0
  %v217 = vadd.f32 0.0, %v216
  %v218 = vpop.f32.mrb[0].mxu0
  %219 = vmatprep.mubr.f32.mxu0 0.0
  %220 = vmatmul.mubr.f32.gmra.mrb[0].mxu0 %v54
  %v221 = vpop.f32.mrb[0].mxu0
  %v222 = vadd.f32 0.0, %v221
  %v223 = vpop.f32.mrb[0].mxu0
  %224 = vmatprep.mubr.f32.mxu0 0.0
  %225 = vmatmul.mubr.f32.gmra.mrb[0].mxu0 %v55
  %v226 = vpop.f32.mrb[0].mxu0
  %v227 = vadd.f32 0.0, %v226
  %v228 = vpop.f32.mrb[0].mxu0
  %229 = vmatprep.mubr.f32.mxu0 0.0
  %230 = vmatmul.mubr.f32.gmra.mrb[0].mxu0 %v56
  %v231 = vpop.f32.mrb[0].mxu0
  %v232 = vadd.f32 0.0, %v231
  %v233 = vpop.f32.mrb[0].mxu0
  %234 = vmatprep.mubr.f32.mxu0 0.0
  %235 = vmatmul.mubr.f32.gmra.mrb[0].mxu0 %v57
  %v236 = vpop.f32.mrb[0].mxu0
  %v237 = vadd.f32 0.0, %v236
  %v238 = vpop.f32.mrb[0].mxu0
  %239 = vmatprep.mubr.f32.mxu0 0.0
  %240 = vmatmul.mubr.f32.gmra.mrb[0].mxu0 %v58
  %v241 = vpop.f32.mrb[0].mxu0
  %v242 = vadd.f32 0.0, %v241
  %v243 = vpop.f32.mrb[0].mxu0
  %244 = vmatprep.mubr.f32.mxu0 0.0
  %245 = vmatmul.mubr.f32.gmra.mrb[0].mxu0 %v59
  %v246 = vpop.f32.mrb[0].mxu0
  %v247 = vadd.f32 0.0, %v246
  %v248 = vpop.f32.mrb[0].mxu0
  %249 = vdwg.mxu0
  %s250 = smul.u32 0, 200
  %p251 = scmp.ge.s32.totalorder %s250, 1
  // Predicated region
  $region18: #{nnconvz_forward.10} parent=0 // pred_check
    %p252 = pneg %p251
  $region19: #{nnconvz_forward.10} parent=0 // pred_check_branch
    %254 = sbr.rel (%p252) target = $region21
  $region20: #{nnconvz_forward.10} parent=0 // pred_region
    %255 = vst [vmem:[%s4] sm:$0xff] %v127
    %256 = vst [vmem:[%s4 + $0x8] sm:$0xff] %v132
    %257 = vst [vmem:[%s4 + $0x10] sm:$0xff] %v137
    %258 = vst [vmem:[%s4 + $0x18] sm:$0xff] %v142
    %259 = vst [vmem:[%s4 + $0x20] sm:$0xff] %v147
    %260 = vst [vmem:[%s4 + $0x28] sm:$0xff] %v152
    %261 = vst [vmem:[%s4 + $0x30] sm:$0xff] %v157
    %262 = vst [vmem:[%s4 + $0x38] sm:$0xff] %v162
    %263 = vst [vmem:[%s4 + $0x40] sm:$0xff] %v167
    %264 = vst [vmem:[%s4 + $0x48] sm:$0xff] %v172
    %265 = vst [vmem:[%s4 + $0x50] sm:$0xff] %v177
    %266 = vst [vmem:[%s4 + $0x58] sm:$0xff] %v182
    %267 = vst [vmem:[%s4 + $0x60] sm:$0xff] %v187
    %268 = vst [vmem:[%s4 + $0x68] sm:$0xff] %v192
    %269 = vst [vmem:[%s4 + $0x70] sm:$0xff] %v197
    %270 = vst [vmem:[%s4 + $0x78] sm:$0xff] %v202
    %271 = vst [vmem:[%s4 + $0x80] sm:$0xff] %v207
    %272 = vst [vmem:[%s4 + $0x88] sm:$0xff] %v212
    %273 = vst [vmem:[%s4 + $0x90] sm:$0xff] %v217
    %274 = vst [vmem:[%s4 + $0x98] sm:$0xff] %v222
    %275 = vst [vmem:[%s4 + $0xa0] sm:$0xff] %v227
    %276 = vst [vmem:[%s4 + $0xa8] sm:$0xff] %v232
    %277 = vst [vmem:[%s4 + $0xb0] sm:$0xff] %v237
    %278 = vst [vmem:[%s4 + $0xb8] sm:$0xff] %v242
    %279 = vst [vmem:[%s4 + $0xc0] sm:$0xff] %v247
  $region21: #{nnconvz_forward.10} parent=0 // pred_fallthru
    _
  %p280 = scmp.lt.s32.totalorder %s250, 1
  // Predicated region
  $region22: #{nnconvz_forward.10} parent=0 // pred_check
    %p281 = pneg %p280
  $region23: #{nnconvz_forward.10} parent=0 // pred_check_branch
    %283 = sbr.rel (%p281) target = $region25
  $region24: #{nnconvz_forward.10} parent=0 // pred_region
    %v284 = vlaneseq
    %v285 = vshrl.u32 %v284, 7
    %v286 = vadd.s32 %v285, 8
    %v287 = vadd.s32 %v285, 16
    %v288 = vadd.s32 %v285, 24
    %v289 = vadd.s32 %v285, 32
    %v290 = vadd.s32 %v285, 40
    %v291 = vadd.s32 %v285, 48
    %v292 = vadd.s32 %v285, 56
    %v293 = vadd.s32 %v285, 64
    %v294 = vadd.s32 %v285, 72
    %v295 = vadd.s32 %v285, 80
    %v296 = vadd.s32 %v285, 88
    %v297 = vadd.s32 %v285, 96
    %v298 = vadd.s32 %v285, 104
    %v299 = vadd.s32 %v285, 112
    %v300 = vadd.s32 %v285, 120
    %v301 = vadd.s32 %v285, 128
    %v302 = vadd.s32 %v285, 136
    %v303 = vadd.s32 %v285, 144
    %v304 = vadd.s32 %v285, 152
    %v305 = vadd.s32 %v285, 160
    %v306 = vadd.s32 %v285, 168
    %v307 = vadd.s32 %v285, 176
    %v308 = vadd.s32 %v285, 184
    %v309 = vadd.s32 %v285, 192
    %v310 = vstv %s250
    %v311 = vadd.s32 %v310, %v285
    %v312 = vadd.s32 %v310, %v286
    %v313 = vadd.s32 %v310, %v287
    %v314 = vadd.s32 %v310, %v288
    %v315 = vadd.s32 %v310, %v289
    %v316 = vadd.s32 %v310, %v290
    %v317 = vadd.s32 %v310, %v291
    %v318 = vadd.s32 %v310, %v292
    %v319 = vadd.s32 %v310, %v293
    %v320 = vadd.s32 %v310, %v294
    %v321 = vadd.s32 %v310, %v295
    %v322 = vadd.s32 %v310, %v296
    %v323 = vadd.s32 %v310, %v297
    %v324 = vadd.s32 %v310, %v298
    %v325 = vadd.s32 %v310, %v299
    %v326 = vadd.s32 %v310, %v300
    %v327 = vadd.s32 %v310, %v301
    %v328 = vadd.s32 %v310, %v302
    %v329 = vadd.s32 %v310, %v303
    %v330 = vadd.s32 %v310, %v304
    %v331 = vadd.s32 %v310, %v305
    %v332 = vadd.s32 %v310, %v306
    %v333 = vadd.s32 %v310, %v307
    %v334 = vadd.s32 %v310, %v308
    %v335 = vadd.s32 %v310, %v309
    %vm336 = vcmp.lt.s32.totalorder %v311, 1
    %vm337 = vcmp.lt.s32.totalorder %v312, 1
    %vm338 = vcmp.lt.s32.totalorder %v313, 1
    %vm339 = vcmp.lt.s32.totalorder %v314, 1
    %vm340 = vcmp.lt.s32.totalorder %v315, 1
    %vm341 = vcmp.lt.s32.totalorder %v316, 1
    %vm342 = vcmp.lt.s32.totalorder %v317, 1
    %vm343 = vcmp.lt.s32.totalorder %v318, 1
    %vm344 = vcmp.lt.s32.totalorder %v319, 1
    %vm345 = vcmp.lt.s32.totalorder %v320, 1
    %vm346 = vcmp.lt.s32.totalorder %v321, 1
    %vm347 = vcmp.lt.s32.totalorder %v322, 1
    %vm348 = vcmp.lt.s32.totalorder %v323, 1
    %vm349 = vcmp.lt.s32.totalorder %v324, 1
    %vm350 = vcmp.lt.s32.totalorder %v325, 1
    %vm351 = vcmp.lt.s32.totalorder %v326, 1
    %vm352 = vcmp.lt.s32.totalorder %v327, 1
    %vm353 = vcmp.lt.s32.totalorder %v328, 1
    %vm354 = vcmp.lt.s32.totalorder %v329, 1
    %vm355 = vcmp.lt.s32.totalorder %v330, 1
    %vm356 = vcmp.lt.s32.totalorder %v331, 1
    %vm357 = vcmp.lt.s32.totalorder %v332, 1
    %vm358 = vcmp.lt.s32.totalorder %v333, 1
    %vm359 = vcmp.lt.s32.totalorder %v334, 1
    %vm360 = vcmp.lt.s32.totalorder %v335, 1
    %v361 = vld [vmem:[%s2] sm:$0x1]
    %v362 = vsel %vm336, 1, 0
    %v363 = vsel %vm337, 1, 0
    %v364 = vsel %vm338, 1, 0
    %v365 = vsel %vm339, 1, 0
    %v366 = vsel %vm340, 1, 0
    %v367 = vsel %vm341, 1, 0
    %v368 = vsel %vm342, 1, 0
    %v369 = vsel %vm343, 1, 0
    %v370 = vsel %vm344, 1, 0
    %v371 = vsel %vm345, 1, 0
    %v372 = vsel %vm346, 1, 0
    %v373 = vsel %vm347, 1, 0
    %v374 = vsel %vm348, 1, 0
    %v375 = vsel %vm349, 1, 0
    %v376 = vsel %vm350, 1, 0
    %v377 = vsel %vm351, 1, 0
    %v378 = vsel %vm352, 1, 0
    %v379 = vsel %vm353, 1, 0
    %v380 = vsel %vm354, 1, 0
    %v381 = vsel %vm355, 1, 0
    %v382 = vsel %vm356, 1, 0
    %v383 = vsel %vm357, 1, 0
    %v384 = vsel %vm358, 1, 0
    %v385 = vsel %vm359, 1, 0
    %v386 = vsel %vm360, 1, 0
    %vm387 = vcmp.eq.s32.totalorder %v362, 1
    %vm388 = vcmp.eq.s32.totalorder %v363, 1
    %vm389 = vcmp.eq.s32.totalorder %v364, 1
    %vm390 = vcmp.eq.s32.totalorder %v365, 1
    %vm391 = vcmp.eq.s32.totalorder %v366, 1
    %vm392 = vcmp.eq.s32.totalorder %v367, 1
    %vm393 = vcmp.eq.s32.totalorder %v368, 1
    %vm394 = vcmp.eq.s32.totalorder %v369, 1
    %vm395 = vcmp.eq.s32.totalorder %v370, 1
    %vm396 = vcmp.eq.s32.totalorder %v371, 1
    %vm397 = vcmp.eq.s32.totalorder %v372, 1
    %vm398 = vcmp.eq.s32.totalorder %v373, 1
    %vm399 = vcmp.eq.s32.totalorder %v374, 1
    %vm400 = vcmp.eq.s32.totalorder %v375, 1
    %vm401 = vcmp.eq.s32.totalorder %v376, 1
    %vm402 = vcmp.eq.s32.totalorder %v377, 1
    %vm403 = vcmp.eq.s32.totalorder %v378, 1
    %vm404 = vcmp.eq.s32.totalorder %v379, 1
    %vm405 = vcmp.eq.s32.totalorder %v380, 1
    %vm406 = vcmp.eq.s32.totalorder %v381, 1
    %vm407 = vcmp.eq.s32.totalorder %v382, 1
    %vm408 = vcmp.eq.s32.totalorder %v383, 1
    %vm409 = vcmp.eq.s32.totalorder %v384, 1
    %vm410 = vcmp.eq.s32.totalorder %v385, 1
    %vm411 = vcmp.eq.s32.totalorder %v386, 1
    %v413 = vlaneseq
    %v414 = vshrl.u32 %v413, 7
    %v415 = vsub.s32 0, %v414
    %v416 = vrot.slane %v361, %v415
    %v418 = vsel %vm387, %v416, 0.0
    %v419 = vsel %vm388, %v416, 0.0
    %v420 = vsel %vm389, %v416, 0.0
    %v421 = vsel %vm390, %v416, 0.0
    %v422 = vsel %vm391, %v416, 0.0
    %v423 = vsel %vm392, %v416, 0.0
    %v424 = vsel %vm393, %v416, 0.0
    %v425 = vsel %vm394, %v416, 0.0
    %v426 = vsel %vm395, %v416, 0.0
    %v427 = vsel %vm396, %v416, 0.0
    %v428 = vsel %vm397, %v416, 0.0
    %v429 = vsel %vm398, %v416, 0.0
    %v430 = vsel %vm399, %v416, 0.0
    %v431 = vsel %vm400, %v416, 0.0
    %v432 = vsel %vm401, %v416, 0.0
    %v433 = vsel %vm402, %v416, 0.0
    %v434 = vsel %vm403, %v416, 0.0
    %v435 = vsel %vm404, %v416, 0.0
    %v436 = vsel %vm405, %v416, 0.0
    %v437 = vsel %vm406, %v416, 0.0
    %v438 = vsel %vm407, %v416, 0.0
    %v439 = vsel %vm408, %v416, 0.0
    %v440 = vsel %vm409, %v416, 0.0
    %v441 = vsel %vm410, %v416, 0.0
    %v442 = vsel %vm411, %v416, 0.0
    %v443 = vadd.f32 %v127, %v418
    %v444 = vadd.f32 %v132, %v419
    %v445 = vadd.f32 %v137, %v420
    %v446 = vadd.f32 %v142, %v421
    %v447 = vadd.f32 %v147, %v422
    %v448 = vadd.f32 %v152, %v423
    %v449 = vadd.f32 %v157, %v424
    %v450 = vadd.f32 %v162, %v425
    %v451 = vadd.f32 %v167, %v426
    %v452 = vadd.f32 %v172, %v427
    %v453 = vadd.f32 %v177, %v428
    %v454 = vadd.f32 %v182, %v429
    %v455 = vadd.f32 %v187, %v430
    %v456 = vadd.f32 %v192, %v431
    %v457 = vadd.f32 %v197, %v432
    %v458 = vadd.f32 %v202, %v433
    %v459 = vadd.f32 %v207, %v434
    %v460 = vadd.f32 %v212, %v435
    %v461 = vadd.f32 %v217, %v436
    %v462 = vadd.f32 %v222, %v437
    %v463 = vadd.f32 %v227, %v438
    %v464 = vadd.f32 %v232, %v439
    %v465 = vadd.f32 %v237, %v440
    %v466 = vadd.f32 %v242, %v441
    %v467 = vadd.f32 %v247, %v442
    %468 = vst [vmem:[%s4] sm:$0xff] %v443
    %469 = vst [vmem:[%s4 + $0x8] sm:$0xff] %v444
    %470 = vst [vmem:[%s4 + $0x10] sm:$0xff] %v445
    %471 = vst [vmem:[%s4 + $0x18] sm:$0xff] %v446
    %472 = vst [vmem:[%s4 + $0x20] sm:$0xff] %v447
    %473 = vst [vmem:[%s4 + $0x28] sm:$0xff] %v448
    %474 = vst [vmem:[%s4 + $0x30] sm:$0xff] %v449
    %475 = vst [vmem:[%s4 + $0x38] sm:$0xff] %v450
    %476 = vst [vmem:[%s4 + $0x40] sm:$0xff] %v451
    %477 = vst [vmem:[%s4 + $0x48] sm:$0xff] %v452
    %478 = vst [vmem:[%s4 + $0x50] sm:$0xff] %v453
    %479 = vst [vmem:[%s4 + $0x58] sm:$0xff] %v454
    %480 = vst [vmem:[%s4 + $0x60] sm:$0xff] %v455
    %481 = vst [vmem:[%s4 + $0x68] sm:$0xff] %v456
    %482 = vst [vmem:[%s4 + $0x70] sm:$0xff] %v457
    %483 = vst [vmem:[%s4 + $0x78] sm:$0xff] %v458
    %484 = vst [vmem:[%s4 + $0x80] sm:$0xff] %v459
    %485 = vst [vmem:[%s4 + $0x88] sm:$0xff] %v460
    %486 = vst [vmem:[%s4 + $0x90] sm:$0xff] %v461
    %487 = vst [vmem:[%s4 + $0x98] sm:$0xff] %v462
    %488 = vst [vmem:[%s4 + $0xa0] sm:$0xff] %v463
    %489 = vst [vmem:[%s4 + $0xa8] sm:$0xff] %v464
    %490 = vst [vmem:[%s4 + $0xb0] sm:$0xff] %v465
    %491 = vst [vmem:[%s4 + $0xb8] sm:$0xff] %v466
    %492 = vst [vmem:[%s4 + $0xc0] sm:$0xff] %v467
  $region25: #{nnconvz_forward.10} parent=0 // pred_fallthru
    _
  %v493 = vld [vmem:[%s3] sm:$0xff]
  %v494 = vld [vmem:[%s3 + $0x8] sm:$0xff]
  %v495 = vld [vmem:[%s3 + $0x10] sm:$0xff]
  %v496 = vld [vmem:[%s3 + $0x18] sm:$0xff]
  %v497 = vld [vmem:[%s3 + $0x20] sm:$0xff]
  %v498 = vld [vmem:[%s3 + $0x28] sm:$0xff]
  %v499 = vld [vmem:[%s3 + $0x30] sm:$0xff]
  %v500 = vld [vmem:[%s3 + $0x38] sm:$0xff]
  %v501 = vld [vmem:[%s3 + $0x40] sm:$0xff]
  %v502 = vld [vmem:[%s3 + $0x48] sm:$0xff]
  %v503 = vld [vmem:[%s3 + $0x50] sm:$0xff]
  %v504 = vld [vmem:[%s3 + $0x58] sm:$0xff]
  %v505 = vld [vmem:[%s3 + $0x60] sm:$0xff]
  %v506 = vld [vmem:[%s3 + $0x68] sm:$0xff]
  %v507 = vld [vmem:[%s3 + $0x70] sm:$0xff]
  %v508 = vld [vmem:[%s3 + $0x78] sm:$0xff]
  %510 = vset.pattern.permute.xlu0 0
  %511 = vperm.xlu0 %510, %v493
  %v512 = vpop.permute.xlu0 %511
  %515 = vset.pattern.permute.xlu0 0
  %516 = vperm.xlu0 %515, %v494
  %v517 = vpop.permute.xlu0 %516
  %520 = vset.pattern.permute.xlu0 0
  %521 = vperm.xlu0 %520, %v495
  %v522 = vpop.permute.xlu0 %521
  %525 = vset.pattern.permute.xlu0 0
  %526 = vperm.xlu0 %525, %v496
  %v527 = vpop.permute.xlu0 %526
  %530 = vset.pattern.permute.xlu0 0
  %531 = vperm.xlu0 %530, %v497
  %v532 = vpop.permute.xlu0 %531
  %535 = vset.pattern.permute.xlu0 0
  %536 = vperm.xlu0 %535, %v498
  %v537 = vpop.permute.xlu0 %536
  %540 = vset.pattern.permute.xlu0 0
  %541 = vperm.xlu0 %540, %v499
  %v542 = vpop.permute.xlu0 %541
  %545 = vset.pattern.permute.xlu0 0
  %546 = vperm.xlu0 %545, %v500
  %v547 = vpop.permute.xlu0 %546
  %550 = vset.pattern.permute.xlu0 0
  %551 = vperm.xlu0 %550, %v501
  %v552 = vpop.permute.xlu0 %551
  %555 = vset.pattern.permute.xlu0 0
  %556 = vperm.xlu0 %555, %v502
  %v557 = vpop.permute.xlu0 %556
  %560 = vset.pattern.permute.xlu0 0
  %561 = vperm.xlu0 %560, %v503
  %v562 = vpop.permute.xlu0 %561
  %565 = vset.pattern.permute.xlu0 0
  %566 = vperm.xlu0 %565, %v504
  %v567 = vpop.permute.xlu0 %566
  %570 = vset.pattern.permute.xlu0 0
  %571 = vperm.xlu0 %570, %v505
  %v572 = vpop.permute.xlu0 %571
  %575 = vset.pattern.permute.xlu0 0
  %576 = vperm.xlu0 %575, %v506
  %v577 = vpop.permute.xlu0 %576
  %580 = vset.pattern.permute.xlu0 0
  %581 = vperm.xlu0 %580, %v507
  %v582 = vpop.permute.xlu0 %581
  %585 = vset.pattern.permute.xlu0 0
  %586 = vperm.xlu0 %585, %v508
  %v587 = vpop.permute.xlu0 %586
  %v589 = vmul.f32 %v512, %v19
  %v590 = vmul.f32 %v517, %v20
  %v591 = vmul.f32 %v522, %v21
  %v592 = vmul.f32 %v527, %v22
  %v593 = vmul.f32 %v532, %v23
  %v594 = vmul.f32 %v537, %v24
  %v595 = vmul.f32 %v542, %v25
  %v596 = vmul.f32 %v547, %v26
  %v597 = vmul.f32 %v552, %v27
  %v598 = vmul.f32 %v557, %v28
  %v599 = vmul.f32 %v562, %v29
  %v600 = vmul.f32 %v567, %v30
  %v601 = vmul.f32 %v572, %v31
  %v602 = vmul.f32 %v577, %v32
  %v603 = vmul.f32 %v582, %v33
  %v604 = vmul.f32 %v587, %v34
  %605 = vst [vmem:[%s5] sm:$0xff] %v589
  %606 = vst [vmem:[%s5 + $0x8] sm:$0xff] %v590
  %607 = vst [vmem:[%s5 + $0x10] sm:$0xff] %v591
  %608 = vst [vmem:[%s5 + $0x18] sm:$0xff] %v592
  %609 = vst [vmem:[%s5 + $0x20] sm:$0xff] %v593
  %610 = vst [vmem:[%s5 + $0x28] sm:$0xff] %v594
  %611 = vst [vmem:[%s5 + $0x30] sm:$0xff] %v595
  %612 = vst [vmem:[%s5 + $0x38] sm:$0xff] %v596
  %613 = vst [vmem:[%s5 + $0x40] sm:$0xff] %v597
  %614 = vst [vmem:[%s5 + $0x48] sm:$0xff] %v598
  %615 = vst [vmem:[%s5 + $0x50] sm:$0xff] %v599
  %616 = vst [vmem:[%s5 + $0x58] sm:$0xff] %v600
  %617 = vst [vmem:[%s5 + $0x60] sm:$0xff] %v601
  %618 = vst [vmem:[%s5 + $0x68] sm:$0xff] %v602
  %619 = vst [vmem:[%s5 + $0x70] sm:$0xff] %v603
  %620 = vst [vmem:[%s5 + $0x78] sm:$0xff] %v604
  // Predicated region
  $region26: #{nnconvz_forward.10} parent=0 // pred_check
    _
  $region27: #{nnconvz_forward.10} parent=0 // pred_check_branch
    %622 = sbr.rel (0) target = $region29
  $region28: #{nnconvz_forward.10} parent=0 // pred_region
    _
  $region29: #{nnconvz_forward.10} parent=0 // pred_fallthru
    _
  // Predicated region
  $region30: #{nnconvz_forward.10} parent=0 // pred_check
    _
  $region31: #{nnconvz_forward.10} parent=0 // pred_check_branch
    %624 = sbr.rel (0) target = $region33
  $region32: #{nnconvz_forward.10} parent=0 // pred_region
    _
  $region33: #{nnconvz_forward.10} parent=0 // pred_fallthru
    _
  // Predicated region
  $region34: #{nnconvz_forward.10} parent=0 // pred_check
    _
  $region35: #{nnconvz_forward.10} parent=0 // pred_check_branch
    %626 = sbr.rel (0) target = $region37
  $region36: #{nnconvz_forward.10} parent=0 // pred_region
    _
  $region37: #{nnconvz_forward.10} parent=0 // pred_fallthru
    _
  // Predicated region
  $region38: #{nnconvz_forward.10} parent=0 // pred_check
    _
  $region39: #{nnconvz_forward.10} parent=0 // pred_check_branch
    %628 = sbr.rel (0) target = $region41
  $region40: #{nnconvz_forward.10} parent=0 // pred_region
    _
  $region41: #{nnconvz_forward.10} parent=0 // pred_fallthru
    _

// kernel: nnconvz_forward.11
$region0: #{nnconvz_forward.11}
  #allocation0 [shape = 'u32[]', space=smem, size = 0x4, offset = 0x4, fixed_abs, tag = 'smem constant byte address 0x4 - core index']
  #allocation1 [shape = 'u32[144,128]{1,0:T(1,128)}', space=vmem, size = 0x12000, scoped, tag = 'internal scratch']
  #allocation2 [shape = 'f32[1,128]{1,0:T(1,128)}', space=vmem, size = 0x200, scoped, tag = 'scratch operand']
  %s0 = inlined_call_operand.vmem [shape: f32[328,128], index: 0, kind: input, shape index: {}]
  %s1 = inlined_call_operand.vmem [shape: f32[128,128], index: 1, kind: input, shape index: {}]
  %s2 = inlined_call_operand.vmem [shape: f32[1,128], index: 2, kind: output, shape index: {}]
  %s3 = sld [smem:[#allocation0]]
  $region26: #{nnconvz_forward.11} parent=0
    _
  %s5 = ssub.s32 1, %s3
  %s6 = scalar_select 0, %s5, %s3
  // Predicated region
  $region2: #{nnconvz_forward.11} parent=0 // pred_check
    _
  $region3: #{nnconvz_forward.11} parent=0 // pred_check_branch
    %8 = sbr.rel (0) target = $region5
  $region4: #{nnconvz_forward.11} parent=0 // pred_region
    _
  $region5: #{nnconvz_forward.11} parent=0 // pred_fallthru
    _
  // Predicated region
  $region6: #{nnconvz_forward.11} parent=0 // pred_check
    _
  $region7: #{nnconvz_forward.11} parent=0 // pred_check_branch
    %10 = sbr.rel (0) target = $region9
  $region8: #{nnconvz_forward.11} parent=0 // pred_region
    _
  $region9: #{nnconvz_forward.11} parent=0 // pred_fallthru
    _
  %p11 = scmp.eq.s32.totalorder 0, 0
  // Predicated region
  $region10: #{nnconvz_forward.11} parent=0 // pred_check
    %p12 = pneg %p11
  $region11: #{nnconvz_forward.11} parent=0 // pred_check_branch
    %14 = sbr.rel (%p12) target = $region13
  $region12: #{nnconvz_forward.11} parent=0 // pred_region
    %15 = vst [vmem:[#allocation2] sm:$0x1] 0.0
  $region13: #{nnconvz_forward.11} parent=0 // pred_fallthru
    _
  %v16 = vld [vmem:[%s0] sm:$0xff]
  %v17 = vld [vmem:[%s0 + $0x8] sm:$0xff]
  %v18 = vld [vmem:[%s0 + $0x10] sm:$0xff]
  %v19 = vld [vmem:[%s0 + $0x18] sm:$0xff]
  %v20 = vld [vmem:[%s0 + $0x20] sm:$0xff]
  %v21 = vld [vmem:[%s0 + $0x28] sm:$0xff]
  %v22 = vld [vmem:[%s0 + $0x30] sm:$0xff]
  %v23 = vld [vmem:[%s0 + $0x38] sm:$0xff]
  %v24 = vld [vmem:[%s0 + $0x40] sm:$0xff]
  %v25 = vld [vmem:[%s0 + $0x48] sm:$0xff]
  %v26 = vld [vmem:[%s0 + $0x50] sm:$0xff]
  %v27 = vld [vmem:[%s0 + $0x58] sm:$0xff]
  %v28 = vld [vmem:[%s0 + $0x60] sm:$0xff]
  %v29 = vld [vmem:[%s0 + $0x68] sm:$0xff]
  %v30 = vld [vmem:[%s0 + $0x70] sm:$0xff]
  %v31 = vld [vmem:[%s0 + $0x78] sm:$0xff]
  %v32 = vld [vmem:[%s0 + $0x80] sm:$0xff]
  %v33 = vld [vmem:[%s0 + $0x88] sm:$0xff]
  %v34 = vld [vmem:[%s0 + $0x90] sm:$0xff]
  %v35 = vld [vmem:[%s0 + $0x98] sm:$0xff]
  %v36 = vld [vmem:[%s0 + $0xa0] sm:$0xff]
  %v37 = vld [vmem:[%s0 + $0xa8] sm:$0xff]
  %v38 = vld [vmem:[%s0 + $0xb0] sm:$0xff]
  %v39 = vld [vmem:[%s0 + $0xb8] sm:$0xff]
  %v40 = vld [vmem:[%s0 + $0xc0] sm:$0xff]
  %v41 = vld [vmem:[%s0 + $0xc8] sm:$0xff]
  %v42 = vld [vmem:[%s0 + $0xd0] sm:$0xff]
  %v43 = vld [vmem:[%s0 + $0xd8] sm:$0xff]
  %v44 = vld [vmem:[%s0 + $0xe0] sm:$0xff]
  %v45 = vld [vmem:[%s0 + $0xe8] sm:$0xff]
  %v46 = vld [vmem:[%s0 + $0xf0] sm:$0xff]
  %v47 = vld [vmem:[%s0 + $0xf8] sm:$0xff]
  %v48 = vld [vmem:[%s0 + $0x100] sm:$0xff]
  %v49 = vld [vmem:[%s0 + $0x108] sm:$0xff]
  %v50 = vld [vmem:[%s0 + $0x110] sm:$0xff]
  %v51 = vld [vmem:[%s0 + $0x118] sm:$0xff]
  %v52 = vld [vmem:[%s0 + $0x120] sm:$0xff]
  %v53 = vld [vmem:[%s0 + $0x128] sm:$0xff]
  %v54 = vld [vmem:[%s0 + $0x130] sm:$0xff]
  %v55 = vld [vmem:[%s0 + $0x138] sm:$0xff]
  %v56 = vld [vmem:[%s0 + $0x140] sm:$0xff]
  %v57 = vld [vmem:[%s1] sm:$0xff]
  %v58 = vld [vmem:[%s1 + $0x8] sm:$0xff]
  %v59 = vld [vmem:[%s1 + $0x10] sm:$0xff]
  %v60 = vld [vmem:[%s1 + $0x18] sm:$0xff]
  %v61 = vld [vmem:[%s1 + $0x20] sm:$0xff]
  %v62 = vld [vmem:[%s1 + $0x28] sm:$0xff]
  %v63 = vld [vmem:[%s1 + $0x30] sm:$0xff]
  %v64 = vld [vmem:[%s1 + $0x38] sm:$0xff]
  %v65 = vld [vmem:[%s1 + $0x40] sm:$0xff]
  %v66 = vld [vmem:[%s1 + $0x48] sm:$0xff]
  %v67 = vld [vmem:[%s1 + $0x50] sm:$0xff]
  %v68 = vld [vmem:[%s1 + $0x58] sm:$0xff]
  %v69 = vld [vmem:[%s1 + $0x60] sm:$0xff]
  %v70 = vld [vmem:[%s1 + $0x68] sm:$0xff]
  %v71 = vld [vmem:[%s1 + $0x70] sm:$0xff]
  %v72 = vld [vmem:[%s1 + $0x78] sm:$0xff]
  %73 = vmatprep.subr.mxu0 0.0
  %74 = vmatpush1.msra.mxu0 %v57
  %75 = vmatprep.subr.mxu0 0.0
  %76 = vmatpush1.msra.mxu0 %v58
  %77 = vmatprep.subr.mxu0 0.0
  %78 = vmatpush1.msra.mxu0 %v59
  %79 = vmatprep.subr.mxu0 0.0
  %80 = vmatpush1.msra.mxu0 %v60
  %81 = vmatprep.subr.mxu0 0.0
  %82 = vmatpush1.msra.mxu0 %v61
  %83 = vmatprep.subr.mxu0 0.0
  %84 = vmatpush1.msra.mxu0 %v62
  %85 = vmatprep.subr.mxu0 0.0
  %86 = vmatpush1.msra.mxu0 %v63
  %87 = vmatprep.subr.mxu0 0.0
  %88 = vmatpush1.msra.mxu0 %v64
  %89 = vmatprep.subr.mxu0 0.0
  %90 = vmatpush1.msra.mxu0 %v65
  %91 = vmatprep.subr.mxu0 0.0
  %92 = vmatpush1.msra.mxu0 %v66
  %93 = vmatprep.subr.mxu0 0.0
  %94 = vmatpush1.msra.mxu0 %v67
  %95 = vmatprep.subr.mxu0 0.0
  %96 = vmatpush1.msra.mxu0 %v68
  %97 = vmatprep.subr.mxu0 0.0
  %98 = vmatpush1.msra.mxu0 %v69
  %99 = vmatprep.subr.mxu0 0.0
  %100 = vmatpush1.msra.mxu0 %v70
  %101 = vmatprep.subr.mxu0 0.0
  %102 = vmatpush1.msra.mxu0 %v71
  %103 = vmatprep.subr.mxu0 0.0
  %104 = vmatpush1.msra.mxu0 %v72
  %105 = vmatprep.subr.mxu0 0.0
  %106 = vmatpush1.msra.mxu0 0.0
  %107 = vmatprep.subr.mxu0 0.0
  %108 = vmatpush1.msra.mxu0 0.0
  %109 = vmatprep.subr.mxu0 0.0
  %110 = vmatpush1.msra.mxu0 0.0
  %111 = vmatprep.subr.mxu0 0.0
  %112 = vmatpush1.msra.mxu0 0.0
  %113 = vmatprep.subr.mxu0 0.0
  %114 = vmatpush1.msra.mxu0 0.0
  %115 = vmatprep.subr.mxu0 0.0
  %116 = vmatpush1.msra.mxu0 0.0
  %117 = vmatprep.subr.mxu0 0.0
  %118 = vmatpush1.msra.mxu0 0.0
  %119 = vmatprep.subr.mxu0 0.0
  %120 = vmatpush1.msra.mxu0 0.0
  %121 = vmatprep.subr.mxu0 0.0
  %122 = vmatpush1.msra.mxu0 0.0
  %123 = vmatprep.subr.mxu0 0.0
  %124 = vmatpush1.msra.mxu0 0.0
  %125 = vmatprep.subr.mxu0 0.0
  %126 = vmatpush1.msra.mxu0 0.0
  %127 = vmatprep.subr.mxu0 0.0
  %128 = vmatpush1.msra.mxu0 0.0
  %129 = vmatprep.subr.mxu0 0.0
  %130 = vmatpush1.msra.mxu0 0.0
  %131 = vmatprep.subr.mxu0 0.0
  %132 = vmatpush1.msra.mxu0 0.0
  %133 = vmatprep.subr.mxu0 0.0
  %134 = vmatpush1.msra.mxu0 0.0
  %135 = vmatprep.subr.mxu0 0.0
  %136 = vmatpush1.msra.mxu0 0.0
  %137 = vmatprep.mubr.f32.mxu0 0.0
  %138 = vmatmul.mubr.f32.gmra.mrb[0].mxu0 %v16
  %v139 = vpop.f32.mrb[0].mxu0
  %v140 = vadd.f32 0.0, %v139
  %v141 = vpop.f32.mrb[0].mxu0
  %142 = vmatprep.mubr.f32.mxu0 0.0
  %143 = vmatmul.mubr.f32.gmra.mrb[0].mxu0 %v17
  %v144 = vpop.f32.mrb[0].mxu0
  %v145 = vadd.f32 0.0, %v144
  %v146 = vpop.f32.mrb[0].mxu0
  %147 = vmatprep.mubr.f32.mxu0 0.0
  %148 = vmatmul.mubr.f32.gmra.mrb[0].mxu0 %v18
  %v149 = vpop.f32.mrb[0].mxu0
  %v150 = vadd.f32 0.0, %v149
  %v151 = vpop.f32.mrb[0].mxu0
  %152 = vmatprep.mubr.f32.mxu0 0.0
  %153 = vmatmul.mubr.f32.gmra.mrb[0].mxu0 %v19
  %v154 = vpop.f32.mrb[0].mxu0
  %v155 = vadd.f32 0.0, %v154
  %v156 = vpop.f32.mrb[0].mxu0
  %157 = vmatprep.mubr.f32.mxu0 0.0
  %158 = vmatmul.mubr.f32.gmra.mrb[0].mxu0 %v20
  %v159 = vpop.f32.mrb[0].mxu0
  %v160 = vadd.f32 0.0, %v159
  %v161 = vpop.f32.mrb[0].mxu0
  %162 = vmatprep.mubr.f32.mxu0 0.0
  %163 = vmatmul.mubr.f32.gmra.mrb[0].mxu0 %v21
  %v164 = vpop.f32.mrb[0].mxu0
  %v165 = vadd.f32 0.0, %v164
  %v166 = vpop.f32.mrb[0].mxu0
  %167 = vmatprep.mubr.f32.mxu0 0.0
  %168 = vmatmul.mubr.f32.gmra.mrb[0].mxu0 %v22
  %v169 = vpop.f32.mrb[0].mxu0
  %v170 = vadd.f32 0.0, %v169
  %v171 = vpop.f32.mrb[0].mxu0
  %172 = vmatprep.mubr.f32.mxu0 0.0
  %173 = vmatmul.mubr.f32.gmra.mrb[0].mxu0 %v23
  %v174 = vpop.f32.mrb[0].mxu0
  %v175 = vadd.f32 0.0, %v174
  %v176 = vpop.f32.mrb[0].mxu0
  %177 = vmatprep.mubr.f32.mxu0 0.0
  %178 = vmatmul.mubr.f32.gmra.mrb[0].mxu0 %v24
  %v179 = vpop.f32.mrb[0].mxu0
  %v180 = vadd.f32 0.0, %v179
  %v181 = vpop.f32.mrb[0].mxu0
  %182 = vmatprep.mubr.f32.mxu0 0.0
  %183 = vmatmul.mubr.f32.gmra.mrb[0].mxu0 %v25
  %v184 = vpop.f32.mrb[0].mxu0
  %v185 = vadd.f32 0.0, %v184
  %v186 = vpop.f32.mrb[0].mxu0
  %187 = vmatprep.mubr.f32.mxu0 0.0
  %188 = vmatmul.mubr.f32.gmra.mrb[0].mxu0 %v26
  %v189 = vpop.f32.mrb[0].mxu0
  %v190 = vadd.f32 0.0, %v189
  %v191 = vpop.f32.mrb[0].mxu0
  %192 = vmatprep.mubr.f32.mxu0 0.0
  %193 = vmatmul.mubr.f32.gmra.mrb[0].mxu0 %v27
  %v194 = vpop.f32.mrb[0].mxu0
  %v195 = vadd.f32 0.0, %v194
  %v196 = vpop.f32.mrb[0].mxu0
  %197 = vmatprep.mubr.f32.mxu0 0.0
  %198 = vmatmul.mubr.f32.gmra.mrb[0].mxu0 %v28
  %v199 = vpop.f32.mrb[0].mxu0
  %v200 = vadd.f32 0.0, %v199
  %v201 = vpop.f32.mrb[0].mxu0
  %202 = vmatprep.mubr.f32.mxu0 0.0
  %203 = vmatmul.mubr.f32.gmra.mrb[0].mxu0 %v29
  %v204 = vpop.f32.mrb[0].mxu0
  %v205 = vadd.f32 0.0, %v204
  %v206 = vpop.f32.mrb[0].mxu0
  %207 = vmatprep.mubr.f32.mxu0 0.0
  %208 = vmatmul.mubr.f32.gmra.mrb[0].mxu0 %v30
  %v209 = vpop.f32.mrb[0].mxu0
  %v210 = vadd.f32 0.0, %v209
  %v211 = vpop.f32.mrb[0].mxu0
  %212 = vmatprep.mubr.f32.mxu0 0.0
  %213 = vmatmul.mubr.f32.gmra.mrb[0].mxu0 %v31
  %v214 = vpop.f32.mrb[0].mxu0
  %v215 = vadd.f32 0.0, %v214
  %v216 = vpop.f32.mrb[0].mxu0
  %217 = vmatprep.mubr.f32.mxu0 0.0
  %218 = vmatmul.mubr.f32.gmra.mrb[0].mxu0 %v32
  %v219 = vpop.f32.mrb[0].mxu0
  %v220 = vadd.f32 0.0, %v219
  %v221 = vpop.f32.mrb[0].mxu0
  %222 = vmatprep.mubr.f32.mxu0 0.0
  %223 = vmatmul.mubr.f32.gmra.mrb[0].mxu0 %v33
  %v224 = vpop.f32.mrb[0].mxu0
  %v225 = vadd.f32 0.0, %v224
  %v226 = vpop.f32.mrb[0].mxu0
  %227 = vmatprep.mubr.f32.mxu0 0.0
  %228 = vmatmul.mubr.f32.gmra.mrb[0].mxu0 %v34
  %v229 = vpop.f32.mrb[0].mxu0
  %v230 = vadd.f32 0.0, %v229
  %v231 = vpop.f32.mrb[0].mxu0
  %232 = vmatprep.mubr.f32.mxu0 0.0
  %233 = vmatmul.mubr.f32.gmra.mrb[0].mxu0 %v35
  %v234 = vpop.f32.mrb[0].mxu0
  %v235 = vadd.f32 0.0, %v234
  %v236 = vpop.f32.mrb[0].mxu0
  %237 = vmatprep.mubr.f32.mxu0 0.0
  %238 = vmatmul.mubr.f32.gmra.mrb[0].mxu0 %v36
  %v239 = vpop.f32.mrb[0].mxu0
  %v240 = vadd.f32 0.0, %v239
  %v241 = vpop.f32.mrb[0].mxu0
  %242 = vmatprep.mubr.f32.mxu0 0.0
  %243 = vmatmul.mubr.f32.gmra.mrb[0].mxu0 %v37
  %v244 = vpop.f32.mrb[0].mxu0
  %v245 = vadd.f32 0.0, %v244
  %v246 = vpop.f32.mrb[0].mxu0
  %247 = vmatprep.mubr.f32.mxu0 0.0
  %248 = vmatmul.mubr.f32.gmra.mrb[0].mxu0 %v38
  %v249 = vpop.f32.mrb[0].mxu0
  %v250 = vadd.f32 0.0, %v249
  %v251 = vpop.f32.mrb[0].mxu0
  %252 = vmatprep.mubr.f32.mxu0 0.0
  %253 = vmatmul.mubr.f32.gmra.mrb[0].mxu0 %v39
  %v254 = vpop.f32.mrb[0].mxu0
  %v255 = vadd.f32 0.0, %v254
  %v256 = vpop.f32.mrb[0].mxu0
  %257 = vmatprep.mubr.f32.mxu0 0.0
  %258 = vmatmul.mubr.f32.gmra.mrb[0].mxu0 %v40
  %v259 = vpop.f32.mrb[0].mxu0
  %v260 = vadd.f32 0.0, %v259
  %v261 = vpop.f32.mrb[0].mxu0
  %262 = vmatprep.mubr.f32.mxu0 0.0
  %263 = vmatmul.mubr.f32.gmra.mrb[0].mxu0 %v41
  %v264 = vpop.f32.mrb[0].mxu0
  %v265 = vadd.f32 0.0, %v264
  %v266 = vpop.f32.mrb[0].mxu0
  %267 = vmatprep.mubr.f32.mxu0 0.0
  %268 = vmatmul.mubr.f32.gmra.mrb[0].mxu0 %v42
  %v269 = vpop.f32.mrb[0].mxu0
  %v270 = vadd.f32 0.0, %v269
  %v271 = vpop.f32.mrb[0].mxu0
  %272 = vmatprep.mubr.f32.mxu0 0.0
  %273 = vmatmul.mubr.f32.gmra.mrb[0].mxu0 %v43
  %v274 = vpop.f32.mrb[0].mxu0
  %v275 = vadd.f32 0.0, %v274
  %v276 = vpop.f32.mrb[0].mxu0
  %277 = vmatprep.mubr.f32.mxu0 0.0
  %278 = vmatmul.mubr.f32.gmra.mrb[0].mxu0 %v44
  %v279 = vpop.f32.mrb[0].mxu0
  %v280 = vadd.f32 0.0, %v279
  %v281 = vpop.f32.mrb[0].mxu0
  %282 = vmatprep.mubr.f32.mxu0 0.0
  %283 = vmatmul.mubr.f32.gmra.mrb[0].mxu0 %v45
  %v284 = vpop.f32.mrb[0].mxu0
  %v285 = vadd.f32 0.0, %v284
  %v286 = vpop.f32.mrb[0].mxu0
  %287 = vmatprep.mubr.f32.mxu0 0.0
  %288 = vmatmul.mubr.f32.gmra.mrb[0].mxu0 %v46
  %v289 = vpop.f32.mrb[0].mxu0
  %v290 = vadd.f32 0.0, %v289
  %v291 = vpop.f32.mrb[0].mxu0
  %292 = vmatprep.mubr.f32.mxu0 0.0
  %293 = vmatmul.mubr.f32.gmra.mrb[0].mxu0 %v47
  %v294 = vpop.f32.mrb[0].mxu0
  %v295 = vadd.f32 0.0, %v294
  %v296 = vpop.f32.mrb[0].mxu0
  %297 = vmatprep.mubr.f32.mxu0 0.0
  %298 = vmatmul.mubr.f32.gmra.mrb[0].mxu0 %v48
  %v299 = vpop.f32.mrb[0].mxu0
  %v300 = vadd.f32 0.0, %v299
  %v301 = vpop.f32.mrb[0].mxu0
  %302 = vmatprep.mubr.f32.mxu0 0.0
  %303 = vmatmul.mubr.f32.gmra.mrb[0].mxu0 %v49
  %v304 = vpop.f32.mrb[0].mxu0
  %v305 = vadd.f32 0.0, %v304
  %v306 = vpop.f32.mrb[0].mxu0
  %307 = vmatprep.mubr.f32.mxu0 0.0
  %308 = vmatmul.mubr.f32.gmra.mrb[0].mxu0 %v50
  %v309 = vpop.f32.mrb[0].mxu0
  %v310 = vadd.f32 0.0, %v309
  %v311 = vpop.f32.mrb[0].mxu0
  %312 = vmatprep.mubr.f32.mxu0 0.0
  %313 = vmatmul.mubr.f32.gmra.mrb[0].mxu0 %v51
  %v314 = vpop.f32.mrb[0].mxu0
  %v315 = vadd.f32 0.0, %v314
  %v316 = vpop.f32.mrb[0].mxu0
  %317 = vmatprep.mubr.f32.mxu0 0.0
  %318 = vmatmul.mubr.f32.gmra.mrb[0].mxu0 %v52
  %v319 = vpop.f32.mrb[0].mxu0
  %v320 = vadd.f32 0.0, %v319
  %v321 = vpop.f32.mrb[0].mxu0
  %322 = vmatprep.mubr.f32.mxu0 0.0
  %323 = vmatmul.mubr.f32.gmra.mrb[0].mxu0 %v53
  %v324 = vpop.f32.mrb[0].mxu0
  %v325 = vadd.f32 0.0, %v324
  %v326 = vpop.f32.mrb[0].mxu0
  %327 = vmatprep.mubr.f32.mxu0 0.0
  %328 = vmatmul.mubr.f32.gmra.mrb[0].mxu0 %v54
  %v329 = vpop.f32.mrb[0].mxu0
  %v330 = vadd.f32 0.0, %v329
  %v331 = vpop.f32.mrb[0].mxu0
  %332 = vmatprep.mubr.f32.mxu0 0.0
  %333 = vmatmul.mubr.f32.gmra.mrb[0].mxu0 %v55
  %v334 = vpop.f32.mrb[0].mxu0
  %v335 = vadd.f32 0.0, %v334
  %v336 = vpop.f32.mrb[0].mxu0
  %337 = vmatprep.mubr.f32.mxu0 0.0
  %338 = vmatmul.mubr.f32.gmra.mrb[0].mxu0 %v56
  %v339 = vpop.f32.mrb[0].mxu0
  %v340 = vadd.f32 0.0, %v339
  %v341 = vpop.f32.mrb[0].mxu0
  %342 = vdwg.mxu0
  %s343 = smul.u32 0, 328
  %v344 = vlaneseq
  %v345 = vshrl.u32 %v344, 7
  %v346 = vadd.s32 %v345, 8
  %v347 = vadd.s32 %v345, 16
  %v348 = vadd.s32 %v345, 24
  %v349 = vadd.s32 %v345, 32
  %v350 = vadd.s32 %v345, 40
  %v351 = vadd.s32 %v345, 48
  %v352 = vadd.s32 %v345, 56
  %v353 = vadd.s32 %v345, 64
  %v354 = vadd.s32 %v345, 72
  %v355 = vadd.s32 %v345, 80
  %v356 = vadd.s32 %v345, 88
  %v357 = vadd.s32 %v345, 96
  %v358 = vadd.s32 %v345, 104
  %v359 = vadd.s32 %v345, 112
  %v360 = vadd.s32 %v345, 120
  %v361 = vadd.s32 %v345, 128
  %v362 = vadd.s32 %v345, 136
  %v363 = vadd.s32 %v345, 144
  %v364 = vadd.s32 %v345, 152
  %v365 = vadd.s32 %v345, 160
  %v366 = vadd.s32 %v345, 168
  %v367 = vadd.s32 %v345, 176
  %v368 = vadd.s32 %v345, 184
  %v369 = vadd.s32 %v345, 192
  %v370 = vadd.s32 %v345, 200
  %v371 = vadd.s32 %v345, 208
  %v372 = vadd.s32 %v345, 216
  %v373 = vadd.s32 %v345, 224
  %v374 = vadd.s32 %v345, 232
  %v375 = vadd.s32 %v345, 240
  %v376 = vadd.s32 %v345, 248
  %v377 = vadd.s32 %v345, 256
  %v378 = vadd.s32 %v345, 264
  %v379 = vadd.s32 %v345, 272
  %v380 = vadd.s32 %v345, 280
  %v381 = vadd.s32 %v345, 288
  %v382 = vadd.s32 %v345, 296
  %v383 = vadd.s32 %v345, 304
  %v384 = vadd.s32 %v345, 312
  %v385 = vadd.s32 %v345, 320
  %v386 = vstv %s343
  %v387 = vadd.s32 %v386, %v345
  %v388 = vadd.s32 %v386, %v346
  %v389 = vadd.s32 %v386, %v347
  %v390 = vadd.s32 %v386, %v348
  %v391 = vadd.s32 %v386, %v349
  %v392 = vadd.s32 %v386, %v350
  %v393 = vadd.s32 %v386, %v351
  %v394 = vadd.s32 %v386, %v352
  %v395 = vadd.s32 %v386, %v353
  %v396 = vadd.s32 %v386, %v354
  %v397 = vadd.s32 %v386, %v355
  %v398 = vadd.s32 %v386, %v356
  %v399 = vadd.s32 %v386, %v357
  %v400 = vadd.s32 %v386, %v358
  %v401 = vadd.s32 %v386, %v359
  %v402 = vadd.s32 %v386, %v360
  %v403 = vadd.s32 %v386, %v361
  %v404 = vadd.s32 %v386, %v362
  %v405 = vadd.s32 %v386, %v363
  %v406 = vadd.s32 %v386, %v364
  %v407 = vadd.s32 %v386, %v365
  %v408 = vadd.s32 %v386, %v366
  %v409 = vadd.s32 %v386, %v367
  %v410 = vadd.s32 %v386, %v368
  %v411 = vadd.s32 %v386, %v369
  %v412 = vadd.s32 %v386, %v370
  %v413 = vadd.s32 %v386, %v371
  %v414 = vadd.s32 %v386, %v372
  %v415 = vadd.s32 %v386, %v373
  %v416 = vadd.s32 %v386, %v374
  %v417 = vadd.s32 %v386, %v375
  %v418 = vadd.s32 %v386, %v376
  %v419 = vadd.s32 %v386, %v377
  %v420 = vadd.s32 %v386, %v378
  %v421 = vadd.s32 %v386, %v379
  %v422 = vadd.s32 %v386, %v380
  %v423 = vadd.s32 %v386, %v381
  %v424 = vadd.s32 %v386, %v382
  %v425 = vadd.s32 %v386, %v383
  %v426 = vadd.s32 %v386, %v384
  %v427 = vadd.s32 %v386, %v385
  %vm428 = vcmp.eq.s32.totalorder %v387, 0
  %vm429 = vcmp.eq.s32.totalorder %v388, 0
  %vm430 = vcmp.eq.s32.totalorder %v389, 0
  %vm431 = vcmp.eq.s32.totalorder %v390, 0
  %vm432 = vcmp.eq.s32.totalorder %v391, 0
  %vm433 = vcmp.eq.s32.totalorder %v392, 0
  %vm434 = vcmp.eq.s32.totalorder %v393, 0
  %vm435 = vcmp.eq.s32.totalorder %v394, 0
  %vm436 = vcmp.eq.s32.totalorder %v395, 0
  %vm437 = vcmp.eq.s32.totalorder %v396, 0
  %vm438 = vcmp.eq.s32.totalorder %v397, 0
  %vm439 = vcmp.eq.s32.totalorder %v398, 0
  %vm440 = vcmp.eq.s32.totalorder %v399, 0
  %vm441 = vcmp.eq.s32.totalorder %v400, 0
  %vm442 = vcmp.eq.s32.totalorder %v401, 0
  %vm443 = vcmp.eq.s32.totalorder %v402, 0
  %vm444 = vcmp.eq.s32.totalorder %v403, 0
  %vm445 = vcmp.eq.s32.totalorder %v404, 0
  %vm446 = vcmp.eq.s32.totalorder %v405, 0
  %vm447 = vcmp.eq.s32.totalorder %v406, 0
  %vm448 = vcmp.eq.s32.totalorder %v407, 0
  %vm449 = vcmp.eq.s32.totalorder %v408, 0
  %vm450 = vcmp.eq.s32.totalorder %v409, 0
  %vm451 = vcmp.eq.s32.totalorder %v410, 0
  %vm452 = vcmp.eq.s32.totalorder %v411, 0
  %vm453 = vcmp.eq.s32.totalorder %v412, 0
  %vm454 = vcmp.eq.s32.totalorder %v413, 0
  %vm455 = vcmp.eq.s32.totalorder %v414, 0
  %vm456 = vcmp.eq.s32.totalorder %v415, 0
  %vm457 = vcmp.eq.s32.totalorder %v416, 0
  %vm458 = vcmp.eq.s32.totalorder %v417, 0
  %vm459 = vcmp.eq.s32.totalorder %v418, 0
  %vm460 = vcmp.eq.s32.totalorder %v419, 0
  %vm461 = vcmp.eq.s32.totalorder %v420, 0
  %vm462 = vcmp.eq.s32.totalorder %v421, 0
  %vm463 = vcmp.eq.s32.totalorder %v422, 0
  %vm464 = vcmp.eq.s32.totalorder %v423, 0
  %vm465 = vcmp.eq.s32.totalorder %v424, 0
  %vm466 = vcmp.eq.s32.totalorder %v425, 0
  %vm467 = vcmp.eq.s32.totalorder %v426, 0
  %vm468 = vcmp.eq.s32.totalorder %v427, 0
  %v469 = vsel %vm428, 1, 0
  %v470 = vsel %vm429, 1, 0
  %v471 = vsel %vm430, 1, 0
  %v472 = vsel %vm431, 1, 0
  %v473 = vsel %vm432, 1, 0
  %v474 = vsel %vm433, 1, 0
  %v475 = vsel %vm434, 1, 0
  %v476 = vsel %vm435, 1, 0
  %v477 = vsel %vm436, 1, 0
  %v478 = vsel %vm437, 1, 0
  %v479 = vsel %vm438, 1, 0
  %v480 = vsel %vm439, 1, 0
  %v481 = vsel %vm440, 1, 0
  %v482 = vsel %vm441, 1, 0
  %v483 = vsel %vm442, 1, 0
  %v484 = vsel %vm443, 1, 0
  %v485 = vsel %vm444, 1, 0
  %v486 = vsel %vm445, 1, 0
  %v487 = vsel %vm446, 1, 0
  %v488 = vsel %vm447, 1, 0
  %v489 = vsel %vm448, 1, 0
  %v490 = vsel %vm449, 1, 0
  %v491 = vsel %vm450, 1, 0
  %v492 = vsel %vm451, 1, 0
  %v493 = vsel %vm452, 1, 0
  %v494 = vsel %vm453, 1, 0
  %v495 = vsel %vm454, 1, 0
  %v496 = vsel %vm455, 1, 0
  %v497 = vsel %vm456, 1, 0
  %v498 = vsel %vm457, 1, 0
  %v499 = vsel %vm458, 1, 0
  %v500 = vsel %vm459, 1, 0
  %v501 = vsel %vm460, 1, 0
  %v502 = vsel %vm461, 1, 0
  %v503 = vsel %vm462, 1, 0
  %v504 = vsel %vm463, 1, 0
  %v505 = vsel %vm464, 1, 0
  %v506 = vsel %vm465, 1, 0
  %v507 = vsel %vm466, 1, 0
  %v508 = vsel %vm467, 1, 0
  %v509 = vsel %vm468, 1, 0
  %vm510 = vcmp.eq.s32.totalorder %v469, 1
  %vm511 = vcmp.eq.s32.totalorder %v470, 1
  %vm512 = vcmp.eq.s32.totalorder %v471, 1
  %vm513 = vcmp.eq.s32.totalorder %v472, 1
  %vm514 = vcmp.eq.s32.totalorder %v473, 1
  %vm515 = vcmp.eq.s32.totalorder %v474, 1
  %vm516 = vcmp.eq.s32.totalorder %v475, 1
  %vm517 = vcmp.eq.s32.totalorder %v476, 1
  %vm518 = vcmp.eq.s32.totalorder %v477, 1
  %vm519 = vcmp.eq.s32.totalorder %v478, 1
  %vm520 = vcmp.eq.s32.totalorder %v479, 1
  %vm521 = vcmp.eq.s32.totalorder %v480, 1
  %vm522 = vcmp.eq.s32.totalorder %v481, 1
  %vm523 = vcmp.eq.s32.totalorder %v482, 1
  %vm524 = vcmp.eq.s32.totalorder %v483, 1
  %vm525 = vcmp.eq.s32.totalorder %v484, 1
  %vm526 = vcmp.eq.s32.totalorder %v485, 1
  %vm527 = vcmp.eq.s32.totalorder %v486, 1
  %vm528 = vcmp.eq.s32.totalorder %v487, 1
  %vm529 = vcmp.eq.s32.totalorder %v488, 1
  %vm530 = vcmp.eq.s32.totalorder %v489, 1
  %vm531 = vcmp.eq.s32.totalorder %v490, 1
  %vm532 = vcmp.eq.s32.totalorder %v491, 1
  %vm533 = vcmp.eq.s32.totalorder %v492, 1
  %vm534 = vcmp.eq.s32.totalorder %v493, 1
  %vm535 = vcmp.eq.s32.totalorder %v494, 1
  %vm536 = vcmp.eq.s32.totalorder %v495, 1
  %vm537 = vcmp.eq.s32.totalorder %v496, 1
  %vm538 = vcmp.eq.s32.totalorder %v497, 1
  %vm539 = vcmp.eq.s32.totalorder %v498, 1
  %vm540 = vcmp.eq.s32.totalorder %v499, 1
  %vm541 = vcmp.eq.s32.totalorder %v500, 1
  %vm542 = vcmp.eq.s32.totalorder %v501, 1
  %vm543 = vcmp.eq.s32.totalorder %v502, 1
  %vm544 = vcmp.eq.s32.totalorder %v503, 1
  %vm545 = vcmp.eq.s32.totalorder %v504, 1
  %vm546 = vcmp.eq.s32.totalorder %v505, 1
  %vm547 = vcmp.eq.s32.totalorder %v506, 1
  %vm548 = vcmp.eq.s32.totalorder %v507, 1
  %vm549 = vcmp.eq.s32.totalorder %v508, 1
  %vm550 = vcmp.eq.s32.totalorder %v509, 1
  %v551 = vsel %vm510, %v140, 0.0
  %v552 = vsel %vm511, %v145, 0.0
  %v553 = vsel %vm512, %v150, 0.0
  %v554 = vsel %vm513, %v155, 0.0
  %v555 = vsel %vm514, %v160, 0.0
  %v556 = vsel %vm515, %v165, 0.0
  %v557 = vsel %vm516, %v170, 0.0
  %v558 = vsel %vm517, %v175, 0.0
  %v559 = vsel %vm518, %v180, 0.0
  %v560 = vsel %vm519, %v185, 0.0
  %v561 = vsel %vm520, %v190, 0.0
  %v562 = vsel %vm521, %v195, 0.0
  %v563 = vsel %vm522, %v200, 0.0
  %v564 = vsel %vm523, %v205, 0.0
  %v565 = vsel %vm524, %v210, 0.0
  %v566 = vsel %vm525, %v215, 0.0
  %v567 = vsel %vm526, %v220, 0.0
  %v568 = vsel %vm527, %v225, 0.0
  %v569 = vsel %vm528, %v230, 0.0
  %v570 = vsel %vm529, %v235, 0.0
  %v571 = vsel %vm530, %v240, 0.0
  %v572 = vsel %vm531, %v245, 0.0
  %v573 = vsel %vm532, %v250, 0.0
  %v574 = vsel %vm533, %v255, 0.0
  %v575 = vsel %vm534, %v260, 0.0
  %v576 = vsel %vm535, %v265, 0.0
  %v577 = vsel %vm536, %v270, 0.0
  %v578 = vsel %vm537, %v275, 0.0
  %v579 = vsel %vm538, %v280, 0.0
  %v580 = vsel %vm539, %v285, 0.0
  %v581 = vsel %vm540, %v290, 0.0
  %v582 = vsel %vm541, %v295, 0.0
  %v583 = vsel %vm542, %v300, 0.0
  %v584 = vsel %vm543, %v305, 0.0
  %v585 = vsel %vm544, %v310, 0.0
  %v586 = vsel %vm545, %v315, 0.0
  %v587 = vsel %vm546, %v320, 0.0
  %v588 = vsel %vm547, %v325, 0.0
  %v589 = vsel %vm548, %v330, 0.0
  %v590 = vsel %vm549, %v335, 0.0
  %v591 = vsel %vm550, %v340, 0.0
  %v592 = vadd.f32 %v551, %v552
  %v593 = vadd.f32 %v592, %v553
  %v594 = vadd.f32 %v593, %v554
  %v595 = vadd.f32 %v594, %v555
  %v596 = vadd.f32 %v595, %v556
  %v597 = vadd.f32 %v596, %v557
  %v598 = vadd.f32 %v597, %v558
  %v599 = vadd.f32 %v598, %v559
  %v600 = vadd.f32 %v599, %v560
  %v601 = vadd.f32 %v600, %v561
  %v602 = vadd.f32 %v601, %v562
  %v603 = vadd.f32 %v602, %v563
  %v604 = vadd.f32 %v603, %v564
  %v605 = vadd.f32 %v604, %v565
  %v606 = vadd.f32 %v605, %v566
  %v607 = vadd.f32 %v606, %v567
  %v608 = vadd.f32 %v607, %v568
  %v609 = vadd.f32 %v608, %v569
  %v610 = vadd.f32 %v609, %v570
  %v611 = vadd.f32 %v610, %v571
  %v612 = vadd.f32 %v611, %v572
  %v613 = vadd.f32 %v612, %v573
  %v614 = vadd.f32 %v613, %v574
  %v615 = vadd.f32 %v614, %v575
  %v616 = vadd.f32 %v615, %v576
  %v617 = vadd.f32 %v616, %v577
  %v618 = vadd.f32 %v617, %v578
  %v619 = vadd.f32 %v618, %v579
  %v620 = vadd.f32 %v619, %v580
  %v621 = vadd.f32 %v620, %v581
  %v622 = vadd.f32 %v621, %v582
  %v623 = vadd.f32 %v622, %v583
  %v624 = vadd.f32 %v623, %v584
  %v625 = vadd.f32 %v624, %v585
  %v626 = vadd.f32 %v625, %v586
  %v627 = vadd.f32 %v626, %v587
  %v628 = vadd.f32 %v627, %v588
  %v629 = vadd.f32 %v628, %v589
  %v630 = vadd.f32 %v629, %v590
  %v631 = vadd.f32 %v630, %v591
  %v632 = vrot.slane %v631, 4
  %v633 = vadd.f32 %v631, %v632
  %v634 = vrot.slane %v633, 2
  %v635 = vadd.f32 %v633, %v634
  %v636 = vrot.slane %v635, 1
  %v637 = vadd.f32 %v635, %v636
  %v638 = vand.u32 2147483647, %v140
  %v639 = vand.u32 2147483647, %v145
  %v640 = vand.u32 2147483647, %v150
  %v641 = vand.u32 2147483647, %v155
  %v642 = vand.u32 2147483647, %v160
  %v643 = vand.u32 2147483647, %v165
  %v644 = vand.u32 2147483647, %v170
  %v645 = vand.u32 2147483647, %v175
  %v646 = vand.u32 2147483647, %v180
  %v647 = vand.u32 2147483647, %v185
  %v648 = vand.u32 2147483647, %v190
  %v649 = vand.u32 2147483647, %v195
  %v650 = vand.u32 2147483647, %v200
  %v651 = vand.u32 2147483647, %v205
  %v652 = vand.u32 2147483647, %v210
  %v653 = vand.u32 2147483647, %v215
  %v654 = vand.u32 2147483647, %v220
  %v655 = vand.u32 2147483647, %v225
  %v656 = vand.u32 2147483647, %v230
  %v657 = vand.u32 2147483647, %v235
  %v658 = vand.u32 2147483647, %v240
  %v659 = vand.u32 2147483647, %v245
  %v660 = vand.u32 2147483647, %v250
  %v661 = vand.u32 2147483647, %v255
  %v662 = vand.u32 2147483647, %v260
  %v663 = vand.u32 2147483647, %v265
  %v664 = vand.u32 2147483647, %v270
  %v665 = vand.u32 2147483647, %v275
  %v666 = vand.u32 2147483647, %v280
  %v667 = vand.u32 2147483647, %v285
  %v668 = vand.u32 2147483647, %v290
  %v669 = vand.u32 2147483647, %v295
  %v670 = vand.u32 2147483647, %v300
  %v671 = vand.u32 2147483647, %v305
  %v672 = vand.u32 2147483647, %v310
  %v673 = vand.u32 2147483647, %v315
  %v674 = vand.u32 2147483647, %v320
  %v675 = vand.u32 2147483647, %v325
  %v676 = vand.u32 2147483647, %v330
  %v677 = vand.u32 2147483647, %v335
  %v678 = vand.u32 2147483647, %v340
  %v679 = vsel %vm510, 0.0, %v638
  %v680 = vsel %vm511, 0.0, %v639
  %v681 = vsel %vm512, 0.0, %v640
  %v682 = vsel %vm513, 0.0, %v641
  %v683 = vsel %vm514, 0.0, %v642
  %v684 = vsel %vm515, 0.0, %v643
  %v685 = vsel %vm516, 0.0, %v644
  %v686 = vsel %vm517, 0.0, %v645
  %v687 = vsel %vm518, 0.0, %v646
  %v688 = vsel %vm519, 0.0, %v647
  %v689 = vsel %vm520, 0.0, %v648
  %v690 = vsel %vm521, 0.0, %v649
  %v691 = vsel %vm522, 0.0, %v650
  %v692 = vsel %vm523, 0.0, %v651
  %v693 = vsel %vm524, 0.0, %v652
  %v694 = vsel %vm525, 0.0, %v653
  %v695 = vsel %vm526, 0.0, %v654
  %v696 = vsel %vm527, 0.0, %v655
  %v697 = vsel %vm528, 0.0, %v656
  %v698 = vsel %vm529, 0.0, %v657
  %v699 = vsel %vm530, 0.0, %v658
  %v700 = vsel %vm531, 0.0, %v659
  %v701 = vsel %vm532, 0.0, %v660
  %v702 = vsel %vm533, 0.0, %v661
  %v703 = vsel %vm534, 0.0, %v662
  %v704 = vsel %vm535, 0.0, %v663
  %v705 = vsel %vm536, 0.0, %v664
  %v706 = vsel %vm537, 0.0, %v665
  %v707 = vsel %vm538, 0.0, %v666
  %v708 = vsel %vm539, 0.0, %v667
  %v709 = vsel %vm540, 0.0, %v668
  %v710 = vsel %vm541, 0.0, %v669
  %v711 = vsel %vm542, 0.0, %v670
  %v712 = vsel %vm543, 0.0, %v671
  %v713 = vsel %vm544, 0.0, %v672
  %v714 = vsel %vm545, 0.0, %v673
  %v715 = vsel %vm546, 0.0, %v674
  %v716 = vsel %vm547, 0.0, %v675
  %v717 = vsel %vm548, 0.0, %v676
  %v718 = vsel %vm549, 0.0, %v677
  %v719 = vsel %vm550, 0.0, %v678
  %v720 = vadd.f32 %v679, %v680
  %v721 = vadd.f32 %v720, %v681
  %v722 = vadd.f32 %v721, %v682
  %v723 = vadd.f32 %v722, %v683
  %v724 = vadd.f32 %v723, %v684
  %v725 = vadd.f32 %v724, %v685
  %v726 = vadd.f32 %v725, %v686
  %v727 = vadd.f32 %v726, %v687
  %v728 = vadd.f32 %v727, %v688
  %v729 = vadd.f32 %v728, %v689
  %v730 = vadd.f32 %v729, %v690
  %v731 = vadd.f32 %v730, %v691
  %v732 = vadd.f32 %v731, %v692
  %v733 = vadd.f32 %v732, %v693
  %v734 = vadd.f32 %v733, %v694
  %v735 = vadd.f32 %v734, %v695
  %v736 = vadd.f32 %v735, %v696
  %v737 = vadd.f32 %v736, %v697
  %v738 = vadd.f32 %v737, %v698
  %v739 = vadd.f32 %v738, %v699
  %v740 = vadd.f32 %v739, %v700
  %v741 = vadd.f32 %v740, %v701
  %v742 = vadd.f32 %v741, %v702
  %v743 = vadd.f32 %v742, %v703
  %v744 = vadd.f32 %v743, %v704
  %v745 = vadd.f32 %v744, %v705
  %v746 = vadd.f32 %v745, %v706
  %v747 = vadd.f32 %v746, %v707
  %v748 = vadd.f32 %v747, %v708
  %v749 = vadd.f32 %v748, %v709
  %v750 = vadd.f32 %v749, %v710
  %v751 = vadd.f32 %v750, %v711
  %v752 = vadd.f32 %v751, %v712
  %v753 = vadd.f32 %v752, %v713
  %v754 = vadd.f32 %v753, %v714
  %v755 = vadd.f32 %v754, %v715
  %v756 = vadd.f32 %v755, %v716
  %v757 = vadd.f32 %v756, %v717
  %v758 = vadd.f32 %v757, %v718
  %v759 = vadd.f32 %v758, %v719
  %v760 = vrot.slane %v759, 4
  %v761 = vadd.f32 %v759, %v760
  %v762 = vrot.slane %v761, 2
  %v763 = vadd.f32 %v761, %v762
  %v764 = vrot.slane %v763, 1
  %v765 = vadd.f32 %v763, %v764
  %v766 = vld [vmem:[#allocation2] sm:$0x1]
  %v767 = vsub.f32 %v637, %v765
  %v768 = vadd.f32 %v766, %v767
  %769 = vst [vmem:[#allocation2] sm:$0x1] %v768
  // Predicated region
  $region14: #{nnconvz_forward.11} parent=0 // pred_check
    %p770 = pneg %p11
  $region15: #{nnconvz_forward.11} parent=0 // pred_check_branch
    %772 = sbr.rel (%p770) target = $region17
  $region16: #{nnconvz_forward.11} parent=0 // pred_region
    %v773 = vld [vmem:[#allocation2] sm:$0x1]
    %774 = vst [vmem:[%s2] sm:$0x1] %v773
  $region17: #{nnconvz_forward.11} parent=0 // pred_fallthru
    _
  // Predicated region
  $region18: #{nnconvz_forward.11} parent=0 // pred_check
    _
  $region19: #{nnconvz_forward.11} parent=0 // pred_check_branch
    %776 = sbr.rel (0) target = $region21
  $region20: #{nnconvz_forward.11} parent=0 // pred_region
    _
  $region21: #{nnconvz_forward.11} parent=0 // pred_fallthru
    _
  // Predicated region
  $region22: #{nnconvz_forward.11} parent=0 // pred_check
    _
  $region23: #{nnconvz_forward.11} parent=0 // pred_check_branch
    %778 = sbr.rel (0) target = $region25
  $region24: #{nnconvz_forward.11} parent=0 // pred_region
    _
  $region25: #{nnconvz_forward.11} parent=0 // pred_fallthru
    _

</llo_original>
